<compile_context>
chip_gen: v6e
topology: v6e:2x2x1
jax: 0.10.0
libtpu: 0.0.40
codegen_flags: <defaults>
</compile_context>

<pallas_src>
import functools
import math

import jax
import jax.numpy as jnp
from jax.experimental import pallas as pl
from jax.experimental.pallas import tpu as pltpu


# ---------------------------------------------------------------------------
# Kernel
# ---------------------------------------------------------------------------
def _encoder_layer_kernel(
    x_ref,        # (1, S, D)  f32   (pipelined over batch)
    ln_g_ref,     # (1, D)     f32
    ln_b_ref,     # (1, D)     f32
    wqkv_ref,     # (D, 3D)    bf16  (q columns pre-scaled by 1/sqrt(hd))
    bqkv_ref,     # (1, 3D)    f32   (q part pre-scaled)
    wo_ref,       # (D, D)     bf16
    bo_ref,       # (1, D)     f32
    w1_ref,       # (D, M)     bf16
    b1_ref,       # (1, M)     f32
    w2_ref,       # (M, D)     bf16
    b2_ref,       # (1, D)     f32
    g1_wy_ref,    # (D, 3D)    bf16  gate-1 weights on y   [r | z | g]
    g1_wx_ref,    # (D, 3D)    bf16  gate-1 weights on x   [r | z | g]
    g1_bg_ref,    # (1, 1)     f32
    g2_wy_ref,    # (D, 3D)    bf16
    g2_wx_ref,    # (D, 3D)    bf16
    g2_bg_ref,    # (1, 1)     f32
    out_ref,      # (1, S, D)  f32
    o_sc,         # (S, D)     bf16  VMEM scratch: merged per-head attn output
    *,
    num_heads: int,
):
    f32 = jnp.float32
    bf16 = jnp.bfloat16

    x = x_ref[0]                                   # (S, D) f32
    S, D = x.shape
    H = num_heads
    hd = D // H
    eps = 1e-5

    # Hoisted LayerNorm affine params — loaded once (broadcasts are not CSE'd).
    ln_g = ln_g_ref[...]                           # (1, D)
    ln_b = ln_b_ref[...]                           # (1, D)

    def layernorm(v):                              # v: (S, D) f32
        mu = jnp.mean(v, axis=-1, keepdims=True)
        c = v - mu
        var = jnp.mean(c * c, axis=-1, keepdims=True)
        return c * jax.lax.rsqrt(var + eps) * ln_g + ln_b

    def gru_gate(xg, yg, wy_ref, wx_ref, bg):
        """GTrXL GRU gate; wy/wx are (D, 3D) Refs packed as [r | z | g]."""
        xb = xg.astype(bf16)
        yb = yg.astype(bf16)
        # Fused gate matmuls (review item): 3 dots instead of 6.  The f32
        # result slices below are at D-aligned (tile-aligned) columns.
        py = jnp.dot(yb, wy_ref[...], preferred_element_type=f32)          # (S,3D)
        px = jnp.dot(xb, wx_ref[:, : 2 * D], preferred_element_type=f32)   # (S,2D)
        r = jax.nn.sigmoid(py[:, :D] + px[:, :D])
        z = jax.nn.sigmoid(py[:, D:2 * D] + px[:, D:2 * D] - bg)
        pg = jnp.dot((r * xg).astype(bf16), wx_ref[:, 2 * D:],
                     preferred_element_type=f32)                           # (S, D)
        h = jnp.tanh(py[:, 2 * D:] + pg)
        return (1.0 - z) * xg + z * h

    # ------------------ y = dropout(mha(ln1(x))) ------------------
    y = layernorm(x)
    # Single fused, lane-dense QKV projection (scale already folded into the
    # q columns of wqkv / bqkv by the wrapper).
    qkv = jnp.dot(y.astype(bf16), wqkv_ref[...],
                  preferred_element_type=f32) + bqkv_ref[...]              # (S, 3D)
    qkv_b = qkv.astype(bf16)

    # Per-head attention on tile-aligned lane slices of the fused qkv.  The
    # unrolled loop keeps only one (S, S) score block live at a time.
    for h in range(H):
        q_h = qkv_b[:, h * hd:(h + 1) * hd]                        # (S, hd)
        k_h = qkv_b[:, D + h * hd:D + (h + 1) * hd]                # (S, hd)
        v_h = qkv_b[:, 2 * D + h * hd:2 * D + (h + 1) * hd]        # (S, hd)

        # q @ k^T without materializing a transpose.
        s_h = jax.lax.dot_general(
            q_h, k_h, (((1,), (1,)), ((), ())),
            preferred_element_type=f32)                            # (S, S)
        s_h = s_h - jnp.max(s_h, axis=-1, keepdims=True)
        p_h = jnp.exp(s_h)
        p_h = p_h * pl.reciprocal(jnp.sum(p_h, axis=-1, keepdims=True),
                                  approx=True)

        o_sc[:, h * hd:(h + 1) * hd] = jnp.dot(
            p_h.astype(bf16), v_h, preferred_element_type=f32).astype(bf16)

    # Fused output projection: heads contracted via layout -> one K=D matmul.
    y_attn = jnp.dot(o_sc[...], wo_ref[...],
                     preferred_element_type=f32) + bo_ref[...]             # (S, D)
    # dropout(0.1) == identity at inference.

    # ------------------ x = gate1(x, relu(y)) ------------------
    x1 = gru_gate(x, jnp.maximum(y_attn, 0.0),
                  g1_wy_ref, g1_wx_ref, g1_bg_ref[0, 0])

    # ------------------ y = mlp(ln1(x)) ------------------
    y2 = layernorm(x1)
    hmid = jnp.dot(y2.astype(bf16), w1_ref[...],
                   preferred_element_type=f32) + b1_ref[...]               # (S, M)
    hmid = jax.nn.gelu(hmid)
    y_mlp = jnp.dot(hmid.astype(bf16), w2_ref[...],
                    preferred_element_type=f32) + b2_ref[...]              # (S, D)

    # ------------------ x = gate2(x, relu(y)) ------------------
    out_ref[0] = gru_gate(x1, jnp.maximum(y_mlp, 0.0),
                          g2_wy_ref, g2_wx_ref, g2_bg_ref[0, 0])


# ---------------------------------------------------------------------------
# Wrapper
# ---------------------------------------------------------------------------
def encoder_layer(x, params, *, num_heads):
    B, S, D = x.shape
    hd = D // num_heads
    M = params["w1"].shape[1]
    bf16 = jnp.bfloat16
    f32 = jnp.float32
    scale = 1.0 / math.sqrt(hd)

    # ---- wrapper-side (XLA) weight prep: fold attention scale + bf16 cast ----
    wqkv = params["wqkv"].astype(f32)
    bqkv = params["bqkv"].astype(f32)
    wqkv = jnp.concatenate([wqkv[:, :D] * scale, wqkv[:, D:]], axis=1).astype(bf16)
    bqkv = jnp.concatenate([bqkv[:, :D] * scale, bqkv[:, D:]], axis=1)

    wo = params["wo"].astype(bf16)
    w1 = params["w1"].astype(bf16)
    w2 = params["w2"].astype(bf16)
    g1_wy = params["g1_wy"].astype(bf16)
    g1_wx = params["g1_wx"].astype(bf16)
    g2_wy = params["g2_wy"].astype(bf16)
    g2_wx = params["g2_wx"].astype(bf16)

    # Constant operands: whole array resident in VMEM, single-buffered
    # (their block never changes across the batch grid, so double-buffering
    # would only double their VMEM residency).
    const = pl.BlockSpec(memory_space=pltpu.MemorySpace.VMEM)

    in_specs = [pl.BlockSpec((1, S, D), lambda b: (b, 0, 0))] + [const] * 16

    # Explicit VMEM budget: bf16 weights + fused activation slabs + one
    # per-head score block + double-buffered x/out blocks, with headroom.
    # Floor 32 MiB (>= v6e/v7x default), cap 64 MiB (<= v7x physical).
    weight_bytes = 2 * (16 * D * D + 2 * D * M) + 4 * (8 * D + M + 2)
    act_bytes = 4 * S * (13 * D + 2 * M) + 3 * 4 * S * S + 2 * S * D
    io_bytes = 2 * 2 * 2 * (S * D * 4)
    vmem_limit = min(64 * 1024 * 1024,
                     max(32 * 1024 * 1024,
                         int(1.5 * (weight_bytes + act_bytes + io_bytes))))

    # Advisory cost estimate so XLA can schedule/overlap around the fused call.
    matmul_flops = (
        2 * B * S * D * (3 * D)        # fused qkv projection
        + 4 * B * S * S * D            # scores + PV
        + 2 * B * S * D * D            # fused output projection
        + 4 * B * S * D * M            # mlp
        + 24 * B * S * D * D           # two GRU gates (3 fused dots each)
    )
    transcendentals = B * S * (num_heads * S + 6 * D + M)
    bytes_accessed = 8 * B * S * D + weight_bytes

    kernel = functools.partial(_encoder_layer_kernel, num_heads=num_heads)

    return pl.pallas_call(
        kernel,
        out_shape=jax.ShapeDtypeStruct((B, S, D), jnp.float32),
        grid=(B,),
        in_specs=in_specs,
        out_specs=pl.BlockSpec((1, S, D), lambda b: (b, 0, 0)),
        scratch_shapes=[pltpu.VMEM((S, D), bf16)],
        compiler_params=pltpu.CompilerParams(
            dimension_semantics=("parallel",),
            vmem_limit_bytes=vmem_limit),
        cost_estimate=pl.CostEstimate(
            flops=int(matmul_flops),
            transcendentals=int(transcendentals),
            bytes_accessed=int(bytes_accessed)),
    )(
        x,
        params["ln_g"], params["ln_b"],
        wqkv, bqkv,
        wo, params["bo"],
        w1, params["b1"], w2, params["b2"],
        g1_wy, g1_wx, params["g1_bg"],
        g2_wy, g2_wx, params["g2_bg"],
    )


# ---------------------------------------------------------------------------
# Pure-JAX f32 reference (same math) for validation
# ---------------------------------------------------------------------------
def encoder_layer_ref(x, p, *, num_heads):
    B, S, D = x.shape
    hd = D // num_heads

    def ln(v):
        mu = jnp.mean(v, axis=-1, keepdims=True)
        var = jnp.mean((v - mu) ** 2, axis=-1, keepdims=True)
        return (v - mu) / jnp.sqrt(var + 1e-5) * p["ln_g"][0] + p["ln_b"][0]

    def gate(xg, yg, wy, wx, bg):
        py = yg @ wy
        r = jax.nn.sigmoid(py[..., :D] + xg @ wx[:, :D])
        z = jax.nn.sigmoid(py[..., D:2 * D] + xg @ wx[:, D:2 * D] - bg[0, 0])
        h = jnp.tanh(py[..., 2 * D:] + (r * xg) @ wx[:, 2 * D:])
        return (1 - z) * xg + z * h

    y = ln(x)
    qkv = y @ p["wqkv"] + p["bqkv"][0]
    q, k, v = qkv[..., :D], qkv[..., D:2 * D], qkv[..., 2 * D:]
    q = q.reshape(B, S, num_heads, hd).transpose(0, 2, 1, 3)
    k = k.reshape(B, S, num_heads, hd).transpose(0, 2, 1, 3)
    v = v.reshape(B, S, num_heads, hd).transpose(0, 2, 1, 3)
    s = jnp.einsum("bhqd,bhkd->bhqk", q, k) / math.sqrt(hd)
    a = jax.nn.softmax(s, axis=-1)
    o = jnp.einsum("bhqk,bhkd->bhqd", a, v).transpose(0, 2, 1, 3).reshape(B, S, D)
    y = o @ p["wo"] + p["bo"][0]

    x1 = gate(x, jax.nn.relu(y), p["g1_wy"], p["g1_wx"], p["g1_bg"])
    y2 = ln(x1)
    y2 = jax.nn.gelu(y2 @ p["w1"] + p["b1"][0]) @ p["w2"] + p["b2"][0]
    return gate(x1, jax.nn.relu(y2), p["g2_wy"], p["g2_wx"], p["g2_bg"])


# ---------------------------------------------------------------------------
if __name__ == "__main__":
    # Small but tile-friendly shapes (review: exercise D / head_dim that are
    # multiples of 128 so all lane slices / scratch stores are tile-aligned).
    B, S, D, M, H = 2, 16, 256, 512, 2

    key = jax.random.PRNGKey(0)
    ks = jax.random.split(key, 16)

    def w(k, shape, scale=0.05):
        return (scale * jax.random.normal(k, shape)).astype(jnp.float32)

    params = {
        "ln_g": jnp.ones((1, D), jnp.float32),
        "ln_b": jnp.zeros((1, D), jnp.float32),
        "wqkv": w(ks[0], (D, 3 * D)),
        "bqkv": w(ks[1], (1, 3 * D)),
        "wo":   w(ks[2], (D, D)),
        "bo":   w(ks[3], (1, D)),
        "w1":   w(ks[4], (D, M)),
        "b1":   w(ks[5], (1, M)),
        "w2":   w(ks[6], (M, D)),
        "b2":   w(ks[7], (1, D)),
        "g1_wy": w(ks[8], (D, 3 * D)),
        "g1_wx": w(ks[9], (D, 3 * D)),
        "g1_bg": jnp.full((1, 1), 2.0, jnp.float32),
        "g2_wy": w(ks[10], (D, 3 * D)),
        "g2_wx": w(ks[11], (D, 3 * D)),
        "g2_bg": jnp.full((1, 1), 2.0, jnp.float32),
    }

    x = jax.random.normal(ks[12], (B, S, D), jnp.float32)

    out = encoder_layer(x, params, num_heads=H)
    out = jax.block_until_ready(out)

    ref = encoder_layer_ref(x, params, num_heads=H)
    assert out.shape == (B, S, D)
    assert bool(jnp.all(jnp.isfinite(out)))
    # bf16 MXU inputs + approx reciprocal -> relaxed tolerance vs f32 ref.
    err = float(jnp.max(jnp.abs(out - ref)))
    assert err < 5e-2, f"mismatch vs pure-JAX reference: {err}"

    print("KERNEL_OK")
</pallas_src>

<mosaic_0001>
module attributes {stable_mosaic.version = 11 : i64} {
  func.func @_encoder_layer_kernel(%arg0: i32, %arg1: memref<1x16x256xf32, #tpu.memory_space<vmem>>, %arg2: memref<1x256xf32, #tpu.memory_space<vmem>>, %arg3: memref<1x256xf32, #tpu.memory_space<vmem>>, %arg4: memref<256x768xbf16, #tpu.memory_space<vmem>>, %arg5: memref<1x768xf32, #tpu.memory_space<vmem>>, %arg6: memref<256x256xbf16, #tpu.memory_space<vmem>>, %arg7: memref<1x256xf32, #tpu.memory_space<vmem>>, %arg8: memref<256x512xbf16, #tpu.memory_space<vmem>>, %arg9: memref<1x512xf32, #tpu.memory_space<vmem>>, %arg10: memref<512x256xbf16, #tpu.memory_space<vmem>>, %arg11: memref<1x256xf32, #tpu.memory_space<vmem>>, %arg12: memref<256x768xbf16, #tpu.memory_space<vmem>>, %arg13: memref<256x768xbf16, #tpu.memory_space<vmem>>, %arg14: memref<1x1xf32, #tpu.memory_space<vmem>>, %arg15: memref<256x768xbf16, #tpu.memory_space<vmem>>, %arg16: memref<256x768xbf16, #tpu.memory_space<vmem>>, %arg17: memref<1x1xf32, #tpu.memory_space<vmem>>, %arg18: memref<1x16x256xf32, #tpu.memory_space<vmem>>, %arg19: memref<16x256xbf16, #tpu.memory_space<vmem>>) attributes {dimension_semantics = [#tpu.dimension_semantics<parallel>], iteration_bounds = array<i64: 2>, scalar_prefetch = 0 : i64, scratch_operands = 1 : i64, tpu.core_type = #tpu.core_type<tc>, window_params = [{transform_indices = @transform_0, window_bounds = array<i64: 1, 16, 256>}, {pipeline_mode = #tpu.pipeline_mode<synchronous>, transform_indices = @transform_1, window_bounds = array<i64: 1, 256>}, {pipeline_mode = #tpu.pipeline_mode<synchronous>, transform_indices = @transform_2, window_bounds = array<i64: 1, 256>}, {pipeline_mode = #tpu.pipeline_mode<synchronous>, transform_indices = @transform_3, window_bounds = array<i64: 256, 768>}, {pipeline_mode = #tpu.pipeline_mode<synchronous>, transform_indices = @transform_4, window_bounds = array<i64: 1, 768>}, {pipeline_mode = #tpu.pipeline_mode<synchronous>, transform_indices = @transform_5, window_bounds = array<i64: 256, 256>}, {pipeline_mode = #tpu.pipeline_mode<synchronous>, transform_indices = @transform_6, window_bounds = array<i64: 1, 256>}, {pipeline_mode = #tpu.pipeline_mode<synchronous>, transform_indices = @transform_7, window_bounds = array<i64: 256, 512>}, {pipeline_mode = #tpu.pipeline_mode<synchronous>, transform_indices = @transform_8, window_bounds = array<i64: 1, 512>}, {pipeline_mode = #tpu.pipeline_mode<synchronous>, transform_indices = @transform_9, window_bounds = array<i64: 512, 256>}, {pipeline_mode = #tpu.pipeline_mode<synchronous>, transform_indices = @transform_10, window_bounds = array<i64: 1, 256>}, {pipeline_mode = #tpu.pipeline_mode<synchronous>, transform_indices = @transform_11, window_bounds = array<i64: 256, 768>}, {pipeline_mode = #tpu.pipeline_mode<synchronous>, transform_indices = @transform_12, window_bounds = array<i64: 256, 768>}, {pipeline_mode = #tpu.pipeline_mode<synchronous>, transform_indices = @transform_13, window_bounds = array<i64: 1, 1>}, {pipeline_mode = #tpu.pipeline_mode<synchronous>, transform_indices = @transform_14, window_bounds = array<i64: 256, 768>}, {pipeline_mode = #tpu.pipeline_mode<synchronous>, transform_indices = @transform_15, window_bounds = array<i64: 256, 768>}, {pipeline_mode = #tpu.pipeline_mode<synchronous>, transform_indices = @transform_16, window_bounds = array<i64: 1, 1>}, {transform_indices = @transform_17, window_bounds = array<i64: 1, 16, 256>}]} {
    %c0 = arith.constant 0 : index
    %c0_0 = arith.constant 0 : index
    %c0_1 = arith.constant 0 : index
    %0 = vector.load %arg1[%c0, %c0_0, %c0_1] : memref<1x16x256xf32, #tpu.memory_space<vmem>>, vector<1x16x256xf32>
    %1 = vector.shape_cast %0 : vector<1x16x256xf32> to vector<16x256xf32>
    %c0_2 = arith.constant 0 : index
    %c0_3 = arith.constant 0 : index
    %2 = vector.load %arg2[%c0_2, %c0_3] : memref<1x256xf32, #tpu.memory_space<vmem>>, vector<1x256xf32>
    %c0_4 = arith.constant 0 : index
    %c0_5 = arith.constant 0 : index
    %3 = vector.load %arg3[%c0_4, %c0_5] : memref<1x256xf32, #tpu.memory_space<vmem>>, vector<1x256xf32>
    %cst = arith.constant dense<0.000000e+00> : vector<16xf32>
    %4 = vector.multi_reduction <add>, %1, %cst [1] : vector<16x256xf32> to vector<16xf32>
    %5 = vector.shape_cast %4 : vector<16xf32> to vector<16x1xf32>
    %cst_6 = arith.constant 2.560000e+02 : f32
    %6 = vector.broadcast %cst_6 : f32 to vector<16x1xf32>
    %7 = arith.divf %5, %6 : vector<16x1xf32>
    %8 = vector.broadcast %7 : vector<16x1xf32> to vector<16x256xf32>
    %9 = arith.subf %1, %8 : vector<16x256xf32>
    %10 = arith.mulf %9, %9 : vector<16x256xf32>
    %cst_7 = arith.constant dense<0.000000e+00> : vector<16xf32>
    %11 = vector.multi_reduction <add>, %10, %cst_7 [1] : vector<16x256xf32> to vector<16xf32>
    %12 = vector.shape_cast %11 : vector<16xf32> to vector<16x1xf32>
    %cst_8 = arith.constant 2.560000e+02 : f32
    %13 = vector.broadcast %cst_8 : f32 to vector<16x1xf32>
    %14 = arith.divf %12, %13 : vector<16x1xf32>
    %cst_9 = arith.constant 9.99999974E-6 : f32
    %15 = vector.broadcast %cst_9 : f32 to vector<16x1xf32>
    %16 = arith.addf %14, %15 : vector<16x1xf32>
    %17 = math.rsqrt %16 : vector<16x1xf32>
    %18 = vector.broadcast %17 : vector<16x1xf32> to vector<16x256xf32>
    %19 = arith.mulf %9, %18 : vector<16x256xf32>
    %20 = vector.broadcast %2 : vector<1x256xf32> to vector<16x256xf32>
    %21 = arith.mulf %19, %20 : vector<16x256xf32>
    %22 = vector.broadcast %3 : vector<1x256xf32> to vector<16x256xf32>
    %23 = arith.addf %21, %22 : vector<16x256xf32>
    %24 = arith.truncf %23 : vector<16x256xf32> to vector<16x256xbf16>
    %c0_10 = arith.constant 0 : index
    %c0_11 = arith.constant 0 : index
    %25 = vector.load %arg4[%c0_10, %c0_11] : memref<256x768xbf16, #tpu.memory_space<vmem>>, vector<256x768xbf16>
    %cst_12 = arith.constant dense<0.000000e+00> : vector<16x768xf32>
    %26 = tpu.matmul %24, %25, %cst_12 {dimension_numbers = #tpu.dot_dimension_numbers<[1], [0], [0], [1], [0, 0, 1, 1], [], []>} : vector<16x256xbf16>, vector<256x768xbf16>, vector<16x768xf32> -> vector<16x768xf32>
    %c0_13 = arith.constant 0 : index
    %c0_14 = arith.constant 0 : index
    %27 = vector.load %arg5[%c0_13, %c0_14] : memref<1x768xf32, #tpu.memory_space<vmem>>, vector<1x768xf32>
    %28 = vector.broadcast %27 : vector<1x768xf32> to vector<16x768xf32>
    %29 = arith.addf %26, %28 : vector<16x768xf32>
    %30 = arith.truncf %29 : vector<16x768xf32> to vector<16x768xbf16>
    %31 = vector.extract_strided_slice %30 {offsets = [0, 0], sizes = [16, 128], strides = [1, 1]} : vector<16x768xbf16> to vector<16x128xbf16>
    %32 = vector.extract_strided_slice %30 {offsets = [0, 256], sizes = [16, 128], strides = [1, 1]} : vector<16x768xbf16> to vector<16x128xbf16>
    %33 = vector.extract_strided_slice %30 {offsets = [0, 512], sizes = [16, 128], strides = [1, 1]} : vector<16x768xbf16> to vector<16x128xbf16>
    %cst_15 = arith.constant dense<0.000000e+00> : vector<16x16xf32>
    %34 = tpu.matmul %31, %32, %cst_15 {dimension_numbers = #tpu.dot_dimension_numbers<[1], [1], [0], [0], [0, 0, 1, 0], [], []>} : vector<16x128xbf16>, vector<16x128xbf16>, vector<16x16xf32> -> vector<16x16xf32>
    %cst_16 = arith.constant dense<0xFF800000> : vector<16xf32>
    %35 = vector.multi_reduction <maximumf>, %34, %cst_16 [1] : vector<16x16xf32> to vector<16xf32>
    %36 = vector.shape_cast %35 : vector<16xf32> to vector<16x1xf32>
    %37 = vector.broadcast %36 : vector<16x1xf32> to vector<16x16xf32>
    %38 = arith.subf %34, %37 : vector<16x16xf32>
    %39 = math.exp %38 : vector<16x16xf32>
    %cst_17 = arith.constant dense<0.000000e+00> : vector<16xf32>
    %40 = vector.multi_reduction <add>, %39, %cst_17 [1] : vector<16x16xf32> to vector<16xf32>
    %41 = vector.shape_cast %40 : vector<16xf32> to vector<16x1xf32>
    %42 = tpu.reciprocal %41 {approx = true} : vector<16x1xf32> -> vector<16x1xf32>
    %43 = vector.broadcast %42 : vector<16x1xf32> to vector<16x16xf32>
    %44 = arith.mulf %39, %43 : vector<16x16xf32>
    %45 = arith.truncf %44 : vector<16x16xf32> to vector<16x16xbf16>
    %cst_18 = arith.constant dense<0.000000e+00> : vector<16x128xf32>
    %46 = tpu.matmul %45, %33, %cst_18 {dimension_numbers = #tpu.dot_dimension_numbers<[1], [0], [0], [1], [0, 0, 1, 1], [], []>} : vector<16x16xbf16>, vector<16x128xbf16>, vector<16x128xf32> -> vector<16x128xf32>
    %47 = arith.truncf %46 : vector<16x128xf32> to vector<16x128xbf16>
    %c0_19 = arith.constant 0 : index
    %c0_20 = arith.constant 0 : index
    %48 = vector.load %arg19[%c0_19, %c0_20] : memref<16x256xbf16, #tpu.memory_space<vmem>>, vector<16x128xbf16>
    tpu.vector_store %arg19[%c0_19, %c0_20], %47 {strides = array<i32>} : memref<16x256xbf16, #tpu.memory_space<vmem>>, vector<16x128xbf16>,
    %49 = vector.extract_strided_slice %30 {offsets = [0, 128], sizes = [16, 128], strides = [1, 1]} : vector<16x768xbf16> to vector<16x128xbf16>
    %50 = vector.extract_strided_slice %30 {offsets = [0, 384], sizes = [16, 128], strides = [1, 1]} : vector<16x768xbf16> to vector<16x128xbf16>
    %51 = vector.extract_strided_slice %30 {offsets = [0, 640], sizes = [16, 128], strides = [1, 1]} : vector<16x768xbf16> to vector<16x128xbf16>
    %cst_21 = arith.constant dense<0.000000e+00> : vector<16x16xf32>
    %52 = tpu.matmul %49, %50, %cst_21 {dimension_numbers = #tpu.dot_dimension_numbers<[1], [1], [0], [0], [0, 0, 1, 0], [], []>} : vector<16x128xbf16>, vector<16x128xbf16>, vector<16x16xf32> -> vector<16x16xf32>
    %cst_22 = arith.constant dense<0xFF800000> : vector<16xf32>
    %53 = vector.multi_reduction <maximumf>, %52, %cst_22 [1] : vector<16x16xf32> to vector<16xf32>
    %54 = vector.shape_cast %53 : vector<16xf32> to vector<16x1xf32>
    %55 = vector.broadcast %54 : vector<16x1xf32> to vector<16x16xf32>
    %56 = arith.subf %52, %55 : vector<16x16xf32>
    %57 = math.exp %56 : vector<16x16xf32>
    %cst_23 = arith.constant dense<0.000000e+00> : vector<16xf32>
    %58 = vector.multi_reduction <add>, %57, %cst_23 [1] : vector<16x16xf32> to vector<16xf32>
    %59 = vector.shape_cast %58 : vector<16xf32> to vector<16x1xf32>
    %60 = tpu.reciprocal %59 {approx = true} : vector<16x1xf32> -> vector<16x1xf32>
    %61 = vector.broadcast %60 : vector<16x1xf32> to vector<16x16xf32>
    %62 = arith.mulf %57, %61 : vector<16x16xf32>
    %63 = arith.truncf %62 : vector<16x16xf32> to vector<16x16xbf16>
    %cst_24 = arith.constant dense<0.000000e+00> : vector<16x128xf32>
    %64 = tpu.matmul %63, %51, %cst_24 {dimension_numbers = #tpu.dot_dimension_numbers<[1], [0], [0], [1], [0, 0, 1, 1], [], []>} : vector<16x16xbf16>, vector<16x128xbf16>, vector<16x128xf32> -> vector<16x128xf32>
    %65 = arith.truncf %64 : vector<16x128xf32> to vector<16x128xbf16>
    %c0_25 = arith.constant 0 : index
    %c128 = arith.constant 128 : index
    %66 = vector.load %arg19[%c0_25, %c128] : memref<16x256xbf16, #tpu.memory_space<vmem>>, vector<16x128xbf16>
    tpu.vector_store %arg19[%c0_25, %c128], %65 {strides = array<i32>} : memref<16x256xbf16, #tpu.memory_space<vmem>>, vector<16x128xbf16>,
    %c0_26 = arith.constant 0 : index
    %c0_27 = arith.constant 0 : index
    %67 = vector.load %arg19[%c0_26, %c0_27] : memref<16x256xbf16, #tpu.memory_space<vmem>>, vector<16x256xbf16>
    %c0_28 = arith.constant 0 : index
    %c0_29 = arith.constant 0 : index
    %68 = vector.load %arg6[%c0_28, %c0_29] : memref<256x256xbf16, #tpu.memory_space<vmem>>, vector<256x256xbf16>
    %cst_30 = arith.constant dense<0.000000e+00> : vector<16x256xf32>
    %69 = tpu.matmul %67, %68, %cst_30 {dimension_numbers = #tpu.dot_dimension_numbers<[1], [0], [0], [1], [0, 0, 1, 1], [], []>} : vector<16x256xbf16>, vector<256x256xbf16>, vector<16x256xf32> -> vector<16x256xf32>
    %c0_31 = arith.constant 0 : index
    %c0_32 = arith.constant 0 : index
    %70 = vector.load %arg7[%c0_31, %c0_32] : memref<1x256xf32, #tpu.memory_space<vmem>>, vector<1x256xf32>
    %71 = vector.broadcast %70 : vector<1x256xf32> to vector<16x256xf32>
    %72 = arith.addf %69, %71 : vector<16x256xf32>
    %cst_33 = arith.constant 0.000000e+00 : f32
    %73 = vector.broadcast %cst_33 : f32 to vector<16x256xf32>
    %74 = arith.maximumf %72, %73 : vector<16x256xf32>
    %c0_34 = arith.constant 0 : index
    %c0_35 = arith.constant 0 : index
    %75 = vector.load %arg14[%c0_34, %c0_35] : memref<1x1xf32, #tpu.memory_space<vmem>>, vector<1x1xf32>
    %76 = vector.extract %75[0, 0] : f32 from vector<1x1xf32>
    %77 = arith.truncf %1 : vector<16x256xf32> to vector<16x256xbf16>
    %78 = arith.truncf %74 : vector<16x256xf32> to vector<16x256xbf16>
    %c0_36 = arith.constant 0 : index
    %c0_37 = arith.constant 0 : index
    %79 = vector.load %arg12[%c0_36, %c0_37] : memref<256x768xbf16, #tpu.memory_space<vmem>>, vector<256x768xbf16>
    %cst_38 = arith.constant dense<0.000000e+00> : vector<16x768xf32>
    %80 = tpu.matmul %78, %79, %cst_38 {dimension_numbers = #tpu.dot_dimension_numbers<[1], [0], [0], [1], [0, 0, 1, 1], [], []>} : vector<16x256xbf16>, vector<256x768xbf16>, vector<16x768xf32> -> vector<16x768xf32>
    %c0_39 = arith.constant 0 : index
    %c0_40 = arith.constant 0 : index
    %81 = vector.load %arg13[%c0_39, %c0_40] : memref<256x768xbf16, #tpu.memory_space<vmem>>, vector<256x512xbf16>
    %cst_41 = arith.constant dense<0.000000e+00> : vector<16x512xf32>
    %82 = tpu.matmul %77, %81, %cst_41 {dimension_numbers = #tpu.dot_dimension_numbers<[1], [0], [0], [1], [0, 0, 1, 1], [], []>} : vector<16x256xbf16>, vector<256x512xbf16>, vector<16x512xf32> -> vector<16x512xf32>
    %83 = vector.extract_strided_slice %80 {offsets = [0, 0], sizes = [16, 256], strides = [1, 1]} : vector<16x768xf32> to vector<16x256xf32>
    %84 = vector.extract_strided_slice %82 {offsets = [0, 0], sizes = [16, 256], strides = [1, 1]} : vector<16x512xf32> to vector<16x256xf32>
    %85 = arith.addf %83, %84 : vector<16x256xf32>
    %86 = arith.negf %85 : vector<16x256xf32>
    %87 = math.exp %86 : vector<16x256xf32>
    %cst_42 = arith.constant 1.000000e+00 : f32
    %88 = vector.broadcast %cst_42 : f32 to vector<16x256xf32>
    %89 = arith.addf %88, %87 : vector<16x256xf32>
    %90 = arith.divf %88, %89 : vector<16x256xf32>
    %91 = vector.extract_strided_slice %80 {offsets = [0, 256], sizes = [16, 256], strides = [1, 1]} : vector<16x768xf32> to vector<16x256xf32>
    %92 = vector.extract_strided_slice %82 {offsets = [0, 256], sizes = [16, 256], strides = [1, 1]} : vector<16x512xf32> to vector<16x256xf32>
    %93 = arith.addf %91, %92 : vector<16x256xf32>
    %94 = vector.broadcast %76 : f32 to vector<16x256xf32>
    %95 = arith.subf %93, %94 : vector<16x256xf32>
    %96 = arith.negf %95 : vector<16x256xf32>
    %97 = math.exp %96 : vector<16x256xf32>
    %cst_43 = arith.constant 1.000000e+00 : f32
    %98 = vector.broadcast %cst_43 : f32 to vector<16x256xf32>
    %99 = arith.addf %98, %97 : vector<16x256xf32>
    %100 = arith.divf %98, %99 : vector<16x256xf32>
    %101 = arith.mulf %90, %1 : vector<16x256xf32>
    %102 = arith.truncf %101 : vector<16x256xf32> to vector<16x256xbf16>
    %c0_44 = arith.constant 0 : index
    %c512 = arith.constant 512 : index
    %103 = vector.load %arg13[%c0_44, %c512] : memref<256x768xbf16, #tpu.memory_space<vmem>>, vector<256x256xbf16>
    %cst_45 = arith.constant dense<0.000000e+00> : vector<16x256xf32>
    %104 = tpu.matmul %102, %103, %cst_45 {dimension_numbers = #tpu.dot_dimension_numbers<[1], [0], [0], [1], [0, 0, 1, 1], [], []>} : vector<16x256xbf16>, vector<256x256xbf16>, vector<16x256xf32> -> vector<16x256xf32>
    %105 = vector.extract_strided_slice %80 {offsets = [0, 512], sizes = [16, 256], strides = [1, 1]} : vector<16x768xf32> to vector<16x256xf32>
    %106 = arith.addf %105, %104 : vector<16x256xf32>
    %107 = math.tanh %106 : vector<16x256xf32>
    %cst_46 = arith.constant 1.000000e+00 : f32
    %108 = vector.broadcast %cst_46 : f32 to vector<16x256xf32>
    %109 = arith.subf %108, %100 : vector<16x256xf32>
    %110 = arith.mulf %109, %1 : vector<16x256xf32>
    %111 = arith.mulf %100, %107 : vector<16x256xf32>
    %112 = arith.addf %110, %111 : vector<16x256xf32>
    %cst_47 = arith.constant dense<0.000000e+00> : vector<16xf32>
    %113 = vector.multi_reduction <add>, %112, %cst_47 [1] : vector<16x256xf32> to vector<16xf32>
    %114 = vector.shape_cast %113 : vector<16xf32> to vector<16x1xf32>
    %cst_48 = arith.constant 2.560000e+02 : f32
    %115 = vector.broadcast %cst_48 : f32 to vector<16x1xf32>
    %116 = arith.divf %114, %115 : vector<16x1xf32>
    %117 = vector.broadcast %116 : vector<16x1xf32> to vector<16x256xf32>
    %118 = arith.subf %112, %117 : vector<16x256xf32>
    %119 = arith.mulf %118, %118 : vector<16x256xf32>
    %cst_49 = arith.constant dense<0.000000e+00> : vector<16xf32>
    %120 = vector.multi_reduction <add>, %119, %cst_49 [1] : vector<16x256xf32> to vector<16xf32>
    %121 = vector.shape_cast %120 : vector<16xf32> to vector<16x1xf32>
    %cst_50 = arith.constant 2.560000e+02 : f32
    %122 = vector.broadcast %cst_50 : f32 to vector<16x1xf32>
    %123 = arith.divf %121, %122 : vector<16x1xf32>
    %cst_51 = arith.constant 9.99999974E-6 : f32
    %124 = vector.broadcast %cst_51 : f32 to vector<16x1xf32>
    %125 = arith.addf %123, %124 : vector<16x1xf32>
    %126 = math.rsqrt %125 : vector<16x1xf32>
    %127 = vector.broadcast %126 : vector<16x1xf32> to vector<16x256xf32>
    %128 = arith.mulf %118, %127 : vector<16x256xf32>
    %129 = vector.broadcast %2 : vector<1x256xf32> to vector<16x256xf32>
    %130 = arith.mulf %128, %129 : vector<16x256xf32>
    %131 = vector.broadcast %3 : vector<1x256xf32> to vector<16x256xf32>
    %132 = arith.addf %130, %131 : vector<16x256xf32>
    %133 = arith.truncf %132 : vector<16x256xf32> to vector<16x256xbf16>
    %c0_52 = arith.constant 0 : index
    %c0_53 = arith.constant 0 : index
    %134 = vector.load %arg8[%c0_52, %c0_53] : memref<256x512xbf16, #tpu.memory_space<vmem>>, vector<256x512xbf16>
    %cst_54 = arith.constant dense<0.000000e+00> : vector<16x512xf32>
    %135 = tpu.matmul %133, %134, %cst_54 {dimension_numbers = #tpu.dot_dimension_numbers<[1], [0], [0], [1], [0, 0, 1, 1], [], []>} : vector<16x256xbf16>, vector<256x512xbf16>, vector<16x512xf32> -> vector<16x512xf32>
    %c0_55 = arith.constant 0 : index
    %c0_56 = arith.constant 0 : index
    %136 = vector.load %arg9[%c0_55, %c0_56] : memref<1x512xf32, #tpu.memory_space<vmem>>, vector<1x512xf32>
    %137 = vector.broadcast %136 : vector<1x512xf32> to vector<16x512xf32>
    %138 = arith.addf %135, %137 : vector<16x512xf32>
    %139 = arith.mulf %138, %138 : vector<16x512xf32>
    %140 = arith.mulf %138, %139 : vector<16x512xf32>
    %cst_57 = arith.constant 4.471500e-02 : f32
    %141 = vector.broadcast %cst_57 : f32 to vector<16x512xf32>
    %142 = arith.mulf %141, %140 : vector<16x512xf32>
    %143 = arith.addf %138, %142 : vector<16x512xf32>
    %cst_58 = arith.constant 0.797884583 : f32
    %144 = vector.broadcast %cst_58 : f32 to vector<16x512xf32>
    %145 = arith.mulf %144, %143 : vector<16x512xf32>
    %146 = math.tanh %145 : vector<16x512xf32>
    %cst_59 = arith.constant 1.000000e+00 : f32
    %147 = vector.broadcast %cst_59 : f32 to vector<16x512xf32>
    %148 = arith.addf %147, %146 : vector<16x512xf32>
    %cst_60 = arith.constant 5.000000e-01 : f32
    %149 = vector.broadcast %cst_60 : f32 to vector<16x512xf32>
    %150 = arith.mulf %149, %148 : vector<16x512xf32>
    %151 = arith.mulf %138, %150 : vector<16x512xf32>
    %152 = arith.truncf %151 : vector<16x512xf32> to vector<16x512xbf16>
    %c0_61 = arith.constant 0 : index
    %c0_62 = arith.constant 0 : index
    %153 = vector.load %arg10[%c0_61, %c0_62] : memref<512x256xbf16, #tpu.memory_space<vmem>>, vector<512x256xbf16>
    %cst_63 = arith.constant dense<0.000000e+00> : vector<16x256xf32>
    %154 = tpu.matmul %152, %153, %cst_63 {dimension_numbers = #tpu.dot_dimension_numbers<[1], [0], [0], [1], [0, 0, 1, 1], [], []>} : vector<16x512xbf16>, vector<512x256xbf16>, vector<16x256xf32> -> vector<16x256xf32>
    %c0_64 = arith.constant 0 : index
    %c0_65 = arith.constant 0 : index
    %155 = vector.load %arg11[%c0_64, %c0_65] : memref<1x256xf32, #tpu.memory_space<vmem>>, vector<1x256xf32>
    %156 = vector.broadcast %155 : vector<1x256xf32> to vector<16x256xf32>
    %157 = arith.addf %154, %156 : vector<16x256xf32>
    %cst_66 = arith.constant 0.000000e+00 : f32
    %158 = vector.broadcast %cst_66 : f32 to vector<16x256xf32>
    %159 = arith.maximumf %157, %158 : vector<16x256xf32>
    %c0_67 = arith.constant 0 : index
    %c0_68 = arith.constant 0 : index
    %160 = vector.load %arg17[%c0_67, %c0_68] : memref<1x1xf32, #tpu.memory_space<vmem>>, vector<1x1xf32>
    %161 = vector.extract %160[0, 0] : f32 from vector<1x1xf32>
    %162 = arith.truncf %112 : vector<16x256xf32> to vector<16x256xbf16>
    %163 = arith.truncf %159 : vector<16x256xf32> to vector<16x256xbf16>
    %c0_69 = arith.constant 0 : index
    %c0_70 = arith.constant 0 : index
    %164 = vector.load %arg15[%c0_69, %c0_70] : memref<256x768xbf16, #tpu.memory_space<vmem>>, vector<256x768xbf16>
    %cst_71 = arith.constant dense<0.000000e+00> : vector<16x768xf32>
    %165 = tpu.matmul %163, %164, %cst_71 {dimension_numbers = #tpu.dot_dimension_numbers<[1], [0], [0], [1], [0, 0, 1, 1], [], []>} : vector<16x256xbf16>, vector<256x768xbf16>, vector<16x768xf32> -> vector<16x768xf32>
    %c0_72 = arith.constant 0 : index
    %c0_73 = arith.constant 0 : index
    %166 = vector.load %arg16[%c0_72, %c0_73] : memref<256x768xbf16, #tpu.memory_space<vmem>>, vector<256x512xbf16>
    %cst_74 = arith.constant dense<0.000000e+00> : vector<16x512xf32>
    %167 = tpu.matmul %162, %166, %cst_74 {dimension_numbers = #tpu.dot_dimension_numbers<[1], [0], [0], [1], [0, 0, 1, 1], [], []>} : vector<16x256xbf16>, vector<256x512xbf16>, vector<16x512xf32> -> vector<16x512xf32>
    %168 = vector.extract_strided_slice %165 {offsets = [0, 0], sizes = [16, 256], strides = [1, 1]} : vector<16x768xf32> to vector<16x256xf32>
    %169 = vector.extract_strided_slice %167 {offsets = [0, 0], sizes = [16, 256], strides = [1, 1]} : vector<16x512xf32> to vector<16x256xf32>
    %170 = arith.addf %168, %169 : vector<16x256xf32>
    %171 = arith.negf %170 : vector<16x256xf32>
    %172 = math.exp %171 : vector<16x256xf32>
    %cst_75 = arith.constant 1.000000e+00 : f32
    %173 = vector.broadcast %cst_75 : f32 to vector<16x256xf32>
    %174 = arith.addf %173, %172 : vector<16x256xf32>
    %175 = arith.divf %173, %174 : vector<16x256xf32>
    %176 = vector.extract_strided_slice %165 {offsets = [0, 256], sizes = [16, 256], strides = [1, 1]} : vector<16x768xf32> to vector<16x256xf32>
    %177 = vector.extract_strided_slice %167 {offsets = [0, 256], sizes = [16, 256], strides = [1, 1]} : vector<16x512xf32> to vector<16x256xf32>
    %178 = arith.addf %176, %177 : vector<16x256xf32>
    %179 = vector.broadcast %161 : f32 to vector<16x256xf32>
    %180 = arith.subf %178, %179 : vector<16x256xf32>
    %181 = arith.negf %180 : vector<16x256xf32>
    %182 = math.exp %181 : vector<16x256xf32>
    %cst_76 = arith.constant 1.000000e+00 : f32
    %183 = vector.broadcast %cst_76 : f32 to vector<16x256xf32>
    %184 = arith.addf %183, %182 : vector<16x256xf32>
    %185 = arith.divf %183, %184 : vector<16x256xf32>
    %186 = arith.mulf %175, %112 : vector<16x256xf32>
    %187 = arith.truncf %186 : vector<16x256xf32> to vector<16x256xbf16>
    %c0_77 = arith.constant 0 : index
    %c512_78 = arith.constant 512 : index
    %188 = vector.load %arg16[%c0_77, %c512_78] : memref<256x768xbf16, #tpu.memory_space<vmem>>, vector<256x256xbf16>
    %cst_79 = arith.constant dense<0.000000e+00> : vector<16x256xf32>
    %189 = tpu.matmul %187, %188, %cst_79 {dimension_numbers = #tpu.dot_dimension_numbers<[1], [0], [0], [1], [0, 0, 1, 1], [], []>} : vector<16x256xbf16>, vector<256x256xbf16>, vector<16x256xf32> -> vector<16x256xf32>
    %190 = vector.extract_strided_slice %165 {offsets = [0, 512], sizes = [16, 256], strides = [1, 1]} : vector<16x768xf32> to vector<16x256xf32>
    %191 = arith.addf %190, %189 : vector<16x256xf32>
    %192 = math.tanh %191 : vector<16x256xf32>
    %cst_80 = arith.constant 1.000000e+00 : f32
    %193 = vector.broadcast %cst_80 : f32 to vector<16x256xf32>
    %194 = arith.subf %193, %185 : vector<16x256xf32>
    %195 = arith.mulf %194, %112 : vector<16x256xf32>
    %196 = arith.mulf %185, %192 : vector<16x256xf32>
    %197 = arith.addf %195, %196 : vector<16x256xf32>
    %c0_81 = arith.constant 0 : index
    %c0_82 = arith.constant 0 : index
    %c0_83 = arith.constant 0 : index
    %198 = vector.load %arg18[%c0_81, %c0_82, %c0_83] : memref<1x16x256xf32, #tpu.memory_space<vmem>>, vector<1x16x256xf32>
    %199 = vector.shape_cast %198 : vector<1x16x256xf32> to vector<16x256xf32>
    %200 = vector.shape_cast %197 : vector<16x256xf32> to vector<1x16x256xf32>
    tpu.vector_store %arg18[%c0_81, %c0_82, %c0_83], %200 {strides = array<i32>} : memref<1x16x256xf32, #tpu.memory_space<vmem>>, vector<1x16x256xf32>,
    return
  }
  func.func @transform_0(%arg0: i32) -> (i32, i32, i32) {
    %c0_i32 = arith.constant 0 : i32
    %c0_i32_0 = arith.constant 0 : i32
    %c0_i32_1 = arith.constant 0 : i32
    return %arg0, %c0_i32, %c0_i32_0 : i32, i32, i32
  }
  func.func @transform_1(%arg0: i32) -> (i32, i32) {
    %c0_i32 = arith.constant 0 : i32
    %c0_i32_0 = arith.constant 0 : i32
    %c0_i32_1 = arith.constant 0 : i32
    return %c0_i32, %c0_i32_0 : i32, i32
  }
  func.func @transform_2(%arg0: i32) -> (i32, i32) {
    %c0_i32 = arith.constant 0 : i32
    %c0_i32_0 = arith.constant 0 : i32
    %c0_i32_1 = arith.constant 0 : i32
    return %c0_i32, %c0_i32_0 : i32, i32
  }
  func.func @transform_3(%arg0: i32) -> (i32, i32) {
    %c0_i32 = arith.constant 0 : i32
    %c0_i32_0 = arith.constant 0 : i32
    %c0_i32_1 = arith.constant 0 : i32
    return %c0_i32, %c0_i32_0 : i32, i32
  }
  func.func @transform_4(%arg0: i32) -> (i32, i32) {
    %c0_i32 = arith.constant 0 : i32
    %c0_i32_0 = arith.constant 0 : i32
    %c0_i32_1 = arith.constant 0 : i32
    return %c0_i32, %c0_i32_0 : i32, i32
  }
  func.func @transform_5(%arg0: i32) -> (i32, i32) {
    %c0_i32 = arith.constant 0 : i32
    %c0_i32_0 = arith.constant 0 : i32
    %c0_i32_1 = arith.constant 0 : i32
    return %c0_i32, %c0_i32_0 : i32, i32
  }
  func.func @transform_6(%arg0: i32) -> (i32, i32) {
    %c0_i32 = arith.constant 0 : i32
    %c0_i32_0 = arith.constant 0 : i32
    %c0_i32_1 = arith.constant 0 : i32
    return %c0_i32, %c0_i32_0 : i32, i32
  }
  func.func @transform_7(%arg0: i32) -> (i32, i32) {
    %c0_i32 = arith.constant 0 : i32
    %c0_i32_0 = arith.constant 0 : i32
    %c0_i32_1 = arith.constant 0 : i32
    return %c0_i32, %c0_i32_0 : i32, i32
  }
  func.func @transform_8(%arg0: i32) -> (i32, i32) {
    %c0_i32 = arith.constant 0 : i32
    %c0_i32_0 = arith.constant 0 : i32
    %c0_i32_1 = arith.constant 0 : i32
    return %c0_i32, %c0_i32_0 : i32, i32
  }
  func.func @transform_9(%arg0: i32) -> (i32, i32) {
    %c0_i32 = arith.constant 0 : i32
    %c0_i32_0 = arith.constant 0 : i32
    %c0_i32_1 = arith.constant 0 : i32
    return %c0_i32, %c0_i32_0 : i32, i32
  }
  func.func @transform_10(%arg0: i32) -> (i32, i32) {
    %c0_i32 = arith.constant 0 : i32
    %c0_i32_0 = arith.constant 0 : i32
    %c0_i32_1 = arith.constant 0 : i32
    return %c0_i32, %c0_i32_0 : i32, i32
  }
  func.func @transform_11(%arg0: i32) -> (i32, i32) {
    %c0_i32 = arith.constant 0 : i32
    %c0_i32_0 = arith.constant 0 : i32
    %c0_i32_1 = arith.constant 0 : i32
    return %c0_i32, %c0_i32_0 : i32, i32
  }
  func.func @transform_12(%arg0: i32) -> (i32, i32) {
    %c0_i32 = arith.constant 0 : i32
    %c0_i32_0 = arith.constant 0 : i32
    %c0_i32_1 = arith.constant 0 : i32
    return %c0_i32, %c0_i32_0 : i32, i32
  }
  func.func @transform_13(%arg0: i32) -> (i32, i32) {
    %c0_i32 = arith.constant 0 : i32
    %c0_i32_0 = arith.constant 0 : i32
    %c0_i32_1 = arith.constant 0 : i32
    return %c0_i32, %c0_i32_0 : i32, i32
  }
  func.func @transform_14(%arg0: i32) -> (i32, i32) {
    %c0_i32 = arith.constant 0 : i32
    %c0_i32_0 = arith.constant 0 : i32
    %c0_i32_1 = arith.constant 0 : i32
    return %c0_i32, %c0_i32_0 : i32, i32
  }
  func.func @transform_15(%arg0: i32) -> (i32, i32) {
    %c0_i32 = arith.constant 0 : i32
    %c0_i32_0 = arith.constant 0 : i32
    %c0_i32_1 = arith.constant 0 : i32
    return %c0_i32, %c0_i32_0 : i32, i32
  }
  func.func @transform_16(%arg0: i32) -> (i32, i32) {
    %c0_i32 = arith.constant 0 : i32
    %c0_i32_0 = arith.constant 0 : i32
    %c0_i32_1 = arith.constant 0 : i32
    return %c0_i32, %c0_i32_0 : i32, i32
  }
  func.func @transform_17(%arg0: i32) -> (i32, i32, i32) {
    %c0_i32 = arith.constant 0 : i32
    %c0_i32_0 = arith.constant 0 : i32
    %c0_i32_1 = arith.constant 0 : i32
    return %arg0, %c0_i32, %c0_i32_0 : i32, i32, i32
  }
}

</mosaic_0001>

<llo_original>
// kernel: tpu_custom_call.1
$region0: #{tpu_custom_call.1}
  #allocation0 [shape = 'u32[]', space=smem, size = 0x4, offset = 0x4, fixed_abs, tag = 'smem constant byte address 0x4 - core index']
  #allocation1 [shape = 'u32[144,128]{1,0:T(1,128)}', space=vmem, size = 0x12000, scoped, tag = 'internal scratch']
  #allocation2 [shape = 'bf16[16,256]{1,0:T(8,128)(2,1)}', space=vmem, size = 0x2000, scoped, tag = 'scratch operand']
  #allocation3 [shape = 'f32[1,1]{1,0:T(1,128)S(1)}', space=vmem, size = 0x200, scoped, tag = 'scoped memory for tpu_custom_call.1']
  #allocation4 [shape = 'f32[1,1]{1,0:T(1,128)S(1)}', space=vmem, size = 0x200, scoped, tag = 'scoped memory for tpu_custom_call.1']
  %s0 = inlined_call_operand.hbm [shape: f32[2,16,256], index: 0, kind: input, shape index: {}]
  %s1 = inlined_call_operand.hbm [shape: f32[1,256], index: 1, kind: input, shape index: {}]
  %s2 = inlined_call_operand.hbm [shape: f32[1,256], index: 2, kind: input, shape index: {}]
  %s3 = inlined_call_operand.hbm [shape: bf16[256,768], index: 3, kind: input, shape index: {}]
  %s4 = inlined_call_operand.vmem [shape: f32[1,768], index: 4, kind: input, shape index: {}]
  %s5 = inlined_call_operand.hbm [shape: bf16[256,256], index: 5, kind: input, shape index: {}]
  %s6 = inlined_call_operand.vmem [shape: f32[1,256], index: 6, kind: input, shape index: {}]
  %s7 = inlined_call_operand.hbm [shape: bf16[256,512], index: 7, kind: input, shape index: {}]
  %s8 = inlined_call_operand.vmem [shape: f32[1,512], index: 8, kind: input, shape index: {}]
  %s9 = inlined_call_operand.hbm [shape: bf16[512,256], index: 9, kind: input, shape index: {}]
  %s10 = inlined_call_operand.vmem [shape: f32[1,256], index: 10, kind: input, shape index: {}]
  %s11 = inlined_call_operand.hbm [shape: bf16[256,768], index: 11, kind: input, shape index: {}]
  %s12 = inlined_call_operand.hbm [shape: bf16[256,768], index: 12, kind: input, shape index: {}]
  %s13 = inlined_call_operand.<no memory space> [shape: f32[1,1], index: 13, kind: input, shape index: {}]
  %s14 = inlined_call_operand.hbm [shape: bf16[256,768], index: 14, kind: input, shape index: {}]
  %s15 = inlined_call_operand.hbm [shape: bf16[256,768], index: 15, kind: input, shape index: {}]
  %s16 = inlined_call_operand.<no memory space> [shape: f32[1,1], index: 16, kind: input, shape index: {}]
  %s17 = inlined_call_operand.hbm [shape: f32[2,16,256], index: 17, kind: output, shape index: {}]
  %s18 = sld [smem:[#allocation0]]
  $region145: #{tpu_custom_call.1} parent=0
    _
  %s20 = ssub.s32 1, %s18
  %s21 = scalar_select 0, %s20, %s18
  %v22 = vstv %s13
  %23 = vst [vmem:[#allocation3] sm:$0x1] %v22
  %v24 = vstv %s16
  %25 = vst [vmem:[#allocation4] sm:$0x1] %v24
  $region1: #{tpu_custom_call.1} parent=0
    #allocation5 [shape = 'u8[32768]{0}', space=vmem, size = 0x8000, scoped, tag = 'input window, operand 0']
    #allocation6 [shape = 's32[2]{0}', space=sflag, size = 0x8, scoped, tag = 'scoped memory for tpu_custom_call.1']
    #allocation7 [shape = 's32[2]{0}', space=sflag, size = 0x8, scoped, tag = 'scoped memory for tpu_custom_call.1']
    #allocation8 [shape = 'u8[1024]{0}', space=vmem, size = 0x400, scoped, tag = 'input window, operand 1, single buffered']
    #allocation9 [shape = 's32[1]{0}', space=sflag, size = 0x4, scoped, tag = 'scoped memory for tpu_custom_call.1']
    #allocation10 [shape = 'u8[1024]{0}', space=vmem, size = 0x400, scoped, tag = 'input window, operand 2, single buffered']
    #allocation11 [shape = 'u8[393216]{0}', space=vmem, size = 0x60000, scoped, tag = 'input window, operand 3, single buffered']
    #allocation12 [shape = 's32[1]{0}', space=sflag, size = 0x4, scoped, tag = 'scoped memory for tpu_custom_call.1']
    #allocation13 [shape = 'u8[131072]{0}', space=vmem, size = 0x20000, scoped, tag = 'input window, operand 5, single buffered']
    #allocation14 [shape = 'u8[262144]{0}', space=vmem, size = 0x40000, scoped, tag = 'input window, operand 7, single buffered']
    #allocation15 [shape = 's32[1]{0}', space=sflag, size = 0x4, scoped, tag = 'scoped memory for tpu_custom_call.1']
    #allocation16 [shape = 'u8[262144]{0}', space=vmem, size = 0x40000, scoped, tag = 'input window, operand 9, single buffered']
    #allocation17 [shape = 'u8[393216]{0}', space=vmem, size = 0x60000, scoped, tag = 'input window, operand 11, single buffered']
    #allocation18 [shape = 's32[1]{0}', space=sflag, size = 0x4, scoped, tag = 'scoped memory for tpu_custom_call.1']
    #allocation19 [shape = 'u8[393216]{0}', space=vmem, size = 0x60000, scoped, tag = 'input window, operand 12, single buffered']
    #allocation20 [shape = 'u8[393216]{0}', space=vmem, size = 0x60000, scoped, tag = 'input window, operand 14, single buffered']
    #allocation21 [shape = 's32[1]{0}', space=sflag, size = 0x4, scoped, tag = 'scoped memory for tpu_custom_call.1']
    #allocation22 [shape = 'u8[393216]{0}', space=vmem, size = 0x60000, scoped, tag = 'input window, operand 15, single buffered']
    #allocation23 [shape = 'u8[32768]{0}', space=vmem, size = 0x8000, scoped, tag = 'output window, operand 0']
    %26 = vsyncpa [#allocation6], 0
    %s27 = scalar_lea.sflag [#allocation6], 1
    %28 = vsyncpa %s27, 0
    %29 = vsyncpa [#allocation9], 0
    %30 = vsyncpa [#allocation12], 0
    %31 = vsyncpa [#allocation15], 0
    %32 = vsyncpa [#allocation18], 0
    %33 = vsyncpa [#allocation21], 0
    %34 = vsyncpa [#allocation7], 0
    %s35 = scalar_lea.sflag [#allocation7], 1
    %36 = vsyncpa %s35, 0
    loop: start=0, step=1, limit=4
    $region2: #{tpu_custom_call.1} parent=1 // loop_pre_header
      _
    $region3: #{tpu_custom_call.1} parent=1 // loop_header
      %s38 = sphi 0, %s42
      %p39 = scmp.ge.s32.totalorder %s38, 4
      %s48 = sphi 0, %s50
      %s51 = sphi 0, %s48
      %s52 = sphi 0, %s51
      %s68 = sphi 0, %s52
      %s72 = sphi 0, %s72
      %s74 = sphi 0, %s72
      %s75 = sphi 0, %s74
      %s89 = sphi 0, %s75
      %s93 = sphi 0, %s93
      %s95 = sphi 0, %s93
      %s96 = sphi 0, %s95
      %s110 = sphi 0, %s96
      %s114 = sphi 0, %s114
      %s116 = sphi 0, %s114
      %s117 = sphi 0, %s116
      %s131 = sphi 0, %s117
      %s135 = sphi 0, %s135
      %s137 = sphi 0, %s135
      %s138 = sphi 0, %s137
      %s152 = sphi 0, %s138
      %s156 = sphi 0, %s156
      %s158 = sphi 0, %s156
      %s159 = sphi 0, %s158
      %s173 = sphi 0, %s159
      %s177 = sphi 0, %s177
      %s179 = sphi 0, %s177
      %s180 = sphi 0, %s179
      %s194 = sphi 0, %s180
      %s198 = sphi 0, %s198
      %s200 = sphi 0, %s198
      %s201 = sphi 0, %s200
      %s215 = sphi 0, %s201
      %s219 = sphi 0, %s219
      %s221 = sphi 0, %s219
      %s222 = sphi 0, %s221
      %s236 = sphi 0, %s222
      %s240 = sphi 0, %s240
      %s242 = sphi 0, %s240
      %s243 = sphi 0, %s242
      %s257 = sphi 0, %s243
      %s261 = sphi 0, %s261
      %s263 = sphi 0, %s261
      %s264 = sphi 0, %s263
      %s278 = sphi 0, %s264
      %s282 = sphi 0, %s282
      %s284 = sphi 0, %s282
      %s285 = sphi 0, %s284
      %s299 = sphi 0, %s285
      %s303 = sphi 0, %s303
      %s305 = sphi 0, %s303
      %s306 = sphi 0, %s305
      %s320 = sphi 0, %s306
      %s324 = sphi 0, %s324
      %s326 = sphi 0, %s324
      %s327 = sphi 0, %s326
      %s341 = sphi 0, %s327
      %s345 = sphi 0, %s345
      %s347 = sphi 0, %s345
      %s348 = sphi 0, %s347
      %s362 = sphi 0, %s348
      %s366 = sphi 0, %s366
      %s368 = sphi 0, %s366
      %s369 = sphi 0, %s368
      %s383 = sphi 0, %s369
      %s387 = sphi 0, %s387
      %s389 = sphi 0, %s387
      %s390 = sphi 0, %s389
      %s404 = sphi 0, %s390
      %s410 = sphi 0, %s412
      %s413 = sphi 0, %s410
      %s414 = sphi 0, %s413
      %s430 = sphi 0, %s414
    $region4: #{tpu_custom_call.1} parent=1 // loop_header_branch
      %41 = sbr.rel (%p39) target = $region8
    $region5: #{tpu_custom_call.1} parent=1 // loop_body
      %s43 = ssub.s32 %s38, 1
      %s44 = ssub.s32 %s38, 2
      %s45 = sadd.s32 %s38, 1
      %s46 = ssub.s32 %s38, %s45
      %p47 = scmp.eq.s32.totalorder %s46, 0
      %s49 = sadd.s32 %s48, 1
      %s50 = scalar_select %p47, %s48, %s49
      %p53 = pneg %p47
      %p54 = scmp.eq.s32.totalorder %s38, 1
      %p55 = por %p53, %p54
      %p56 = scmp.ne.s32.totalorder %s48, %s51
      %p57 = scmp.eq.s32.totalorder %s38, 0
      %p58 = por %p56, %p57
      %p59 = scmp.ne.s32.totalorder %s48, %s51
      %p60 = scmp.eq.s32.totalorder %s43, 1
      %p61 = por %p59, %p60
      %p62 = scmp.ne.s32.totalorder %s51, %s52
      %p63 = scmp.eq.s32.totalorder %s43, 0
      %p64 = por %p62, %p63
      %p65 = scmp.ne.s32.totalorder %s51, %s52
      %p66 = scmp.eq.s32.totalorder %s44, 1
      %p67 = por %p65, %p66
      %p69 = scmp.ne.s32.totalorder %s52, %s68
      %p70 = scmp.eq.s32.totalorder %s44, 0
      %p71 = por %p69, %p70
      %s73 = sadd.s32 %s72, 1
      %p76 = scmp.eq.s32.totalorder %s38, 1
      %p77 = scmp.ne.s32.totalorder %s72, %s74
      %p78 = scmp.eq.s32.totalorder %s38, 0
      %p79 = por %p77, %p78
      %p80 = scmp.ne.s32.totalorder %s72, %s74
      %p81 = scmp.eq.s32.totalorder %s43, 1
      %p82 = por %p80, %p81
      %p83 = scmp.ne.s32.totalorder %s74, %s75
      %p84 = scmp.eq.s32.totalorder %s43, 0
      %p85 = por %p83, %p84
      %p86 = scmp.ne.s32.totalorder %s74, %s75
      %p87 = scmp.eq.s32.totalorder %s44, 1
      %p88 = por %p86, %p87
      %p90 = scmp.ne.s32.totalorder %s75, %s89
      %p91 = scmp.eq.s32.totalorder %s44, 0
      %p92 = por %p90, %p91
      %s94 = sadd.s32 %s93, 1
      %p97 = scmp.eq.s32.totalorder %s38, 1
      %p98 = scmp.ne.s32.totalorder %s93, %s95
      %p99 = scmp.eq.s32.totalorder %s38, 0
      %p100 = por %p98, %p99
      %p101 = scmp.ne.s32.totalorder %s93, %s95
      %p102 = scmp.eq.s32.totalorder %s43, 1
      %p103 = por %p101, %p102
      %p104 = scmp.ne.s32.totalorder %s95, %s96
      %p105 = scmp.eq.s32.totalorder %s43, 0
      %p106 = por %p104, %p105
      %p107 = scmp.ne.s32.totalorder %s95, %s96
      %p108 = scmp.eq.s32.totalorder %s44, 1
      %p109 = por %p107, %p108
      %p111 = scmp.ne.s32.totalorder %s96, %s110
      %p112 = scmp.eq.s32.totalorder %s44, 0
      %p113 = por %p111, %p112
      %s115 = sadd.s32 %s114, 1
      %p118 = scmp.eq.s32.totalorder %s38, 1
      %p119 = scmp.ne.s32.totalorder %s114, %s116
      %p120 = scmp.eq.s32.totalorder %s38, 0
      %p121 = por %p119, %p120
      %p122 = scmp.ne.s32.totalorder %s114, %s116
      %p123 = scmp.eq.s32.totalorder %s43, 1
      %p124 = por %p122, %p123
      %p125 = scmp.ne.s32.totalorder %s116, %s117
      %p126 = scmp.eq.s32.totalorder %s43, 0
      %p127 = por %p125, %p126
      %p128 = scmp.ne.s32.totalorder %s116, %s117
      %p129 = scmp.eq.s32.totalorder %s44, 1
      %p130 = por %p128, %p129
      %p132 = scmp.ne.s32.totalorder %s117, %s131
      %p133 = scmp.eq.s32.totalorder %s44, 0
      %p134 = por %p132, %p133
      %s136 = sadd.s32 %s135, 1
      %p139 = scmp.eq.s32.totalorder %s38, 1
      %p140 = scmp.ne.s32.totalorder %s135, %s137
      %p141 = scmp.eq.s32.totalorder %s38, 0
      %p142 = por %p140, %p141
      %p143 = scmp.ne.s32.totalorder %s135, %s137
      %p144 = scmp.eq.s32.totalorder %s43, 1
      %p145 = por %p143, %p144
      %p146 = scmp.ne.s32.totalorder %s137, %s138
      %p147 = scmp.eq.s32.totalorder %s43, 0
      %p148 = por %p146, %p147
      %p149 = scmp.ne.s32.totalorder %s137, %s138
      %p150 = scmp.eq.s32.totalorder %s44, 1
      %p151 = por %p149, %p150
      %p153 = scmp.ne.s32.totalorder %s138, %s152
      %p154 = scmp.eq.s32.totalorder %s44, 0
      %p155 = por %p153, %p154
      %s157 = sadd.s32 %s156, 1
      %p160 = scmp.eq.s32.totalorder %s38, 1
      %p161 = scmp.ne.s32.totalorder %s156, %s158
      %p162 = scmp.eq.s32.totalorder %s38, 0
      %p163 = por %p161, %p162
      %p164 = scmp.ne.s32.totalorder %s156, %s158
      %p165 = scmp.eq.s32.totalorder %s43, 1
      %p166 = por %p164, %p165
      %p167 = scmp.ne.s32.totalorder %s158, %s159
      %p168 = scmp.eq.s32.totalorder %s43, 0
      %p169 = por %p167, %p168
      %p170 = scmp.ne.s32.totalorder %s158, %s159
      %p171 = scmp.eq.s32.totalorder %s44, 1
      %p172 = por %p170, %p171
      %p174 = scmp.ne.s32.totalorder %s159, %s173
      %p175 = scmp.eq.s32.totalorder %s44, 0
      %p176 = por %p174, %p175
      %s178 = sadd.s32 %s177, 1
      %p181 = scmp.eq.s32.totalorder %s38, 1
      %p182 = scmp.ne.s32.totalorder %s177, %s179
      %p183 = scmp.eq.s32.totalorder %s38, 0
      %p184 = por %p182, %p183
      %p185 = scmp.ne.s32.totalorder %s177, %s179
      %p186 = scmp.eq.s32.totalorder %s43, 1
      %p187 = por %p185, %p186
      %p188 = scmp.ne.s32.totalorder %s179, %s180
      %p189 = scmp.eq.s32.totalorder %s43, 0
      %p190 = por %p188, %p189
      %p191 = scmp.ne.s32.totalorder %s179, %s180
      %p192 = scmp.eq.s32.totalorder %s44, 1
      %p193 = por %p191, %p192
      %p195 = scmp.ne.s32.totalorder %s180, %s194
      %p196 = scmp.eq.s32.totalorder %s44, 0
      %p197 = por %p195, %p196
      %s199 = sadd.s32 %s198, 1
      %p202 = scmp.eq.s32.totalorder %s38, 1
      %p203 = scmp.ne.s32.totalorder %s198, %s200
      %p204 = scmp.eq.s32.totalorder %s38, 0
      %p205 = por %p203, %p204
      %p206 = scmp.ne.s32.totalorder %s198, %s200
      %p207 = scmp.eq.s32.totalorder %s43, 1
      %p208 = por %p206, %p207
      %p209 = scmp.ne.s32.totalorder %s200, %s201
      %p210 = scmp.eq.s32.totalorder %s43, 0
      %p211 = por %p209, %p210
      %p212 = scmp.ne.s32.totalorder %s200, %s201
      %p213 = scmp.eq.s32.totalorder %s44, 1
      %p214 = por %p212, %p213
      %p216 = scmp.ne.s32.totalorder %s201, %s215
      %p217 = scmp.eq.s32.totalorder %s44, 0
      %p218 = por %p216, %p217
      %s220 = sadd.s32 %s219, 1
      %p223 = scmp.eq.s32.totalorder %s38, 1
      %p224 = scmp.ne.s32.totalorder %s219, %s221
      %p225 = scmp.eq.s32.totalorder %s38, 0
      %p226 = por %p224, %p225
      %p227 = scmp.ne.s32.totalorder %s219, %s221
      %p228 = scmp.eq.s32.totalorder %s43, 1
      %p229 = por %p227, %p228
      %p230 = scmp.ne.s32.totalorder %s221, %s222
      %p231 = scmp.eq.s32.totalorder %s43, 0
      %p232 = por %p230, %p231
      %p233 = scmp.ne.s32.totalorder %s221, %s222
      %p234 = scmp.eq.s32.totalorder %s44, 1
      %p235 = por %p233, %p234
      %p237 = scmp.ne.s32.totalorder %s222, %s236
      %p238 = scmp.eq.s32.totalorder %s44, 0
      %p239 = por %p237, %p238
      %s241 = sadd.s32 %s240, 1
      %p244 = scmp.eq.s32.totalorder %s38, 1
      %p245 = scmp.ne.s32.totalorder %s240, %s242
      %p246 = scmp.eq.s32.totalorder %s38, 0
      %p247 = por %p245, %p246
      %p248 = scmp.ne.s32.totalorder %s240, %s242
      %p249 = scmp.eq.s32.totalorder %s43, 1
      %p250 = por %p248, %p249
      %p251 = scmp.ne.s32.totalorder %s242, %s243
      %p252 = scmp.eq.s32.totalorder %s43, 0
      %p253 = por %p251, %p252
      %p254 = scmp.ne.s32.totalorder %s242, %s243
      %p255 = scmp.eq.s32.totalorder %s44, 1
      %p256 = por %p254, %p255
      %p258 = scmp.ne.s32.totalorder %s243, %s257
      %p259 = scmp.eq.s32.totalorder %s44, 0
      %p260 = por %p258, %p259
      %s262 = sadd.s32 %s261, 1
      %p265 = scmp.eq.s32.totalorder %s38, 1
      %p266 = scmp.ne.s32.totalorder %s261, %s263
      %p267 = scmp.eq.s32.totalorder %s38, 0
      %p268 = por %p266, %p267
      %p269 = scmp.ne.s32.totalorder %s261, %s263
      %p270 = scmp.eq.s32.totalorder %s43, 1
      %p271 = por %p269, %p270
      %p272 = scmp.ne.s32.totalorder %s263, %s264
      %p273 = scmp.eq.s32.totalorder %s43, 0
      %p274 = por %p272, %p273
      %p275 = scmp.ne.s32.totalorder %s263, %s264
      %p276 = scmp.eq.s32.totalorder %s44, 1
      %p277 = por %p275, %p276
      %p279 = scmp.ne.s32.totalorder %s264, %s278
      %p280 = scmp.eq.s32.totalorder %s44, 0
      %p281 = por %p279, %p280
      %s283 = sadd.s32 %s282, 1
      %p286 = scmp.eq.s32.totalorder %s38, 1
      %p287 = scmp.ne.s32.totalorder %s282, %s284
      %p288 = scmp.eq.s32.totalorder %s38, 0
      %p289 = por %p287, %p288
      %p290 = scmp.ne.s32.totalorder %s282, %s284
      %p291 = scmp.eq.s32.totalorder %s43, 1
      %p292 = por %p290, %p291
      %p293 = scmp.ne.s32.totalorder %s284, %s285
      %p294 = scmp.eq.s32.totalorder %s43, 0
      %p295 = por %p293, %p294
      %p296 = scmp.ne.s32.totalorder %s284, %s285
      %p297 = scmp.eq.s32.totalorder %s44, 1
      %p298 = por %p296, %p297
      %p300 = scmp.ne.s32.totalorder %s285, %s299
      %p301 = scmp.eq.s32.totalorder %s44, 0
      %p302 = por %p300, %p301
      %s304 = sadd.s32 %s303, 1
      %p307 = scmp.eq.s32.totalorder %s38, 1
      %p308 = scmp.ne.s32.totalorder %s303, %s305
      %p309 = scmp.eq.s32.totalorder %s38, 0
      %p310 = por %p308, %p309
      %p311 = scmp.ne.s32.totalorder %s303, %s305
      %p312 = scmp.eq.s32.totalorder %s43, 1
      %p313 = por %p311, %p312
      %p314 = scmp.ne.s32.totalorder %s305, %s306
      %p315 = scmp.eq.s32.totalorder %s43, 0
      %p316 = por %p314, %p315
      %p317 = scmp.ne.s32.totalorder %s305, %s306
      %p318 = scmp.eq.s32.totalorder %s44, 1
      %p319 = por %p317, %p318
      %p321 = scmp.ne.s32.totalorder %s306, %s320
      %p322 = scmp.eq.s32.totalorder %s44, 0
      %p323 = por %p321, %p322
      %s325 = sadd.s32 %s324, 1
      %p328 = scmp.eq.s32.totalorder %s38, 1
      %p329 = scmp.ne.s32.totalorder %s324, %s326
      %p330 = scmp.eq.s32.totalorder %s38, 0
      %p331 = por %p329, %p330
      %p332 = scmp.ne.s32.totalorder %s324, %s326
      %p333 = scmp.eq.s32.totalorder %s43, 1
      %p334 = por %p332, %p333
      %p335 = scmp.ne.s32.totalorder %s326, %s327
      %p336 = scmp.eq.s32.totalorder %s43, 0
      %p337 = por %p335, %p336
      %p338 = scmp.ne.s32.totalorder %s326, %s327
      %p339 = scmp.eq.s32.totalorder %s44, 1
      %p340 = por %p338, %p339
      %p342 = scmp.ne.s32.totalorder %s327, %s341
      %p343 = scmp.eq.s32.totalorder %s44, 0
      %p344 = por %p342, %p343
      %s346 = sadd.s32 %s345, 1
      %p349 = scmp.eq.s32.totalorder %s38, 1
      %p350 = scmp.ne.s32.totalorder %s345, %s347
      %p351 = scmp.eq.s32.totalorder %s38, 0
      %p352 = por %p350, %p351
      %p353 = scmp.ne.s32.totalorder %s345, %s347
      %p354 = scmp.eq.s32.totalorder %s43, 1
      %p355 = por %p353, %p354
      %p356 = scmp.ne.s32.totalorder %s347, %s348
      %p357 = scmp.eq.s32.totalorder %s43, 0
      %p358 = por %p356, %p357
      %p359 = scmp.ne.s32.totalorder %s347, %s348
      %p360 = scmp.eq.s32.totalorder %s44, 1
      %p361 = por %p359, %p360
      %p363 = scmp.ne.s32.totalorder %s348, %s362
      %p364 = scmp.eq.s32.totalorder %s44, 0
      %p365 = por %p363, %p364
      %s367 = sadd.s32 %s366, 1
      %p370 = scmp.eq.s32.totalorder %s38, 1
      %p371 = scmp.ne.s32.totalorder %s366, %s368
      %p372 = scmp.eq.s32.totalorder %s38, 0
      %p373 = por %p371, %p372
      %p374 = scmp.ne.s32.totalorder %s366, %s368
      %p375 = scmp.eq.s32.totalorder %s43, 1
      %p376 = por %p374, %p375
      %p377 = scmp.ne.s32.totalorder %s368, %s369
      %p378 = scmp.eq.s32.totalorder %s43, 0
      %p379 = por %p377, %p378
      %p380 = scmp.ne.s32.totalorder %s368, %s369
      %p381 = scmp.eq.s32.totalorder %s44, 1
      %p382 = por %p380, %p381
      %p384 = scmp.ne.s32.totalorder %s369, %s383
      %p385 = scmp.eq.s32.totalorder %s44, 0
      %p386 = por %p384, %p385
      %s388 = sadd.s32 %s387, 1
      %p391 = scmp.eq.s32.totalorder %s38, 1
      %p392 = scmp.ne.s32.totalorder %s387, %s389
      %p393 = scmp.eq.s32.totalorder %s38, 0
      %p394 = por %p392, %p393
      %p395 = scmp.ne.s32.totalorder %s387, %s389
      %p396 = scmp.eq.s32.totalorder %s43, 1
      %p397 = por %p395, %p396
      %p398 = scmp.ne.s32.totalorder %s389, %s390
      %p399 = scmp.eq.s32.totalorder %s43, 0
      %p400 = por %p398, %p399
      %p401 = scmp.ne.s32.totalorder %s389, %s390
      %p402 = scmp.eq.s32.totalorder %s44, 1
      %p403 = por %p401, %p402
      %p405 = scmp.ne.s32.totalorder %s390, %s404
      %p406 = scmp.eq.s32.totalorder %s44, 0
      %p407 = por %p405, %p406
      %s408 = ssub.s32 %s38, %s45
      %p409 = scmp.eq.s32.totalorder %s408, 0
      %s411 = sadd.s32 %s410, 1
      %s412 = scalar_select %p409, %s410, %s411
      %p415 = pneg %p409
      %p416 = scmp.eq.s32.totalorder %s38, 1
      %p417 = por %p415, %p416
      %p418 = scmp.ne.s32.totalorder %s410, %s413
      %p419 = scmp.eq.s32.totalorder %s38, 0
      %p420 = por %p418, %p419
      %p421 = scmp.ne.s32.totalorder %s410, %s413
      %p422 = scmp.eq.s32.totalorder %s43, 1
      %p423 = por %p421, %p422
      %p424 = scmp.ne.s32.totalorder %s413, %s414
      %p425 = scmp.eq.s32.totalorder %s43, 0
      %p426 = por %p424, %p425
      %p427 = scmp.ne.s32.totalorder %s413, %s414
      %p428 = scmp.eq.s32.totalorder %s44, 1
      %p429 = por %p427, %p428
      %p431 = scmp.ne.s32.totalorder %s414, %s430
      %p432 = scmp.eq.s32.totalorder %s44, 0
      %p433 = por %p431, %p432
      %p434 = scmp.le.s32.totalorder 1, %s38
      %p435 = scmp.lt.s32.totalorder %s38, 3
      %p436 = pnand %p434, %p435
      %p437 = pneg %p436
      // Predicated region
      $region9: #{tpu_custom_call.1} parent=5 // pred_check
        _
      $region10: #{tpu_custom_call.1} parent=5 // pred_check_branch
        %439 = sbr.rel (%p436) target = $region12
      $region11: #{tpu_custom_call.1} parent=5 // pred_region
        %s440 = ssub.s32 %s38, 1
        // Predicated region
        $region13: #{tpu_custom_call.1} parent=11 // pred_check
          %p441 = pneg %p85
        $region14: #{tpu_custom_call.1} parent=11 // pred_check_branch
          %443 = sbr.rel (%p441) target = $region16
        $region15: #{tpu_custom_call.1} parent=11 // pred_region
          %s445 = ssub.s32 32, 32
          %446 = vsyncadd [#allocation9], %s445
          %s448 = sshll.u32 [#allocation8], 4
          %s449 = int_to_ptr.vmem [resolvable:$true] %s448
          %451 = dma.hbm_to_vmem [thread:$0]  %s1, 32, %s449, [#allocation9]
        $region16: #{tpu_custom_call.1} parent=11 // pred_fallthru
          _
        // Predicated region
        $region17: #{tpu_custom_call.1} parent=11 // pred_check
          %p452 = pneg %p106
        $region18: #{tpu_custom_call.1} parent=11 // pred_check_branch
          %454 = sbr.rel (%p452) target = $region20
        $region19: #{tpu_custom_call.1} parent=11 // pred_region
          %s456 = ssub.s32 32, 32
          %457 = vsyncadd [#allocation9], %s456
          %s459 = sshll.u32 [#allocation10], 4
          %s460 = int_to_ptr.vmem [resolvable:$true] %s459
          %462 = dma.hbm_to_vmem [thread:$0]  %s2, 32, %s460, [#allocation9]
        $region20: #{tpu_custom_call.1} parent=11 // pred_fallthru
          _
        // Predicated region
        $region21: #{tpu_custom_call.1} parent=11 // pred_check
          %p463 = pneg %p127
        $region22: #{tpu_custom_call.1} parent=11 // pred_check_branch
          %465 = sbr.rel (%p463) target = $region24
        $region23: #{tpu_custom_call.1} parent=11 // pred_region
          %s467 = ssub.s32 12288, 12288
          %468 = vsyncadd [#allocation12], %s467
          %s469 = sshll.u32 [#allocation11], 4
          %s470 = int_to_ptr.vmem [resolvable:$true] %s469
          %475 = dma.hbm_to_vmem [thread:$0]  %s3, 12288, %s470, [#allocation12], 384, 384, 24
        $region24: #{tpu_custom_call.1} parent=11 // pred_fallthru
          _
        // Predicated region
        $region25: #{tpu_custom_call.1} parent=11 // pred_check
          %p476 = pneg %p148
        $region26: #{tpu_custom_call.1} parent=11 // pred_check_branch
          %478 = sbr.rel (%p476) target = $region28
        $region27: #{tpu_custom_call.1} parent=11 // pred_region
          _
        $region28: #{tpu_custom_call.1} parent=11 // pred_fallthru
          _
        // Predicated region
        $region29: #{tpu_custom_call.1} parent=11 // pred_check
          %p479 = pneg %p169
        $region30: #{tpu_custom_call.1} parent=11 // pred_check_branch
          %481 = sbr.rel (%p479) target = $region32
        $region31: #{tpu_custom_call.1} parent=11 // pred_region
          %s483 = ssub.s32 4096, 4096
          %484 = vsyncadd [#allocation12], %s483
          %s485 = sshll.u32 [#allocation13], 4
          %s486 = int_to_ptr.vmem [resolvable:$true] %s485
          %491 = dma.hbm_to_vmem [thread:$0]  %s5, 4096, %s486, [#allocation12], 128, 128, 8
        $region32: #{tpu_custom_call.1} parent=11 // pred_fallthru
          _
        // Predicated region
        $region33: #{tpu_custom_call.1} parent=11 // pred_check
          %p492 = pneg %p190
        $region34: #{tpu_custom_call.1} parent=11 // pred_check_branch
          %494 = sbr.rel (%p492) target = $region36
        $region35: #{tpu_custom_call.1} parent=11 // pred_region
          _
        $region36: #{tpu_custom_call.1} parent=11 // pred_fallthru
          _
        // Predicated region
        $region37: #{tpu_custom_call.1} parent=11 // pred_check
          %p495 = pneg %p211
        $region38: #{tpu_custom_call.1} parent=11 // pred_check_branch
          %497 = sbr.rel (%p495) target = $region40
        $region39: #{tpu_custom_call.1} parent=11 // pred_region
          %s499 = ssub.s32 8192, 8192
          %500 = vsyncadd [#allocation15], %s499
          %s501 = sshll.u32 [#allocation14], 4
          %s502 = int_to_ptr.vmem [resolvable:$true] %s501
          %507 = dma.hbm_to_vmem [thread:$0]  %s7, 8192, %s502, [#allocation15], 256, 256, 16
        $region40: #{tpu_custom_call.1} parent=11 // pred_fallthru
          _
        // Predicated region
        $region41: #{tpu_custom_call.1} parent=11 // pred_check
          %p508 = pneg %p232
        $region42: #{tpu_custom_call.1} parent=11 // pred_check_branch
          %510 = sbr.rel (%p508) target = $region44
        $region43: #{tpu_custom_call.1} parent=11 // pred_region
          _
        $region44: #{tpu_custom_call.1} parent=11 // pred_fallthru
          _
        // Predicated region
        $region45: #{tpu_custom_call.1} parent=11 // pred_check
          %p511 = pneg %p253
        $region46: #{tpu_custom_call.1} parent=11 // pred_check_branch
          %513 = sbr.rel (%p511) target = $region48
        $region47: #{tpu_custom_call.1} parent=11 // pred_region
          %s515 = ssub.s32 8192, 8192
          %516 = vsyncadd [#allocation15], %s515
          %s517 = sshll.u32 [#allocation16], 4
          %s518 = int_to_ptr.vmem [resolvable:$true] %s517
          %523 = dma.hbm_to_vmem [thread:$0]  %s9, 8192, %s518, [#allocation15], 128, 128, 8
        $region48: #{tpu_custom_call.1} parent=11 // pred_fallthru
          _
        // Predicated region
        $region49: #{tpu_custom_call.1} parent=11 // pred_check
          %p524 = pneg %p274
        $region50: #{tpu_custom_call.1} parent=11 // pred_check_branch
          %526 = sbr.rel (%p524) target = $region52
        $region51: #{tpu_custom_call.1} parent=11 // pred_region
          _
        $region52: #{tpu_custom_call.1} parent=11 // pred_fallthru
          _
        // Predicated region
        $region53: #{tpu_custom_call.1} parent=11 // pred_check
          %p527 = pneg %p295
        $region54: #{tpu_custom_call.1} parent=11 // pred_check_branch
          %529 = sbr.rel (%p527) target = $region56
        $region55: #{tpu_custom_call.1} parent=11 // pred_region
          %s531 = ssub.s32 12288, 12288
          %532 = vsyncadd [#allocation18], %s531
          %s533 = sshll.u32 [#allocation17], 4
          %s534 = int_to_ptr.vmem [resolvable:$true] %s533
          %539 = dma.hbm_to_vmem [thread:$0]  %s11, 12288, %s534, [#allocation18], 384, 384, 24
        $region56: #{tpu_custom_call.1} parent=11 // pred_fallthru
          _
        // Predicated region
        $region57: #{tpu_custom_call.1} parent=11 // pred_check
          %p540 = pneg %p316
        $region58: #{tpu_custom_call.1} parent=11 // pred_check_branch
          %542 = sbr.rel (%p540) target = $region60
        $region59: #{tpu_custom_call.1} parent=11 // pred_region
          %s544 = ssub.s32 12288, 12288
          %545 = vsyncadd [#allocation18], %s544
          %s546 = sshll.u32 [#allocation19], 4
          %s547 = int_to_ptr.vmem [resolvable:$true] %s546
          %552 = dma.hbm_to_vmem [thread:$0]  %s12, 12288, %s547, [#allocation18], 384, 384, 24
        $region60: #{tpu_custom_call.1} parent=11 // pred_fallthru
          _
        // Predicated region
        $region61: #{tpu_custom_call.1} parent=11 // pred_check
          %p553 = pneg %p337
        $region62: #{tpu_custom_call.1} parent=11 // pred_check_branch
          %555 = sbr.rel (%p553) target = $region64
        $region63: #{tpu_custom_call.1} parent=11 // pred_region
          _
        $region64: #{tpu_custom_call.1} parent=11 // pred_fallthru
          _
        // Predicated region
        $region65: #{tpu_custom_call.1} parent=11 // pred_check
          %p556 = pneg %p358
        $region66: #{tpu_custom_call.1} parent=11 // pred_check_branch
          %558 = sbr.rel (%p556) target = $region68
        $region67: #{tpu_custom_call.1} parent=11 // pred_region
          %s560 = ssub.s32 12288, 12288
          %561 = vsyncadd [#allocation21], %s560
          %s562 = sshll.u32 [#allocation20], 4
          %s563 = int_to_ptr.vmem [resolvable:$true] %s562
          %568 = dma.hbm_to_vmem [thread:$0]  %s14, 12288, %s563, [#allocation21], 384, 384, 24
        $region68: #{tpu_custom_call.1} parent=11 // pred_fallthru
          _
        // Predicated region
        $region69: #{tpu_custom_call.1} parent=11 // pred_check
          %p569 = pneg %p379
        $region70: #{tpu_custom_call.1} parent=11 // pred_check_branch
          %571 = sbr.rel (%p569) target = $region72
        $region71: #{tpu_custom_call.1} parent=11 // pred_region
          %s573 = ssub.s32 12288, 12288
          %574 = vsyncadd [#allocation21], %s573
          %s575 = sshll.u32 [#allocation22], 4
          %s576 = int_to_ptr.vmem [resolvable:$true] %s575
          %581 = dma.hbm_to_vmem [thread:$0]  %s15, 12288, %s576, [#allocation21], 384, 384, 24
        $region72: #{tpu_custom_call.1} parent=11 // pred_fallthru
          _
        // Predicated region
        $region73: #{tpu_custom_call.1} parent=11 // pred_check
          %p582 = pneg %p400
        $region74: #{tpu_custom_call.1} parent=11 // pred_check_branch
          %584 = sbr.rel (%p582) target = $region76
        $region75: #{tpu_custom_call.1} parent=11 // pred_region
          _
        $region76: #{tpu_custom_call.1} parent=11 // pred_fallthru
          _
      $region12: #{tpu_custom_call.1} parent=5 // pred_fallthru
        _
      %p585 = scmp.lt.s32.totalorder %s38, 2
      // Predicated region
      $region77: #{tpu_custom_call.1} parent=5 // pred_check
        %p586 = pneg %p585
      $region78: #{tpu_custom_call.1} parent=5 // pred_check_branch
        %588 = sbr.rel (%p586) target = $region80
      $region79: #{tpu_custom_call.1} parent=5 // pred_region
        // Predicated region
        $region81: #{tpu_custom_call.1} parent=79 // pred_check
          %p589 = pneg %p58
        $region82: #{tpu_custom_call.1} parent=79 // pred_check_branch
          %591 = sbr.rel (%p589) target = $region84
        $region83: #{tpu_custom_call.1} parent=79 // pred_region
          %s592 = sand.u32 %s48, 1
          %s593 = scalar_lea.sflag [#allocation6], %s592
          %s594 = sand.u32 %s48, 1
          %s595 = smul.addr %s594, 32
          %s596 = scalar_lea.vmem [#allocation5], %s595
          %s598 = ssub.s32 512, 512
          %599 = vsyncadd %s593, %s598
          %s600 = smul.addr %s38, 4
          %s601 = smul.addr %s600, 128
          %s602 = scalar_lea.hbm %s0, %s601
          %s603 = sshll.u32 %s596, 4
          %s604 = int_to_ptr.vmem [resolvable:$true] %s603
          %609 = dma.hbm_to_vmem [thread:$0]  %s602, 512, %s604, %s593, 256, 256, 16
        $region84: #{tpu_custom_call.1} parent=79 // pred_fallthru
          _
      $region80: #{tpu_custom_call.1} parent=5 // pred_fallthru
        _
      %p610 = scmp.le.s32.totalorder 1, %s38
      %p611 = scmp.lt.s32.totalorder %s38, 3
      %p612 = pnand %p610, %p611
      %p613 = pneg %p612
      // Predicated region
      $region85: #{tpu_custom_call.1} parent=5 // pred_check
        _
      $region86: #{tpu_custom_call.1} parent=5 // pred_check_branch
        %615 = sbr.rel (%p612) target = $region88
      $region87: #{tpu_custom_call.1} parent=5 // pred_region
        %s616 = ssub.s32 %s38, 1
        %s617 = sand.u32 %s51, 1
        %s618 = scalar_lea.sflag [#allocation6], %s617
        %s619 = sand.u32 %s51, 1
        %s620 = smul.addr %s619, 32
        %s621 = scalar_lea.vmem [#allocation5], %s620
        // Predicated region
        $region89: #{tpu_custom_call.1} parent=87 // pred_check
          %p622 = pneg %p64
        $region90: #{tpu_custom_call.1} parent=87 // pred_check_branch
          %624 = sbr.rel (%p622) target = $region92
        $region91: #{tpu_custom_call.1} parent=87 // pred_region
          %625 = dma.done %s618, 512
        $region92: #{tpu_custom_call.1} parent=87 // pred_fallthru
          _
        // Predicated region
        $region93: #{tpu_custom_call.1} parent=87 // pred_check
          %p626 = pneg %p85
        $region94: #{tpu_custom_call.1} parent=87 // pred_check_branch
          %628 = sbr.rel (%p626) target = $region96
        $region95: #{tpu_custom_call.1} parent=87 // pred_region
          %629 = dma.done [#allocation9], 32
        $region96: #{tpu_custom_call.1} parent=87 // pred_fallthru
          _
        // Predicated region
        $region97: #{tpu_custom_call.1} parent=87 // pred_check
          %p630 = pneg %p106
        $region98: #{tpu_custom_call.1} parent=87 // pred_check_branch
          %632 = sbr.rel (%p630) target = $region100
        $region99: #{tpu_custom_call.1} parent=87 // pred_region
          %633 = dma.done [#allocation9], 32
        $region100: #{tpu_custom_call.1} parent=87 // pred_fallthru
          _
        // Predicated region
        $region101: #{tpu_custom_call.1} parent=87 // pred_check
          %p634 = pneg %p127
        $region102: #{tpu_custom_call.1} parent=87 // pred_check_branch
          %636 = sbr.rel (%p634) target = $region104
        $region103: #{tpu_custom_call.1} parent=87 // pred_region
          %637 = dma.done [#allocation12], 12288
        $region104: #{tpu_custom_call.1} parent=87 // pred_fallthru
          _
        // Predicated region
        $region105: #{tpu_custom_call.1} parent=87 // pred_check
          %p638 = pneg %p169
        $region106: #{tpu_custom_call.1} parent=87 // pred_check_branch
          %640 = sbr.rel (%p638) target = $region108
        $region107: #{tpu_custom_call.1} parent=87 // pred_region
          %641 = dma.done [#allocation12], 4096
        $region108: #{tpu_custom_call.1} parent=87 // pred_fallthru
          _
        // Predicated region
        $region109: #{tpu_custom_call.1} parent=87 // pred_check
          %p642 = pneg %p211
        $region110: #{tpu_custom_call.1} parent=87 // pred_check_branch
          %644 = sbr.rel (%p642) target = $region112
        $region111: #{tpu_custom_call.1} parent=87 // pred_region
          %645 = dma.done [#allocation15], 8192
        $region112: #{tpu_custom_call.1} parent=87 // pred_fallthru
          _
        // Predicated region
        $region113: #{tpu_custom_call.1} parent=87 // pred_check
          %p646 = pneg %p253
        $region114: #{tpu_custom_call.1} parent=87 // pred_check_branch
          %648 = sbr.rel (%p646) target = $region116
        $region115: #{tpu_custom_call.1} parent=87 // pred_region
          %649 = dma.done [#allocation15], 8192
        $region116: #{tpu_custom_call.1} parent=87 // pred_fallthru
          _
        // Predicated region
        $region117: #{tpu_custom_call.1} parent=87 // pred_check
          %p650 = pneg %p295
        $region118: #{tpu_custom_call.1} parent=87 // pred_check_branch
          %652 = sbr.rel (%p650) target = $region120
        $region119: #{tpu_custom_call.1} parent=87 // pred_region
          %653 = dma.done [#allocation18], 12288
        $region120: #{tpu_custom_call.1} parent=87 // pred_fallthru
          _
        // Predicated region
        $region121: #{tpu_custom_call.1} parent=87 // pred_check
          %p654 = pneg %p316
        $region122: #{tpu_custom_call.1} parent=87 // pred_check_branch
          %656 = sbr.rel (%p654) target = $region124
        $region123: #{tpu_custom_call.1} parent=87 // pred_region
          %657 = dma.done [#allocation18], 12288
        $region124: #{tpu_custom_call.1} parent=87 // pred_fallthru
          _
        // Predicated region
        $region125: #{tpu_custom_call.1} parent=87 // pred_check
          %p658 = pneg %p358
        $region126: #{tpu_custom_call.1} parent=87 // pred_check_branch
          %660 = sbr.rel (%p658) target = $region128
        $region127: #{tpu_custom_call.1} parent=87 // pred_region
          %661 = dma.done [#allocation21], 12288
        $region128: #{tpu_custom_call.1} parent=87 // pred_fallthru
          _
        // Predicated region
        $region129: #{tpu_custom_call.1} parent=87 // pred_check
          %p662 = pneg %p379
        $region130: #{tpu_custom_call.1} parent=87 // pred_check_branch
          %664 = sbr.rel (%p662) target = $region132
        $region131: #{tpu_custom_call.1} parent=87 // pred_region
          %665 = dma.done [#allocation21], 12288
        $region132: #{tpu_custom_call.1} parent=87 // pred_fallthru
          _
        %s666 = sand.u32 %s51, 1
        %s667 = scalar_lea.sflag [#allocation6], %s666
        %s668 = sand.u32 %s51, 1
        %s669 = smul.addr %s668, 32
        %s670 = scalar_lea.vmem [#allocation5], %s669
        %p671 = pneg %p64
        %p672 = pneg %p61
        %p673 = pneg %p85
        %p674 = pneg %p82
        %p675 = pneg %p106
        %p676 = pneg %p103
        %p677 = pneg %p127
        %p678 = pneg %p124
        %p679 = pneg %p148
        %p680 = pneg %p145
        %p681 = pneg %p169
        %p682 = pneg %p166
        %p683 = pneg %p190
        %p684 = pneg %p187
        %p685 = pneg %p211
        %p686 = pneg %p208
        %p687 = pneg %p232
        %p688 = pneg %p229
        %p689 = pneg %p253
        %p690 = pneg %p250
        %p691 = pneg %p274
        %p692 = pneg %p271
        %p693 = pneg %p295
        %p694 = pneg %p292
        %p695 = pneg %p316
        %p696 = pneg %p313
        %p697 = pneg %p337
        %p698 = pneg %p334
        %p699 = pneg %p358
        %p700 = pneg %p355
        %p701 = pneg %p379
        %p702 = pneg %p376
        %p703 = pneg %p400
        %p704 = pneg %p397
        %p705 = pneg %p426
        %p706 = pneg %p423
        %s707 = sand.u32 %s413, 1
        %s708 = scalar_lea.sflag [#allocation7], %s707
        %s709 = sand.u32 %s413, 1
        %s710 = smul.addr %s709, 32
        %s711 = scalar_lea.vmem [#allocation23], %s710
        %v713 = vld [vmem:[%s621] sm:$0xff]
        %v714 = vld [vmem:[%s621 + $0x8] sm:$0xff]
        %v715 = vld [vmem:[%s621 + $0x10] sm:$0xff]
        %v716 = vld [vmem:[%s621 + $0x18] sm:$0xff]
        %v717 = vld [vmem:[#allocation8] sm:$0x3]
        %v718 = vld [vmem:[#allocation10] sm:$0x3]
        %v719 = vadd.f32 %v713, %v714
        %720 = vadd.xlane.f32.xlu0 %v719
        %v721 = vpop.xlane.xlu0 %720
        %v722 = vadd.f32 %v715, %v716
        %723 = vadd.xlane.f32.xlu0 %v722
        %v724 = vpop.xlane.xlu0 %723
        %v725 = vrcp.pop 256.0
        %v726 = vmul.f32 %v721, %v725
        %v727 = vmul.f32 %v724, %v725
        %v728 = vsub.f32 %v713, %v726
        %v729 = vsub.f32 %v714, %v726
        %v730 = vsub.f32 %v715, %v727
        %v731 = vsub.f32 %v716, %v727
        %v732 = vmul.f32 %v728, %v728
        %v733 = vmul.f32 %v729, %v729
        %v734 = vmul.f32 %v730, %v730
        %v735 = vmul.f32 %v731, %v731
        %v736 = vadd.f32 %v732, %v733
        %737 = vadd.xlane.f32.xlu0 %v736
        %v738 = vpop.xlane.xlu0 %737
        %v739 = vadd.f32 %v734, %v735
        %740 = vadd.xlane.f32.xlu0 %v739
        %v741 = vpop.xlane.xlu0 %740
        %v742 = vmul.f32 %v738, %v725
        %v743 = vmul.f32 %v741, %v725
        %v744 = vadd.f32 %v742, 1e-05
        %v745 = vadd.f32 %v743, 1e-05
        %v746 = vrsqrt.pop %v744
        %v747 = vrsqrt.pop %v745
        %v748 = vmul.f32 %v728, %v746
        %v749 = vmul.f32 %v729, %v746
        %v750 = vmul.f32 %v730, %v747
        %v751 = vmul.f32 %v731, %v747
        %v753 = vlaneseq
        %v754 = vshrl.u32 %v753, 7
        %v755 = vsub.s32 0, %v754
        %v756 = vrot.slane %v717, %v755
        %v757 = vlaneseq
        %v758 = vshrl.u32 %v757, 7
        %v759 = vsub.s32 1, %v758
        %v760 = vrot.slane %v717, %v759
        %v763 = vmul.f32 %v748, %v756
        %v764 = vmul.f32 %v749, %v760
        %v765 = vmul.f32 %v750, %v756
        %v766 = vmul.f32 %v751, %v760
        %v768 = vlaneseq
        %v769 = vshrl.u32 %v768, 7
        %v770 = vsub.s32 0, %v769
        %v771 = vrot.slane %v718, %v770
        %v772 = vlaneseq
        %v773 = vshrl.u32 %v772, 7
        %v774 = vsub.s32 1, %v773
        %v775 = vrot.slane %v718, %v774
        %v778 = vadd.f32 %v763, %v771
        %v779 = vadd.f32 %v764, %v775
        %v780 = vadd.f32 %v765, %v771
        %v781 = vadd.f32 %v766, %v775
        %v782 = vpack.c.bf16 %v780, %v778
        %v783 = vpack.c.bf16 %v781, %v779
        %v784 = vld [vmem:[#allocation11] sm:$0xff]
        %v785 = vld [vmem:[#allocation11 + $0x8] sm:$0xff]
        %v786 = vld [vmem:[#allocation11 + $0x10] sm:$0xff]
        %v787 = vld [vmem:[#allocation11 + $0x18] sm:$0xff]
        %v788 = vld [vmem:[#allocation11 + $0x20] sm:$0xff]
        %v789 = vld [vmem:[#allocation11 + $0x28] sm:$0xff]
        %v790 = vld [vmem:[#allocation11 + $0x30] sm:$0xff]
        %v791 = vld [vmem:[#allocation11 + $0x38] sm:$0xff]
        %v792 = vld [vmem:[#allocation11 + $0x40] sm:$0xff]
        %v793 = vld [vmem:[#allocation11 + $0x48] sm:$0xff]
        %v794 = vld [vmem:[#allocation11 + $0x50] sm:$0xff]
        %v795 = vld [vmem:[#allocation11 + $0x58] sm:$0xff]
        %v796 = vld [vmem:[#allocation11 + $0x60] sm:$0xff]
        %v797 = vld [vmem:[#allocation11 + $0x68] sm:$0xff]
        %v798 = vld [vmem:[#allocation11 + $0x70] sm:$0xff]
        %v799 = vld [vmem:[#allocation11 + $0x78] sm:$0xff]
        %v800 = vld [vmem:[#allocation11 + $0x80] sm:$0xff]
        %v801 = vld [vmem:[#allocation11 + $0x88] sm:$0xff]
        %v802 = vld [vmem:[#allocation11 + $0x90] sm:$0xff]
        %v803 = vld [vmem:[#allocation11 + $0x98] sm:$0xff]
        %v804 = vld [vmem:[#allocation11 + $0xa0] sm:$0xff]
        %v805 = vld [vmem:[#allocation11 + $0xa8] sm:$0xff]
        %v806 = vld [vmem:[#allocation11 + $0xb0] sm:$0xff]
        %v807 = vld [vmem:[#allocation11 + $0xb8] sm:$0xff]
        %v808 = vld [vmem:[#allocation11 + $0xc0] sm:$0xff]
        %v809 = vld [vmem:[#allocation11 + $0xc8] sm:$0xff]
        %v810 = vld [vmem:[#allocation11 + $0xd0] sm:$0xff]
        %v811 = vld [vmem:[#allocation11 + $0xd8] sm:$0xff]
        %v812 = vld [vmem:[#allocation11 + $0xe0] sm:$0xff]
        %v813 = vld [vmem:[#allocation11 + $0xe8] sm:$0xff]
        %v814 = vld [vmem:[#allocation11 + $0xf0] sm:$0xff]
        %v815 = vld [vmem:[#allocation11 + $0xf8] sm:$0xff]
        %v816 = vld [vmem:[#allocation11 + $0x100] sm:$0xff]
        %v817 = vld [vmem:[#allocation11 + $0x108] sm:$0xff]
        %v818 = vld [vmem:[#allocation11 + $0x110] sm:$0xff]
        %v819 = vld [vmem:[#allocation11 + $0x118] sm:$0xff]
        %v820 = vld [vmem:[#allocation11 + $0x120] sm:$0xff]
        %v821 = vld [vmem:[#allocation11 + $0x128] sm:$0xff]
        %v822 = vld [vmem:[#allocation11 + $0x130] sm:$0xff]
        %v823 = vld [vmem:[#allocation11 + $0x138] sm:$0xff]
        %v824 = vld [vmem:[#allocation11 + $0x140] sm:$0xff]
        %v825 = vld [vmem:[#allocation11 + $0x148] sm:$0xff]
        %v826 = vld [vmem:[#allocation11 + $0x150] sm:$0xff]
        %v827 = vld [vmem:[#allocation11 + $0x158] sm:$0xff]
        %v828 = vld [vmem:[#allocation11 + $0x160] sm:$0xff]
        %v829 = vld [vmem:[#allocation11 + $0x168] sm:$0xff]
        %v830 = vld [vmem:[#allocation11 + $0x170] sm:$0xff]
        %v831 = vld [vmem:[#allocation11 + $0x178] sm:$0xff]
        %v832 = vld [vmem:[#allocation11 + $0x180] sm:$0xff]
        %v833 = vld [vmem:[#allocation11 + $0x188] sm:$0xff]
        %v834 = vld [vmem:[#allocation11 + $0x190] sm:$0xff]
        %v835 = vld [vmem:[#allocation11 + $0x198] sm:$0xff]
        %v836 = vld [vmem:[#allocation11 + $0x1a0] sm:$0xff]
        %v837 = vld [vmem:[#allocation11 + $0x1a8] sm:$0xff]
        %v838 = vld [vmem:[#allocation11 + $0x1b0] sm:$0xff]
        %v839 = vld [vmem:[#allocation11 + $0x1b8] sm:$0xff]
        %v840 = vld [vmem:[#allocation11 + $0x1c0] sm:$0xff]
        %v841 = vld [vmem:[#allocation11 + $0x1c8] sm:$0xff]
        %v842 = vld [vmem:[#allocation11 + $0x1d0] sm:$0xff]
        %v843 = vld [vmem:[#allocation11 + $0x1d8] sm:$0xff]
        %v844 = vld [vmem:[#allocation11 + $0x1e0] sm:$0xff]
        %v845 = vld [vmem:[#allocation11 + $0x1e8] sm:$0xff]
        %v846 = vld [vmem:[#allocation11 + $0x1f0] sm:$0xff]
        %v847 = vld [vmem:[#allocation11 + $0x1f8] sm:$0xff]
        %v848 = vld [vmem:[#allocation11 + $0x200] sm:$0xff]
        %v849 = vld [vmem:[#allocation11 + $0x208] sm:$0xff]
        %v850 = vld [vmem:[#allocation11 + $0x210] sm:$0xff]
        %v851 = vld [vmem:[#allocation11 + $0x218] sm:$0xff]
        %v852 = vld [vmem:[#allocation11 + $0x220] sm:$0xff]
        %v853 = vld [vmem:[#allocation11 + $0x228] sm:$0xff]
        %v854 = vld [vmem:[#allocation11 + $0x230] sm:$0xff]
        %v855 = vld [vmem:[#allocation11 + $0x238] sm:$0xff]
        %v856 = vld [vmem:[#allocation11 + $0x240] sm:$0xff]
        %v857 = vld [vmem:[#allocation11 + $0x248] sm:$0xff]
        %v858 = vld [vmem:[#allocation11 + $0x250] sm:$0xff]
        %v859 = vld [vmem:[#allocation11 + $0x258] sm:$0xff]
        %v860 = vld [vmem:[#allocation11 + $0x260] sm:$0xff]
        %v861 = vld [vmem:[#allocation11 + $0x268] sm:$0xff]
        %v862 = vld [vmem:[#allocation11 + $0x270] sm:$0xff]
        %v863 = vld [vmem:[#allocation11 + $0x278] sm:$0xff]
        %v864 = vld [vmem:[#allocation11 + $0x280] sm:$0xff]
        %v865 = vld [vmem:[#allocation11 + $0x288] sm:$0xff]
        %v866 = vld [vmem:[#allocation11 + $0x290] sm:$0xff]
        %v867 = vld [vmem:[#allocation11 + $0x298] sm:$0xff]
        %v868 = vld [vmem:[#allocation11 + $0x2a0] sm:$0xff]
        %v869 = vld [vmem:[#allocation11 + $0x2a8] sm:$0xff]
        %v870 = vld [vmem:[#allocation11 + $0x2b0] sm:$0xff]
        %v871 = vld [vmem:[#allocation11 + $0x2b8] sm:$0xff]
        %v872 = vld [vmem:[#allocation11 + $0x2c0] sm:$0xff]
        %v873 = vld [vmem:[#allocation11 + $0x2c8] sm:$0xff]
        %v874 = vld [vmem:[#allocation11 + $0x2d0] sm:$0xff]
        %v875 = vld [vmem:[#allocation11 + $0x2d8] sm:$0xff]
        %v876 = vld [vmem:[#allocation11 + $0x2e0] sm:$0xff]
        %v877 = vld [vmem:[#allocation11 + $0x2e8] sm:$0xff]
        %v878 = vld [vmem:[#allocation11 + $0x2f0] sm:$0xff]
        %v879 = vld [vmem:[#allocation11 + $0x2f8] sm:$0xff]
        %v880 = vld [vmem:[%s4] sm:$0x3f]
        %v882 = vlaneseq
        %v883 = vshrl.u32 %v882, 7
        %v884 = vsub.s32 0, %v883
        %v885 = vrot.slane %v880, %v884
        %v886 = vlaneseq
        %v887 = vshrl.u32 %v886, 7
        %v888 = vsub.s32 1, %v887
        %v889 = vrot.slane %v880, %v888
        %v890 = vlaneseq
        %v891 = vshrl.u32 %v890, 7
        %v892 = vsub.s32 2, %v891
        %v893 = vrot.slane %v880, %v892
        %v894 = vlaneseq
        %v895 = vshrl.u32 %v894, 7
        %v896 = vsub.s32 3, %v895
        %v897 = vrot.slane %v880, %v896
        %v898 = vlaneseq
        %v899 = vshrl.u32 %v898, 7
        %v900 = vsub.s32 4, %v899
        %v901 = vrot.slane %v880, %v900
        %v902 = vlaneseq
        %v903 = vshrl.u32 %v902, 7
        %v904 = vsub.s32 5, %v903
        %v905 = vrot.slane %v880, %v904
        %v1008 = vunpack.c.l.b16 %v784
        %v1009 = vunpack.c.h.b16 %v784
        %v1010 = vunpack.c.l.b16 %v785
        %v1011 = vunpack.c.h.b16 %v785
        %v1012 = vunpack.c.l.b16 %v786
        %v1013 = vunpack.c.h.b16 %v786
        %v1014 = vunpack.c.l.b16 %v787
        %v1015 = vunpack.c.h.b16 %v787
        %v1016 = vunpack.c.l.b16 %v788
        %v1017 = vunpack.c.h.b16 %v788
        %v1018 = vunpack.c.l.b16 %v789
        %v1019 = vunpack.c.h.b16 %v789
        %v1020 = vunpack.c.l.b16 %v790
        %v1021 = vunpack.c.h.b16 %v790
        %v1022 = vunpack.c.l.b16 %v791
        %v1023 = vunpack.c.h.b16 %v791
        %v1024 = vunpack.c.l.b16 %v792
        %v1025 = vunpack.c.h.b16 %v792
        %v1026 = vunpack.c.l.b16 %v793
        %v1027 = vunpack.c.h.b16 %v793
        %v1028 = vunpack.c.l.b16 %v794
        %v1029 = vunpack.c.h.b16 %v794
        %v1030 = vunpack.c.l.b16 %v795
        %v1031 = vunpack.c.h.b16 %v795
        %v1032 = vunpack.c.l.b16 %v796
        %v1033 = vunpack.c.h.b16 %v796
        %v1034 = vunpack.c.l.b16 %v797
        %v1035 = vunpack.c.h.b16 %v797
        %v1036 = vunpack.c.l.b16 %v798
        %v1037 = vunpack.c.h.b16 %v798
        %v1038 = vunpack.c.l.b16 %v799
        %v1039 = vunpack.c.h.b16 %v799
        %v1040 = vunpack.c.l.b16 %v800
        %v1041 = vunpack.c.h.b16 %v800
        %v1042 = vunpack.c.l.b16 %v801
        %v1043 = vunpack.c.h.b16 %v801
        %v1044 = vunpack.c.l.b16 %v802
        %v1045 = vunpack.c.h.b16 %v802
        %v1046 = vunpack.c.l.b16 %v803
        %v1047 = vunpack.c.h.b16 %v803
        %v1048 = vunpack.c.l.b16 %v804
        %v1049 = vunpack.c.h.b16 %v804
        %v1050 = vunpack.c.l.b16 %v805
        %v1051 = vunpack.c.h.b16 %v805
        %v1052 = vunpack.c.l.b16 %v806
        %v1053 = vunpack.c.h.b16 %v806
        %v1054 = vunpack.c.l.b16 %v807
        %v1055 = vunpack.c.h.b16 %v807
        %v1056 = vunpack.c.l.b16 %v808
        %v1057 = vunpack.c.h.b16 %v808
        %v1058 = vunpack.c.l.b16 %v809
        %v1059 = vunpack.c.h.b16 %v809
        %v1060 = vunpack.c.l.b16 %v810
        %v1061 = vunpack.c.h.b16 %v810
        %v1062 = vunpack.c.l.b16 %v811
        %v1063 = vunpack.c.h.b16 %v811
        %v1064 = vunpack.c.l.b16 %v812
        %v1065 = vunpack.c.h.b16 %v812
        %v1066 = vunpack.c.l.b16 %v813
        %v1067 = vunpack.c.h.b16 %v813
        %v1068 = vunpack.c.l.b16 %v814
        %v1069 = vunpack.c.h.b16 %v814
        %v1070 = vunpack.c.l.b16 %v815
        %v1071 = vunpack.c.h.b16 %v815
        %v1072 = vunpack.c.l.b16 %v816
        %v1073 = vunpack.c.h.b16 %v816
        %v1074 = vunpack.c.l.b16 %v817
        %v1075 = vunpack.c.h.b16 %v817
        %v1076 = vunpack.c.l.b16 %v818
        %v1077 = vunpack.c.h.b16 %v818
        %v1078 = vunpack.c.l.b16 %v819
        %v1079 = vunpack.c.h.b16 %v819
        %v1080 = vunpack.c.l.b16 %v820
        %v1081 = vunpack.c.h.b16 %v820
        %v1082 = vunpack.c.l.b16 %v821
        %v1083 = vunpack.c.h.b16 %v821
        %v1084 = vunpack.c.l.b16 %v822
        %v1085 = vunpack.c.h.b16 %v822
        %v1086 = vunpack.c.l.b16 %v823
        %v1087 = vunpack.c.h.b16 %v823
        %v1088 = vunpack.c.l.b16 %v824
        %v1089 = vunpack.c.h.b16 %v824
        %v1090 = vunpack.c.l.b16 %v825
        %v1091 = vunpack.c.h.b16 %v825
        %v1092 = vunpack.c.l.b16 %v826
        %v1093 = vunpack.c.h.b16 %v826
        %v1094 = vunpack.c.l.b16 %v827
        %v1095 = vunpack.c.h.b16 %v827
        %v1096 = vunpack.c.l.b16 %v828
        %v1097 = vunpack.c.h.b16 %v828
        %v1098 = vunpack.c.l.b16 %v829
        %v1099 = vunpack.c.h.b16 %v829
        %v1100 = vunpack.c.l.b16 %v830
        %v1101 = vunpack.c.h.b16 %v830
        %v1102 = vunpack.c.l.b16 %v831
        %v1103 = vunpack.c.h.b16 %v831
        %v1104 = vunpack.c.l.b16 %v832
        %v1105 = vunpack.c.h.b16 %v832
        %v1106 = vunpack.c.l.b16 %v833
        %v1107 = vunpack.c.h.b16 %v833
        %v1108 = vunpack.c.l.b16 %v834
        %v1109 = vunpack.c.h.b16 %v834
        %v1110 = vunpack.c.l.b16 %v835
        %v1111 = vunpack.c.h.b16 %v835
        %v1112 = vunpack.c.l.b16 %v836
        %v1113 = vunpack.c.h.b16 %v836
        %v1114 = vunpack.c.l.b16 %v837
        %v1115 = vunpack.c.h.b16 %v837
        %v1116 = vunpack.c.l.b16 %v838
        %v1117 = vunpack.c.h.b16 %v838
        %v1118 = vunpack.c.l.b16 %v839
        %v1119 = vunpack.c.h.b16 %v839
        %v1120 = vunpack.c.l.b16 %v840
        %v1121 = vunpack.c.h.b16 %v840
        %v1122 = vunpack.c.l.b16 %v841
        %v1123 = vunpack.c.h.b16 %v841
        %v1124 = vunpack.c.l.b16 %v842
        %v1125 = vunpack.c.h.b16 %v842
        %v1126 = vunpack.c.l.b16 %v843
        %v1127 = vunpack.c.h.b16 %v843
        %v1128 = vunpack.c.l.b16 %v844
        %v1129 = vunpack.c.h.b16 %v844
        %v1130 = vunpack.c.l.b16 %v845
        %v1131 = vunpack.c.h.b16 %v845
        %v1132 = vunpack.c.l.b16 %v846
        %v1133 = vunpack.c.h.b16 %v846
        %v1134 = vunpack.c.l.b16 %v847
        %v1135 = vunpack.c.h.b16 %v847
        %v1136 = vunpack.c.l.b16 %v848
        %v1137 = vunpack.c.h.b16 %v848
        %v1138 = vunpack.c.l.b16 %v849
        %v1139 = vunpack.c.h.b16 %v849
        %v1140 = vunpack.c.l.b16 %v850
        %v1141 = vunpack.c.h.b16 %v850
        %v1142 = vunpack.c.l.b16 %v851
        %v1143 = vunpack.c.h.b16 %v851
        %v1144 = vunpack.c.l.b16 %v852
        %v1145 = vunpack.c.h.b16 %v852
        %v1146 = vunpack.c.l.b16 %v853
        %v1147 = vunpack.c.h.b16 %v853
        %v1148 = vunpack.c.l.b16 %v854
        %v1149 = vunpack.c.h.b16 %v854
        %v1150 = vunpack.c.l.b16 %v855
        %v1151 = vunpack.c.h.b16 %v855
        %v1152 = vunpack.c.l.b16 %v856
        %v1153 = vunpack.c.h.b16 %v856
        %v1154 = vunpack.c.l.b16 %v857
        %v1155 = vunpack.c.h.b16 %v857
        %v1156 = vunpack.c.l.b16 %v858
        %v1157 = vunpack.c.h.b16 %v858
        %v1158 = vunpack.c.l.b16 %v859
        %v1159 = vunpack.c.h.b16 %v859
        %v1160 = vunpack.c.l.b16 %v860
        %v1161 = vunpack.c.h.b16 %v860
        %v1162 = vunpack.c.l.b16 %v861
        %v1163 = vunpack.c.h.b16 %v861
        %v1164 = vunpack.c.l.b16 %v862
        %v1165 = vunpack.c.h.b16 %v862
        %v1166 = vunpack.c.l.b16 %v863
        %v1167 = vunpack.c.h.b16 %v863
        %v1168 = vunpack.c.l.b16 %v864
        %v1169 = vunpack.c.h.b16 %v864
        %v1170 = vunpack.c.l.b16 %v865
        %v1171 = vunpack.c.h.b16 %v865
        %v1172 = vunpack.c.l.b16 %v866
        %v1173 = vunpack.c.h.b16 %v866
        %v1174 = vunpack.c.l.b16 %v867
        %v1175 = vunpack.c.h.b16 %v867
        %v1176 = vunpack.c.l.b16 %v868
        %v1177 = vunpack.c.h.b16 %v868
        %v1178 = vunpack.c.l.b16 %v869
        %v1179 = vunpack.c.h.b16 %v869
        %v1180 = vunpack.c.l.b16 %v870
        %v1181 = vunpack.c.h.b16 %v870
        %v1182 = vunpack.c.l.b16 %v871
        %v1183 = vunpack.c.h.b16 %v871
        %v1184 = vunpack.c.l.b16 %v872
        %v1185 = vunpack.c.h.b16 %v872
        %v1186 = vunpack.c.l.b16 %v873
        %v1187 = vunpack.c.h.b16 %v873
        %v1188 = vunpack.c.l.b16 %v874
        %v1189 = vunpack.c.h.b16 %v874
        %v1190 = vunpack.c.l.b16 %v875
        %v1191 = vunpack.c.h.b16 %v875
        %v1192 = vunpack.c.l.b16 %v876
        %v1193 = vunpack.c.h.b16 %v876
        %v1194 = vunpack.c.l.b16 %v877
        %v1195 = vunpack.c.h.b16 %v877
        %v1196 = vunpack.c.l.b16 %v878
        %v1197 = vunpack.c.h.b16 %v878
        %v1198 = vunpack.c.l.b16 %v879
        %v1199 = vunpack.c.h.b16 %v879
        %v1200 = vpack.c.b16 %v1014, %v1008
        %v1201 = vpack.c.b16 %v1015, %v1009
        %v1202 = vpack.c.b16 %v1016, %v1010
        %v1203 = vpack.c.b16 %v1017, %v1011
        %v1204 = vpack.c.b16 %v1018, %v1012
        %v1205 = vpack.c.b16 %v1019, %v1013
        %v1206 = vpack.c.b16 %v1026, %v1020
        %v1207 = vpack.c.b16 %v1027, %v1021
        %v1208 = vpack.c.b16 %v1028, %v1022
        %v1209 = vpack.c.b16 %v1029, %v1023
        %v1210 = vpack.c.b16 %v1030, %v1024
        %v1211 = vpack.c.b16 %v1031, %v1025
        %v1212 = vpack.c.b16 %v1038, %v1032
        %v1213 = vpack.c.b16 %v1039, %v1033
        %v1214 = vpack.c.b16 %v1040, %v1034
        %v1215 = vpack.c.b16 %v1041, %v1035
        %v1216 = vpack.c.b16 %v1042, %v1036
        %v1217 = vpack.c.b16 %v1043, %v1037
        %v1218 = vpack.c.b16 %v1050, %v1044
        %v1219 = vpack.c.b16 %v1051, %v1045
        %v1220 = vpack.c.b16 %v1052, %v1046
        %v1221 = vpack.c.b16 %v1053, %v1047
        %v1222 = vpack.c.b16 %v1054, %v1048
        %v1223 = vpack.c.b16 %v1055, %v1049
        %v1224 = vpack.c.b16 %v1062, %v1056
        %v1225 = vpack.c.b16 %v1063, %v1057
        %v1226 = vpack.c.b16 %v1064, %v1058
        %v1227 = vpack.c.b16 %v1065, %v1059
        %v1228 = vpack.c.b16 %v1066, %v1060
        %v1229 = vpack.c.b16 %v1067, %v1061
        %v1230 = vpack.c.b16 %v1074, %v1068
        %v1231 = vpack.c.b16 %v1075, %v1069
        %v1232 = vpack.c.b16 %v1076, %v1070
        %v1233 = vpack.c.b16 %v1077, %v1071
        %v1234 = vpack.c.b16 %v1078, %v1072
        %v1235 = vpack.c.b16 %v1079, %v1073
        %v1236 = vpack.c.b16 %v1086, %v1080
        %v1237 = vpack.c.b16 %v1087, %v1081
        %v1238 = vpack.c.b16 %v1088, %v1082
        %v1239 = vpack.c.b16 %v1089, %v1083
        %v1240 = vpack.c.b16 %v1090, %v1084
        %v1241 = vpack.c.b16 %v1091, %v1085
        %v1242 = vpack.c.b16 %v1098, %v1092
        %v1243 = vpack.c.b16 %v1099, %v1093
        %v1244 = vpack.c.b16 %v1100, %v1094
        %v1245 = vpack.c.b16 %v1101, %v1095
        %v1246 = vpack.c.b16 %v1102, %v1096
        %v1247 = vpack.c.b16 %v1103, %v1097
        %v1248 = vpack.c.b16 %v1110, %v1104
        %v1249 = vpack.c.b16 %v1111, %v1105
        %v1250 = vpack.c.b16 %v1112, %v1106
        %v1251 = vpack.c.b16 %v1113, %v1107
        %v1252 = vpack.c.b16 %v1114, %v1108
        %v1253 = vpack.c.b16 %v1115, %v1109
        %v1254 = vpack.c.b16 %v1122, %v1116
        %v1255 = vpack.c.b16 %v1123, %v1117
        %v1256 = vpack.c.b16 %v1124, %v1118
        %v1257 = vpack.c.b16 %v1125, %v1119
        %v1258 = vpack.c.b16 %v1126, %v1120
        %v1259 = vpack.c.b16 %v1127, %v1121
        %v1260 = vpack.c.b16 %v1134, %v1128
        %v1261 = vpack.c.b16 %v1135, %v1129
        %v1262 = vpack.c.b16 %v1136, %v1130
        %v1263 = vpack.c.b16 %v1137, %v1131
        %v1264 = vpack.c.b16 %v1138, %v1132
        %v1265 = vpack.c.b16 %v1139, %v1133
        %v1266 = vpack.c.b16 %v1146, %v1140
        %v1267 = vpack.c.b16 %v1147, %v1141
        %v1268 = vpack.c.b16 %v1148, %v1142
        %v1269 = vpack.c.b16 %v1149, %v1143
        %v1270 = vpack.c.b16 %v1150, %v1144
        %v1271 = vpack.c.b16 %v1151, %v1145
        %v1272 = vpack.c.b16 %v1158, %v1152
        %v1273 = vpack.c.b16 %v1159, %v1153
        %v1274 = vpack.c.b16 %v1160, %v1154
        %v1275 = vpack.c.b16 %v1161, %v1155
        %v1276 = vpack.c.b16 %v1162, %v1156
        %v1277 = vpack.c.b16 %v1163, %v1157
        %v1278 = vpack.c.b16 %v1170, %v1164
        %v1279 = vpack.c.b16 %v1171, %v1165
        %v1280 = vpack.c.b16 %v1172, %v1166
        %v1281 = vpack.c.b16 %v1173, %v1167
        %v1282 = vpack.c.b16 %v1174, %v1168
        %v1283 = vpack.c.b16 %v1175, %v1169
        %v1284 = vpack.c.b16 %v1182, %v1176
        %v1285 = vpack.c.b16 %v1183, %v1177
        %v1286 = vpack.c.b16 %v1184, %v1178
        %v1287 = vpack.c.b16 %v1185, %v1179
        %v1288 = vpack.c.b16 %v1186, %v1180
        %v1289 = vpack.c.b16 %v1187, %v1181
        %v1290 = vpack.c.b16 %v1194, %v1188
        %v1291 = vpack.c.b16 %v1195, %v1189
        %v1292 = vpack.c.b16 %v1196, %v1190
        %v1293 = vpack.c.b16 %v1197, %v1191
        %v1294 = vpack.c.b16 %v1198, %v1192
        %v1295 = vpack.c.b16 %v1199, %v1193
        %1392 = vmatprep.subr.bf16.mxu0 %v1243
        %1393 = vmatpush1.bf16.msra.mxu0 %v1242
        %1394 = vmatprep.subr.bf16.mxu0 %v1237
        %1395 = vmatpush1.bf16.msra.mxu0 %v1236
        %1396 = vmatprep.subr.bf16.mxu0 %v1231
        %1397 = vmatpush1.bf16.msra.mxu0 %v1230
        %1398 = vmatprep.subr.bf16.mxu0 %v1225
        %1399 = vmatpush1.bf16.msra.mxu0 %v1224
        %1400 = vmatprep.subr.bf16.mxu0 %v1219
        %1401 = vmatpush1.bf16.msra.mxu0 %v1218
        %1402 = vmatprep.subr.bf16.mxu0 %v1213
        %1403 = vmatpush1.bf16.msra.mxu0 %v1212
        %1404 = vmatprep.subr.bf16.mxu0 %v1207
        %1405 = vmatpush1.bf16.msra.mxu0 %v1206
        %1406 = vmatprep.subr.bf16.mxu0 %v1201
        %1407 = vmatpush1.bf16.msra.mxu0 %v1200
        %1408 = vmatprep.subr.bf16.mxu0 %v1291
        %1409 = vmatpush2.bf16.msra.mxu0 %v1290
        %1410 = vmatprep.subr.bf16.mxu0 %v1285
        %1411 = vmatpush2.bf16.msra.mxu0 %v1284
        %1412 = vmatprep.subr.bf16.mxu0 %v1279
        %1413 = vmatpush2.bf16.msra.mxu0 %v1278
        %1414 = vmatprep.subr.bf16.mxu0 %v1273
        %1415 = vmatpush2.bf16.msra.mxu0 %v1272
        %1416 = vmatprep.subr.bf16.mxu0 %v1267
        %1417 = vmatpush2.bf16.msra.mxu0 %v1266
        %1418 = vmatprep.subr.bf16.mxu0 %v1261
        %1419 = vmatpush2.bf16.msra.mxu0 %v1260
        %1420 = vmatprep.subr.bf16.mxu0 %v1255
        %1421 = vmatpush2.bf16.msra.mxu0 %v1254
        %1422 = vmatprep.subr.bf16.mxu0 %v1249
        %1423 = vmatpush2.bf16.msra.mxu0 %v1248
        %1424 = vmatprep.mubr.bf16.mxu0 %v783
        %1425 = vmatmul.mubr.bf16.gmra.mxu0 %v782
        %v1426 = vpop.f32.mrf.mxu0
        %v1427 = vadd.f32 %v885, %v1426
        %v1428 = vpop.f32.mrf.mxu0
        %v1429 = vadd.f32 %v889, %v1428
        %v1430 = vpop.f32.mrf.mxu0
        %v1431 = vadd.f32 %v885, %v1430
        %v1432 = vpop.f32.mrf.mxu0
        %v1433 = vadd.f32 %v889, %v1432
        %1434 = vdwg.mxu0
        %1435 = vmatprep.subr.bf16.mxu0 %v1245
        %1436 = vmatpush1.bf16.msra.mxu0 %v1244
        %1437 = vmatprep.subr.bf16.mxu0 %v1239
        %1438 = vmatpush1.bf16.msra.mxu0 %v1238
        %1439 = vmatprep.subr.bf16.mxu0 %v1233
        %1440 = vmatpush1.bf16.msra.mxu0 %v1232
        %1441 = vmatprep.subr.bf16.mxu0 %v1227
        %1442 = vmatpush1.bf16.msra.mxu0 %v1226
        %1443 = vmatprep.subr.bf16.mxu0 %v1221
        %1444 = vmatpush1.bf16.msra.mxu0 %v1220
        %1445 = vmatprep.subr.bf16.mxu0 %v1215
        %1446 = vmatpush1.bf16.msra.mxu0 %v1214
        %1447 = vmatprep.subr.bf16.mxu0 %v1209
        %1448 = vmatpush1.bf16.msra.mxu0 %v1208
        %1449 = vmatprep.subr.bf16.mxu0 %v1203
        %1450 = vmatpush1.bf16.msra.mxu0 %v1202
        %1451 = vmatprep.subr.bf16.mxu0 %v1293
        %1452 = vmatpush2.bf16.msra.mxu0 %v1292
        %1453 = vmatprep.subr.bf16.mxu0 %v1287
        %1454 = vmatpush2.bf16.msra.mxu0 %v1286
        %1455 = vmatprep.subr.bf16.mxu0 %v1281
        %1456 = vmatpush2.bf16.msra.mxu0 %v1280
        %1457 = vmatprep.subr.bf16.mxu0 %v1275
        %1458 = vmatpush2.bf16.msra.mxu0 %v1274
        %1459 = vmatprep.subr.bf16.mxu0 %v1269
        %1460 = vmatpush2.bf16.msra.mxu0 %v1268
        %1461 = vmatprep.subr.bf16.mxu0 %v1263
        %1462 = vmatpush2.bf16.msra.mxu0 %v1262
        %1463 = vmatprep.subr.bf16.mxu0 %v1257
        %1464 = vmatpush2.bf16.msra.mxu0 %v1256
        %1465 = vmatprep.subr.bf16.mxu0 %v1251
        %1466 = vmatpush2.bf16.msra.mxu0 %v1250
        %1467 = vmatprep.mubr.bf16.mxu0 %v783
        %1468 = vmatmul.mubr.bf16.gmra.mxu0 %v782
        %v1469 = vpop.f32.mrf.mxu0
        %v1470 = vadd.f32 %v893, %v1469
        %v1471 = vpop.f32.mrf.mxu0
        %v1472 = vadd.f32 %v897, %v1471
        %v1473 = vpop.f32.mrf.mxu0
        %v1474 = vadd.f32 %v893, %v1473
        %v1475 = vpop.f32.mrf.mxu0
        %v1476 = vadd.f32 %v897, %v1475
        %1477 = vdwg.mxu0
        %1478 = vmatprep.subr.bf16.mxu0 %v1247
        %1479 = vmatpush1.bf16.msra.mxu0 %v1246
        %1480 = vmatprep.subr.bf16.mxu0 %v1241
        %1481 = vmatpush1.bf16.msra.mxu0 %v1240
        %1482 = vmatprep.subr.bf16.mxu0 %v1235
        %1483 = vmatpush1.bf16.msra.mxu0 %v1234
        %1484 = vmatprep.subr.bf16.mxu0 %v1229
        %1485 = vmatpush1.bf16.msra.mxu0 %v1228
        %1486 = vmatprep.subr.bf16.mxu0 %v1223
        %1487 = vmatpush1.bf16.msra.mxu0 %v1222
        %1488 = vmatprep.subr.bf16.mxu0 %v1217
        %1489 = vmatpush1.bf16.msra.mxu0 %v1216
        %1490 = vmatprep.subr.bf16.mxu0 %v1211
        %1491 = vmatpush1.bf16.msra.mxu0 %v1210
        %1492 = vmatprep.subr.bf16.mxu0 %v1205
        %1493 = vmatpush1.bf16.msra.mxu0 %v1204
        %1494 = vmatprep.subr.bf16.mxu0 %v1295
        %1495 = vmatpush2.bf16.msra.mxu0 %v1294
        %1496 = vmatprep.subr.bf16.mxu0 %v1289
        %1497 = vmatpush2.bf16.msra.mxu0 %v1288
        %1498 = vmatprep.subr.bf16.mxu0 %v1283
        %1499 = vmatpush2.bf16.msra.mxu0 %v1282
        %1500 = vmatprep.subr.bf16.mxu0 %v1277
        %1501 = vmatpush2.bf16.msra.mxu0 %v1276
        %1502 = vmatprep.subr.bf16.mxu0 %v1271
        %1503 = vmatpush2.bf16.msra.mxu0 %v1270
        %1504 = vmatprep.subr.bf16.mxu0 %v1265
        %1505 = vmatpush2.bf16.msra.mxu0 %v1264
        %1506 = vmatprep.subr.bf16.mxu0 %v1259
        %1507 = vmatpush2.bf16.msra.mxu0 %v1258
        %1508 = vmatprep.subr.bf16.mxu0 %v1253
        %1509 = vmatpush2.bf16.msra.mxu0 %v1252
        %1510 = vmatprep.mubr.bf16.mxu0 %v783
        %1511 = vmatmul.mubr.bf16.gmra.mxu0 %v782
        %v1512 = vpop.f32.mrf.mxu0
        %v1513 = vadd.f32 %v901, %v1512
        %v1514 = vpop.f32.mrf.mxu0
        %v1515 = vadd.f32 %v905, %v1514
        %v1516 = vpop.f32.mrf.mxu0
        %v1517 = vadd.f32 %v901, %v1516
        %v1518 = vpop.f32.mrf.mxu0
        %v1519 = vadd.f32 %v905, %v1518
        %1520 = vdwg.mxu0
        %v1521 = vpack.c.bf16 %v1431, %v1427
        %v1522 = vpack.c.bf16 %v1433, %v1429
        %v1523 = vpack.c.bf16 %v1474, %v1470
        %v1524 = vpack.c.bf16 %v1476, %v1472
        %v1525 = vpack.c.bf16 %v1517, %v1513
        %v1526 = vpack.c.bf16 %v1519, %v1515
        %1527 = vmatprep.subr.bf16.mxu0 0
        %1528 = vmatpush1.bf16.xpose.msra.mxu0 0
        %1529 = vmatprep.subr.bf16.mxu0 0
        %1530 = vmatpush1.bf16.xpose.msra.mxu0 0
        %1531 = vmatprep.subr.bf16.mxu0 0
        %1532 = vmatpush1.bf16.xpose.msra.mxu0 0
        %1533 = vmatprep.subr.bf16.mxu0 0
        %1534 = vmatpush1.bf16.xpose.msra.mxu0 0
        %1535 = vmatprep.subr.bf16.mxu0 0
        %1536 = vmatpush1.bf16.xpose.msra.mxu0 0
        %1537 = vmatprep.subr.bf16.mxu0 0
        %1538 = vmatpush1.bf16.xpose.msra.mxu0 0
        %1539 = vmatprep.subr.bf16.mxu0 0
        %1540 = vmatpush1.bf16.xpose.msra.mxu0 0
        %1541 = vmatprep.subr.bf16.mxu0 0
        %1542 = vmatpush1.bf16.xpose.msra.mxu0 %v1523
        %1543 = vmatprep.subr.bf16.mxu0 0
        %1544 = vmatpush2.bf16.xpose.msra.mxu0 0
        %1545 = vmatprep.subr.bf16.mxu0 0
        %1546 = vmatpush2.bf16.xpose.msra.mxu0 0
        %1547 = vmatprep.subr.bf16.mxu0 0
        %1548 = vmatpush2.bf16.xpose.msra.mxu0 0
        %1549 = vmatprep.subr.bf16.mxu0 0
        %1550 = vmatpush2.bf16.xpose.msra.mxu0 0
        %1551 = vmatprep.subr.bf16.mxu0 0
        %1552 = vmatpush2.bf16.xpose.msra.mxu0 0
        %1553 = vmatprep.subr.bf16.mxu0 0
        %1554 = vmatpush2.bf16.xpose.msra.mxu0 0
        %1555 = vmatprep.subr.bf16.mxu0 0
        %1556 = vmatpush2.bf16.xpose.msra.mxu0 0
        %1557 = vmatprep.subr.bf16.mxu0 0
        %1558 = vmatpush2.bf16.xpose.msra.mxu0 0
        %1559 = vmatprep.mubr.bf16.mxu0 0
        %1560 = vmatmul.mubr.bf16.gmra.mxu0 %v1521
        %v1561 = vpop.f32.mrf.mxu0
        %v1562 = vadd.f32 0.0, %v1561
        %v1563 = vpop.f32.mrf.mxu0
        %v1564 = vpop.f32.mrf.mxu0
        %v1565 = vadd.f32 0.0, %v1564
        %v1566 = vpop.f32.mrf.mxu0
        %1567 = vdwg.mxu0
        %vm1568 = vcmask 130048
        %v1569 = vsel %vm1568, %v1562, -inf
        %1570 = vmax.xlane.f32.xlu0 %v1569
        %v1571 = vpop.xlane.xlu0 %1570
        %v1572 = vsel %vm1568, %v1565, -inf
        %1573 = vmax.xlane.f32.xlu0 %v1572
        %v1574 = vpop.xlane.xlu0 %1573
        %v1575 = vsub.f32 %v1562, %v1571
        %v1576 = vsub.f32 %v1565, %v1574
        %v1577 = vmul.f32 %v1575, 1.442695
        %v1578 = vpow.pop %v1577
        %v1579 = vmul.f32 %v1576, 1.442695
        %v1580 = vpow.pop %v1579
        %v1581 = vsel %vm1568, %v1578, 0.0
        %1582 = vadd.xlane.f32.xlu0 %v1581
        %v1583 = vpop.xlane.xlu0 %1582
        %v1584 = vsel %vm1568, %v1580, 0.0
        %1585 = vadd.xlane.f32.xlu0 %v1584
        %v1586 = vpop.xlane.xlu0 %1585
        %v1587 = vrcp.pop %v1583
        %v1588 = vrcp.pop %v1586
        %v1589 = vmul.f32 %v1578, %v1587
        %v1590 = vmul.f32 %v1580, %v1588
        %v1591 = vpack.c.bf16 %v1590, %v1589
        %v1593 = vsel %vm1568, %v1591, 0
        %1595 = vmatprep.subr.bf16.mxu0 0
        %1596 = vmatpush1.bf16.msra.mxu0 0
        %1597 = vmatprep.subr.bf16.mxu0 0
        %1598 = vmatpush1.bf16.msra.mxu0 0
        %1599 = vmatprep.subr.bf16.mxu0 0
        %1600 = vmatpush1.bf16.msra.mxu0 0
        %1601 = vmatprep.subr.bf16.mxu0 0
        %1602 = vmatpush1.bf16.msra.mxu0 0
        %1603 = vmatprep.subr.bf16.mxu0 0
        %1604 = vmatpush1.bf16.msra.mxu0 0
        %1605 = vmatprep.subr.bf16.mxu0 0
        %1606 = vmatpush1.bf16.msra.mxu0 0
        %1607 = vmatprep.subr.bf16.mxu0 0
        %1608 = vmatpush1.bf16.msra.mxu0 0
        %1609 = vmatprep.subr.bf16.mxu0 0
        %1610 = vmatpush1.bf16.msra.mxu0 %v1525
        %1611 = vmatprep.subr.bf16.mxu0 0
        %1612 = vmatpush2.bf16.msra.mxu0 0
        %1613 = vmatprep.subr.bf16.mxu0 0
        %1614 = vmatpush2.bf16.msra.mxu0 0
        %1615 = vmatprep.subr.bf16.mxu0 0
        %1616 = vmatpush2.bf16.msra.mxu0 0
        %1617 = vmatprep.subr.bf16.mxu0 0
        %1618 = vmatpush2.bf16.msra.mxu0 0
        %1619 = vmatprep.subr.bf16.mxu0 0
        %1620 = vmatpush2.bf16.msra.mxu0 0
        %1621 = vmatprep.subr.bf16.mxu0 0
        %1622 = vmatpush2.bf16.msra.mxu0 0
        %1623 = vmatprep.subr.bf16.mxu0 0
        %1624 = vmatpush2.bf16.msra.mxu0 0
        %1625 = vmatprep.subr.bf16.mxu0 0
        %1626 = vmatpush2.bf16.msra.mxu0 0
        %1627 = vmatprep.mubr.bf16.mxu0 0
        %1628 = vmatmul.mubr.bf16.gmra.mxu0 %v1593
        %v1629 = vpop.f32.mrf.mxu0
        %v1630 = vadd.f32 0.0, %v1629
        %v1631 = vpop.f32.mrf.mxu0
        %v1632 = vpop.f32.mrf.mxu0
        %v1633 = vadd.f32 0.0, %v1632
        %v1634 = vpop.f32.mrf.mxu0
        %1635 = vdwg.mxu0
        %v1636 = vpack.c.bf16 %v1633, %v1630
        %v1638 = vunpack.c.l.b16 %v1636
        %v1639 = vunpack.c.h.b16 %v1636
        %v1640 = vpack.c.b16 %v1638, %v1638
        %v1641 = vpack.c.b16 %v1639, %v1639
        %1644 = vst [vmem:[#allocation2] sm:$0xf] %v1640
        %1645 = vst [vmem:[#allocation2 + $0x8] sm:$0xf] %v1641
        %1646 = vmatprep.subr.bf16.mxu0 0
        %1647 = vmatpush1.bf16.xpose.msra.mxu0 0
        %1648 = vmatprep.subr.bf16.mxu0 0
        %1649 = vmatpush1.bf16.xpose.msra.mxu0 0
        %1650 = vmatprep.subr.bf16.mxu0 0
        %1651 = vmatpush1.bf16.xpose.msra.mxu0 0
        %1652 = vmatprep.subr.bf16.mxu0 0
        %1653 = vmatpush1.bf16.xpose.msra.mxu0 0
        %1654 = vmatprep.subr.bf16.mxu0 0
        %1655 = vmatpush1.bf16.xpose.msra.mxu0 0
        %1656 = vmatprep.subr.bf16.mxu0 0
        %1657 = vmatpush1.bf16.xpose.msra.mxu0 0
        %1658 = vmatprep.subr.bf16.mxu0 0
        %1659 = vmatpush1.bf16.xpose.msra.mxu0 0
        %1660 = vmatprep.subr.bf16.mxu0 0
        %1661 = vmatpush1.bf16.xpose.msra.mxu0 %v1524
        %1662 = vmatprep.subr.bf16.mxu0 0
        %1663 = vmatpush2.bf16.xpose.msra.mxu0 0
        %1664 = vmatprep.subr.bf16.mxu0 0
        %1665 = vmatpush2.bf16.xpose.msra.mxu0 0
        %1666 = vmatprep.subr.bf16.mxu0 0
        %1667 = vmatpush2.bf16.xpose.msra.mxu0 0
        %1668 = vmatprep.subr.bf16.mxu0 0
        %1669 = vmatpush2.bf16.xpose.msra.mxu0 0
        %1670 = vmatprep.subr.bf16.mxu0 0
        %1671 = vmatpush2.bf16.xpose.msra.mxu0 0
        %1672 = vmatprep.subr.bf16.mxu0 0
        %1673 = vmatpush2.bf16.xpose.msra.mxu0 0
        %1674 = vmatprep.subr.bf16.mxu0 0
        %1675 = vmatpush2.bf16.xpose.msra.mxu0 0
        %1676 = vmatprep.subr.bf16.mxu0 0
        %1677 = vmatpush2.bf16.xpose.msra.mxu0 0
        %1678 = vmatprep.mubr.bf16.mxu0 0
        %1679 = vmatmul.mubr.bf16.gmra.mxu0 %v1522
        %v1680 = vpop.f32.mrf.mxu0
        %v1681 = vadd.f32 0.0, %v1680
        %v1682 = vpop.f32.mrf.mxu0
        %v1683 = vpop.f32.mrf.mxu0
        %v1684 = vadd.f32 0.0, %v1683
        %v1685 = vpop.f32.mrf.mxu0
        %1686 = vdwg.mxu0
        %v1687 = vsel %vm1568, %v1681, -inf
        %1688 = vmax.xlane.f32.xlu0 %v1687
        %v1689 = vpop.xlane.xlu0 %1688
        %v1690 = vsel %vm1568, %v1684, -inf
        %1691 = vmax.xlane.f32.xlu0 %v1690
        %v1692 = vpop.xlane.xlu0 %1691
        %v1693 = vsub.f32 %v1681, %v1689
        %v1694 = vsub.f32 %v1684, %v1692
        %v1695 = vmul.f32 %v1693, 1.442695
        %v1696 = vpow.pop %v1695
        %v1697 = vmul.f32 %v1694, 1.442695
        %v1698 = vpow.pop %v1697
        %v1699 = vsel %vm1568, %v1696, 0.0
        %1700 = vadd.xlane.f32.xlu0 %v1699
        %v1701 = vpop.xlane.xlu0 %1700
        %v1702 = vsel %vm1568, %v1698, 0.0
        %1703 = vadd.xlane.f32.xlu0 %v1702
        %v1704 = vpop.xlane.xlu0 %1703
        %v1705 = vrcp.pop %v1701
        %v1706 = vrcp.pop %v1704
        %v1707 = vmul.f32 %v1696, %v1705
        %v1708 = vmul.f32 %v1698, %v1706
        %v1709 = vpack.c.bf16 %v1708, %v1707
        %v1711 = vsel %vm1568, %v1709, 0
        %1713 = vmatprep.subr.bf16.mxu0 0
        %1714 = vmatpush1.bf16.msra.mxu0 0
        %1715 = vmatprep.subr.bf16.mxu0 0
        %1716 = vmatpush1.bf16.msra.mxu0 0
        %1717 = vmatprep.subr.bf16.mxu0 0
        %1718 = vmatpush1.bf16.msra.mxu0 0
        %1719 = vmatprep.subr.bf16.mxu0 0
        %1720 = vmatpush1.bf16.msra.mxu0 0
        %1721 = vmatprep.subr.bf16.mxu0 0
        %1722 = vmatpush1.bf16.msra.mxu0 0
        %1723 = vmatprep.subr.bf16.mxu0 0
        %1724 = vmatpush1.bf16.msra.mxu0 0
        %1725 = vmatprep.subr.bf16.mxu0 0
        %1726 = vmatpush1.bf16.msra.mxu0 0
        %1727 = vmatprep.subr.bf16.mxu0 0
        %1728 = vmatpush1.bf16.msra.mxu0 %v1526
        %1729 = vmatprep.subr.bf16.mxu0 0
        %1730 = vmatpush2.bf16.msra.mxu0 0
        %1731 = vmatprep.subr.bf16.mxu0 0
        %1732 = vmatpush2.bf16.msra.mxu0 0
        %1733 = vmatprep.subr.bf16.mxu0 0
        %1734 = vmatpush2.bf16.msra.mxu0 0
        %1735 = vmatprep.subr.bf16.mxu0 0
        %1736 = vmatpush2.bf16.msra.mxu0 0
        %1737 = vmatprep.subr.bf16.mxu0 0
        %1738 = vmatpush2.bf16.msra.mxu0 0
        %1739 = vmatprep.subr.bf16.mxu0 0
        %1740 = vmatpush2.bf16.msra.mxu0 0
        %1741 = vmatprep.subr.bf16.mxu0 0
        %1742 = vmatpush2.bf16.msra.mxu0 0
        %1743 = vmatprep.subr.bf16.mxu0 0
        %1744 = vmatpush2.bf16.msra.mxu0 0
        %1745 = vmatprep.mubr.bf16.mxu0 0
        %1746 = vmatmul.mubr.bf16.gmra.mxu0 %v1711
        %v1747 = vpop.f32.mrf.mxu0
        %v1748 = vadd.f32 0.0, %v1747
        %v1749 = vpop.f32.mrf.mxu0
        %v1750 = vpop.f32.mrf.mxu0
        %v1751 = vadd.f32 0.0, %v1750
        %v1752 = vpop.f32.mrf.mxu0
        %1753 = vdwg.mxu0
        %v1754 = vpack.c.bf16 %v1751, %v1748
        %v1756 = vunpack.c.l.b16 %v1754
        %v1757 = vunpack.c.h.b16 %v1754
        %v1758 = vpack.c.b16 %v1756, %v1756
        %v1759 = vpack.c.b16 %v1757, %v1757
        %1762 = vst [vmem:[#allocation2 + $0x4] sm:$0xf] %v1758
        %1763 = vst [vmem:[#allocation2 + $0xc] sm:$0xf] %v1759
        %v1764 = vld [vmem:[#allocation2] sm:$0xff]
        %v1765 = vld [vmem:[#allocation2 + $0x8] sm:$0xff]
        %v1766 = vld [vmem:[#allocation13] sm:$0xff]
        %v1767 = vld [vmem:[#allocation13 + $0x8] sm:$0xff]
        %v1768 = vld [vmem:[#allocation13 + $0x10] sm:$0xff]
        %v1769 = vld [vmem:[#allocation13 + $0x18] sm:$0xff]
        %v1770 = vld [vmem:[#allocation13 + $0x20] sm:$0xff]
        %v1771 = vld [vmem:[#allocation13 + $0x28] sm:$0xff]
        %v1772 = vld [vmem:[#allocation13 + $0x30] sm:$0xff]
        %v1773 = vld [vmem:[#allocation13 + $0x38] sm:$0xff]
        %v1774 = vld [vmem:[#allocation13 + $0x40] sm:$0xff]
        %v1775 = vld [vmem:[#allocation13 + $0x48] sm:$0xff]
        %v1776 = vld [vmem:[#allocation13 + $0x50] sm:$0xff]
        %v1777 = vld [vmem:[#allocation13 + $0x58] sm:$0xff]
        %v1778 = vld [vmem:[#allocation13 + $0x60] sm:$0xff]
        %v1779 = vld [vmem:[#allocation13 + $0x68] sm:$0xff]
        %v1780 = vld [vmem:[#allocation13 + $0x70] sm:$0xff]
        %v1781 = vld [vmem:[#allocation13 + $0x78] sm:$0xff]
        %v1782 = vld [vmem:[#allocation13 + $0x80] sm:$0xff]
        %v1783 = vld [vmem:[#allocation13 + $0x88] sm:$0xff]
        %v1784 = vld [vmem:[#allocation13 + $0x90] sm:$0xff]
        %v1785 = vld [vmem:[#allocation13 + $0x98] sm:$0xff]
        %v1786 = vld [vmem:[#allocation13 + $0xa0] sm:$0xff]
        %v1787 = vld [vmem:[#allocation13 + $0xa8] sm:$0xff]
        %v1788 = vld [vmem:[#allocation13 + $0xb0] sm:$0xff]
        %v1789 = vld [vmem:[#allocation13 + $0xb8] sm:$0xff]
        %v1790 = vld [vmem:[#allocation13 + $0xc0] sm:$0xff]
        %v1791 = vld [vmem:[#allocation13 + $0xc8] sm:$0xff]
        %v1792 = vld [vmem:[#allocation13 + $0xd0] sm:$0xff]
        %v1793 = vld [vmem:[#allocation13 + $0xd8] sm:$0xff]
        %v1794 = vld [vmem:[#allocation13 + $0xe0] sm:$0xff]
        %v1795 = vld [vmem:[#allocation13 + $0xe8] sm:$0xff]
        %v1796 = vld [vmem:[#allocation13 + $0xf0] sm:$0xff]
        %v1797 = vld [vmem:[#allocation13 + $0xf8] sm:$0xff]
        %v1798 = vld [vmem:[%s6] sm:$0x3]
        %v1800 = vlaneseq
        %v1801 = vshrl.u32 %v1800, 7
        %v1802 = vsub.s32 0, %v1801
        %v1803 = vrot.slane %v1798, %v1802
        %v1804 = vlaneseq
        %v1805 = vshrl.u32 %v1804, 7
        %v1806 = vsub.s32 1, %v1805
        %v1807 = vrot.slane %v1798, %v1806
        %v1812 = vunpack.c.l.b16 %v1764
        %v1813 = vunpack.c.h.b16 %v1764
        %v1814 = vunpack.c.l.b16 %v1765
        %v1815 = vunpack.c.h.b16 %v1765
        %v1816 = vpack.c.b16 %v1814, %v1812
        %v1817 = vpack.c.b16 %v1815, %v1813
        %v1852 = vunpack.c.l.b16 %v1766
        %v1853 = vunpack.c.h.b16 %v1766
        %v1854 = vunpack.c.l.b16 %v1767
        %v1855 = vunpack.c.h.b16 %v1767
        %v1856 = vunpack.c.l.b16 %v1768
        %v1857 = vunpack.c.h.b16 %v1768
        %v1858 = vunpack.c.l.b16 %v1769
        %v1859 = vunpack.c.h.b16 %v1769
        %v1860 = vunpack.c.l.b16 %v1770
        %v1861 = vunpack.c.h.b16 %v1770
        %v1862 = vunpack.c.l.b16 %v1771
        %v1863 = vunpack.c.h.b16 %v1771
        %v1864 = vunpack.c.l.b16 %v1772
        %v1865 = vunpack.c.h.b16 %v1772
        %v1866 = vunpack.c.l.b16 %v1773
        %v1867 = vunpack.c.h.b16 %v1773
        %v1868 = vunpack.c.l.b16 %v1774
        %v1869 = vunpack.c.h.b16 %v1774
        %v1870 = vunpack.c.l.b16 %v1775
        %v1871 = vunpack.c.h.b16 %v1775
        %v1872 = vunpack.c.l.b16 %v1776
        %v1873 = vunpack.c.h.b16 %v1776
        %v1874 = vunpack.c.l.b16 %v1777
        %v1875 = vunpack.c.h.b16 %v1777
        %v1876 = vunpack.c.l.b16 %v1778
        %v1877 = vunpack.c.h.b16 %v1778
        %v1878 = vunpack.c.l.b16 %v1779
        %v1879 = vunpack.c.h.b16 %v1779
        %v1880 = vunpack.c.l.b16 %v1780
        %v1881 = vunpack.c.h.b16 %v1780
        %v1882 = vunpack.c.l.b16 %v1781
        %v1883 = vunpack.c.h.b16 %v1781
        %v1884 = vunpack.c.l.b16 %v1782
        %v1885 = vunpack.c.h.b16 %v1782
        %v1886 = vunpack.c.l.b16 %v1783
        %v1887 = vunpack.c.h.b16 %v1783
        %v1888 = vunpack.c.l.b16 %v1784
        %v1889 = vunpack.c.h.b16 %v1784
        %v1890 = vunpack.c.l.b16 %v1785
        %v1891 = vunpack.c.h.b16 %v1785
        %v1892 = vunpack.c.l.b16 %v1786
        %v1893 = vunpack.c.h.b16 %v1786
        %v1894 = vunpack.c.l.b16 %v1787
        %v1895 = vunpack.c.h.b16 %v1787
        %v1896 = vunpack.c.l.b16 %v1788
        %v1897 = vunpack.c.h.b16 %v1788
        %v1898 = vunpack.c.l.b16 %v1789
        %v1899 = vunpack.c.h.b16 %v1789
        %v1900 = vunpack.c.l.b16 %v1790
        %v1901 = vunpack.c.h.b16 %v1790
        %v1902 = vunpack.c.l.b16 %v1791
        %v1903 = vunpack.c.h.b16 %v1791
        %v1904 = vunpack.c.l.b16 %v1792
        %v1905 = vunpack.c.h.b16 %v1792
        %v1906 = vunpack.c.l.b16 %v1793
        %v1907 = vunpack.c.h.b16 %v1793
        %v1908 = vunpack.c.l.b16 %v1794
        %v1909 = vunpack.c.h.b16 %v1794
        %v1910 = vunpack.c.l.b16 %v1795
        %v1911 = vunpack.c.h.b16 %v1795
        %v1912 = vunpack.c.l.b16 %v1796
        %v1913 = vunpack.c.h.b16 %v1796
        %v1914 = vunpack.c.l.b16 %v1797
        %v1915 = vunpack.c.h.b16 %v1797
        %v1916 = vpack.c.b16 %v1854, %v1852
        %v1917 = vpack.c.b16 %v1855, %v1853
        %v1918 = vpack.c.b16 %v1858, %v1856
        %v1919 = vpack.c.b16 %v1859, %v1857
        %v1920 = vpack.c.b16 %v1862, %v1860
        %v1921 = vpack.c.b16 %v1863, %v1861
        %v1922 = vpack.c.b16 %v1866, %v1864
        %v1923 = vpack.c.b16 %v1867, %v1865
        %v1924 = vpack.c.b16 %v1870, %v1868
        %v1925 = vpack.c.b16 %v1871, %v1869
        %v1926 = vpack.c.b16 %v1874, %v1872
        %v1927 = vpack.c.b16 %v1875, %v1873
        %v1928 = vpack.c.b16 %v1878, %v1876
        %v1929 = vpack.c.b16 %v1879, %v1877
        %v1930 = vpack.c.b16 %v1882, %v1880
        %v1931 = vpack.c.b16 %v1883, %v1881
        %v1932 = vpack.c.b16 %v1886, %v1884
        %v1933 = vpack.c.b16 %v1887, %v1885
        %v1934 = vpack.c.b16 %v1890, %v1888
        %v1935 = vpack.c.b16 %v1891, %v1889
        %v1936 = vpack.c.b16 %v1894, %v1892
        %v1937 = vpack.c.b16 %v1895, %v1893
        %v1938 = vpack.c.b16 %v1898, %v1896
        %v1939 = vpack.c.b16 %v1899, %v1897
        %v1940 = vpack.c.b16 %v1902, %v1900
        %v1941 = vpack.c.b16 %v1903, %v1901
        %v1942 = vpack.c.b16 %v1906, %v1904
        %v1943 = vpack.c.b16 %v1907, %v1905
        %v1944 = vpack.c.b16 %v1910, %v1908
        %v1945 = vpack.c.b16 %v1911, %v1909
        %v1946 = vpack.c.b16 %v1914, %v1912
        %v1947 = vpack.c.b16 %v1915, %v1913
        %1980 = vmatprep.subr.bf16.mxu0 %v1931
        %1981 = vmatpush1.bf16.msra.mxu0 %v1930
        %1982 = vmatprep.subr.bf16.mxu0 %v1929
        %1983 = vmatpush1.bf16.msra.mxu0 %v1928
        %1984 = vmatprep.subr.bf16.mxu0 %v1927
        %1985 = vmatpush1.bf16.msra.mxu0 %v1926
        %1986 = vmatprep.subr.bf16.mxu0 %v1925
        %1987 = vmatpush1.bf16.msra.mxu0 %v1924
        %1988 = vmatprep.subr.bf16.mxu0 %v1923
        %1989 = vmatpush1.bf16.msra.mxu0 %v1922
        %1990 = vmatprep.subr.bf16.mxu0 %v1921
        %1991 = vmatpush1.bf16.msra.mxu0 %v1920
        %1992 = vmatprep.subr.bf16.mxu0 %v1919
        %1993 = vmatpush1.bf16.msra.mxu0 %v1918
        %1994 = vmatprep.subr.bf16.mxu0 %v1917
        %1995 = vmatpush1.bf16.msra.mxu0 %v1916
        %1996 = vmatprep.subr.bf16.mxu0 %v1947
        %1997 = vmatpush2.bf16.msra.mxu0 %v1946
        %1998 = vmatprep.subr.bf16.mxu0 %v1945
        %1999 = vmatpush2.bf16.msra.mxu0 %v1944
        %2000 = vmatprep.subr.bf16.mxu0 %v1943
        %2001 = vmatpush2.bf16.msra.mxu0 %v1942
        %2002 = vmatprep.subr.bf16.mxu0 %v1941
        %2003 = vmatpush2.bf16.msra.mxu0 %v1940
        %2004 = vmatprep.subr.bf16.mxu0 %v1939
        %2005 = vmatpush2.bf16.msra.mxu0 %v1938
        %2006 = vmatprep.subr.bf16.mxu0 %v1937
        %2007 = vmatpush2.bf16.msra.mxu0 %v1936
        %2008 = vmatprep.subr.bf16.mxu0 %v1935
        %2009 = vmatpush2.bf16.msra.mxu0 %v1934
        %2010 = vmatprep.subr.bf16.mxu0 %v1933
        %2011 = vmatpush2.bf16.msra.mxu0 %v1932
        %2012 = vmatprep.mubr.bf16.mxu0 %v1817
        %2013 = vmatmul.mubr.bf16.gmra.mxu0 %v1816
        %v2014 = vpop.f32.mrf.mxu0
        %v2015 = vadd.f32 %v1803, %v2014
        %v2016 = vpop.f32.mrf.mxu0
        %v2017 = vadd.f32 %v1807, %v2016
        %v2018 = vpop.f32.mrf.mxu0
        %v2019 = vadd.f32 %v1803, %v2018
        %v2020 = vpop.f32.mrf.mxu0
        %v2021 = vadd.f32 %v1807, %v2020
        %2022 = vdwg.mxu0
        %v2023 = vmax.f32 %v2015, 0.0
        %v2024 = vmax.f32 %v2017, 0.0
        %v2025 = vmax.f32 %v2019, 0.0
        %v2026 = vmax.f32 %v2021, 0.0
        %v2027 = vld [vmem:[#allocation3] sm:$0x1]
        %s2028 = vtos %v2027
        %v2029 = vpack.c.bf16 %v715, %v713
        %v2030 = vpack.c.bf16 %v716, %v714
        %v2031 = vpack.c.bf16 %v2025, %v2023
        %v2032 = vpack.c.bf16 %v2026, %v2024
        %v2033 = vld [vmem:[#allocation17] sm:$0xff]
        %v2034 = vld [vmem:[#allocation17 + $0x8] sm:$0xff]
        %v2035 = vld [vmem:[#allocation17 + $0x10] sm:$0xff]
        %v2036 = vld [vmem:[#allocation17 + $0x18] sm:$0xff]
        %v2037 = vld [vmem:[#allocation17 + $0x20] sm:$0xff]
        %v2038 = vld [vmem:[#allocation17 + $0x28] sm:$0xff]
        %v2039 = vld [vmem:[#allocation17 + $0x30] sm:$0xff]
        %v2040 = vld [vmem:[#allocation17 + $0x38] sm:$0xff]
        %v2041 = vld [vmem:[#allocation17 + $0x40] sm:$0xff]
        %v2042 = vld [vmem:[#allocation17 + $0x48] sm:$0xff]
        %v2043 = vld [vmem:[#allocation17 + $0x50] sm:$0xff]
        %v2044 = vld [vmem:[#allocation17 + $0x58] sm:$0xff]
        %v2045 = vld [vmem:[#allocation17 + $0x60] sm:$0xff]
        %v2046 = vld [vmem:[#allocation17 + $0x68] sm:$0xff]
        %v2047 = vld [vmem:[#allocation17 + $0x70] sm:$0xff]
        %v2048 = vld [vmem:[#allocation17 + $0x78] sm:$0xff]
        %v2049 = vld [vmem:[#allocation17 + $0x80] sm:$0xff]
        %v2050 = vld [vmem:[#allocation17 + $0x88] sm:$0xff]
        %v2051 = vld [vmem:[#allocation17 + $0x90] sm:$0xff]
        %v2052 = vld [vmem:[#allocation17 + $0x98] sm:$0xff]
        %v2053 = vld [vmem:[#allocation17 + $0xa0] sm:$0xff]
        %v2054 = vld [vmem:[#allocation17 + $0xa8] sm:$0xff]
        %v2055 = vld [vmem:[#allocation17 + $0xb0] sm:$0xff]
        %v2056 = vld [vmem:[#allocation17 + $0xb8] sm:$0xff]
        %v2057 = vld [vmem:[#allocation17 + $0xc0] sm:$0xff]
        %v2058 = vld [vmem:[#allocation17 + $0xc8] sm:$0xff]
        %v2059 = vld [vmem:[#allocation17 + $0xd0] sm:$0xff]
        %v2060 = vld [vmem:[#allocation17 + $0xd8] sm:$0xff]
        %v2061 = vld [vmem:[#allocation17 + $0xe0] sm:$0xff]
        %v2062 = vld [vmem:[#allocation17 + $0xe8] sm:$0xff]
        %v2063 = vld [vmem:[#allocation17 + $0xf0] sm:$0xff]
        %v2064 = vld [vmem:[#allocation17 + $0xf8] sm:$0xff]
        %v2065 = vld [vmem:[#allocation17 + $0x100] sm:$0xff]
        %v2066 = vld [vmem:[#allocation17 + $0x108] sm:$0xff]
        %v2067 = vld [vmem:[#allocation17 + $0x110] sm:$0xff]
        %v2068 = vld [vmem:[#allocation17 + $0x118] sm:$0xff]
        %v2069 = vld [vmem:[#allocation17 + $0x120] sm:$0xff]
        %v2070 = vld [vmem:[#allocation17 + $0x128] sm:$0xff]
        %v2071 = vld [vmem:[#allocation17 + $0x130] sm:$0xff]
        %v2072 = vld [vmem:[#allocation17 + $0x138] sm:$0xff]
        %v2073 = vld [vmem:[#allocation17 + $0x140] sm:$0xff]
        %v2074 = vld [vmem:[#allocation17 + $0x148] sm:$0xff]
        %v2075 = vld [vmem:[#allocation17 + $0x150] sm:$0xff]
        %v2076 = vld [vmem:[#allocation17 + $0x158] sm:$0xff]
        %v2077 = vld [vmem:[#allocation17 + $0x160] sm:$0xff]
        %v2078 = vld [vmem:[#allocation17 + $0x168] sm:$0xff]
        %v2079 = vld [vmem:[#allocation17 + $0x170] sm:$0xff]
        %v2080 = vld [vmem:[#allocation17 + $0x178] sm:$0xff]
        %v2081 = vld [vmem:[#allocation17 + $0x180] sm:$0xff]
        %v2082 = vld [vmem:[#allocation17 + $0x188] sm:$0xff]
        %v2083 = vld [vmem:[#allocation17 + $0x190] sm:$0xff]
        %v2084 = vld [vmem:[#allocation17 + $0x198] sm:$0xff]
        %v2085 = vld [vmem:[#allocation17 + $0x1a0] sm:$0xff]
        %v2086 = vld [vmem:[#allocation17 + $0x1a8] sm:$0xff]
        %v2087 = vld [vmem:[#allocation17 + $0x1b0] sm:$0xff]
        %v2088 = vld [vmem:[#allocation17 + $0x1b8] sm:$0xff]
        %v2089 = vld [vmem:[#allocation17 + $0x1c0] sm:$0xff]
        %v2090 = vld [vmem:[#allocation17 + $0x1c8] sm:$0xff]
        %v2091 = vld [vmem:[#allocation17 + $0x1d0] sm:$0xff]
        %v2092 = vld [vmem:[#allocation17 + $0x1d8] sm:$0xff]
        %v2093 = vld [vmem:[#allocation17 + $0x1e0] sm:$0xff]
        %v2094 = vld [vmem:[#allocation17 + $0x1e8] sm:$0xff]
        %v2095 = vld [vmem:[#allocation17 + $0x1f0] sm:$0xff]
        %v2096 = vld [vmem:[#allocation17 + $0x1f8] sm:$0xff]
        %v2097 = vld [vmem:[#allocation17 + $0x200] sm:$0xff]
        %v2098 = vld [vmem:[#allocation17 + $0x208] sm:$0xff]
        %v2099 = vld [vmem:[#allocation17 + $0x210] sm:$0xff]
        %v2100 = vld [vmem:[#allocation17 + $0x218] sm:$0xff]
        %v2101 = vld [vmem:[#allocation17 + $0x220] sm:$0xff]
        %v2102 = vld [vmem:[#allocation17 + $0x228] sm:$0xff]
        %v2103 = vld [vmem:[#allocation17 + $0x230] sm:$0xff]
        %v2104 = vld [vmem:[#allocation17 + $0x238] sm:$0xff]
        %v2105 = vld [vmem:[#allocation17 + $0x240] sm:$0xff]
        %v2106 = vld [vmem:[#allocation17 + $0x248] sm:$0xff]
        %v2107 = vld [vmem:[#allocation17 + $0x250] sm:$0xff]
        %v2108 = vld [vmem:[#allocation17 + $0x258] sm:$0xff]
        %v2109 = vld [vmem:[#allocation17 + $0x260] sm:$0xff]
        %v2110 = vld [vmem:[#allocation17 + $0x268] sm:$0xff]
        %v2111 = vld [vmem:[#allocation17 + $0x270] sm:$0xff]
        %v2112 = vld [vmem:[#allocation17 + $0x278] sm:$0xff]
        %v2113 = vld [vmem:[#allocation17 + $0x280] sm:$0xff]
        %v2114 = vld [vmem:[#allocation17 + $0x288] sm:$0xff]
        %v2115 = vld [vmem:[#allocation17 + $0x290] sm:$0xff]
        %v2116 = vld [vmem:[#allocation17 + $0x298] sm:$0xff]
        %v2117 = vld [vmem:[#allocation17 + $0x2a0] sm:$0xff]
        %v2118 = vld [vmem:[#allocation17 + $0x2a8] sm:$0xff]
        %v2119 = vld [vmem:[#allocation17 + $0x2b0] sm:$0xff]
        %v2120 = vld [vmem:[#allocation17 + $0x2b8] sm:$0xff]
        %v2121 = vld [vmem:[#allocation17 + $0x2c0] sm:$0xff]
        %v2122 = vld [vmem:[#allocation17 + $0x2c8] sm:$0xff]
        %v2123 = vld [vmem:[#allocation17 + $0x2d0] sm:$0xff]
        %v2124 = vld [vmem:[#allocation17 + $0x2d8] sm:$0xff]
        %v2125 = vld [vmem:[#allocation17 + $0x2e0] sm:$0xff]
        %v2126 = vld [vmem:[#allocation17 + $0x2e8] sm:$0xff]
        %v2127 = vld [vmem:[#allocation17 + $0x2f0] sm:$0xff]
        %v2128 = vld [vmem:[#allocation17 + $0x2f8] sm:$0xff]
        %v2225 = vunpack.c.l.b16 %v2033
        %v2226 = vunpack.c.h.b16 %v2033
        %v2227 = vunpack.c.l.b16 %v2034
        %v2228 = vunpack.c.h.b16 %v2034
        %v2229 = vunpack.c.l.b16 %v2035
        %v2230 = vunpack.c.h.b16 %v2035
        %v2231 = vunpack.c.l.b16 %v2036
        %v2232 = vunpack.c.h.b16 %v2036
        %v2233 = vunpack.c.l.b16 %v2037
        %v2234 = vunpack.c.h.b16 %v2037
        %v2235 = vunpack.c.l.b16 %v2038
        %v2236 = vunpack.c.h.b16 %v2038
        %v2237 = vunpack.c.l.b16 %v2039
        %v2238 = vunpack.c.h.b16 %v2039
        %v2239 = vunpack.c.l.b16 %v2040
        %v2240 = vunpack.c.h.b16 %v2040
        %v2241 = vunpack.c.l.b16 %v2041
        %v2242 = vunpack.c.h.b16 %v2041
        %v2243 = vunpack.c.l.b16 %v2042
        %v2244 = vunpack.c.h.b16 %v2042
        %v2245 = vunpack.c.l.b16 %v2043
        %v2246 = vunpack.c.h.b16 %v2043
        %v2247 = vunpack.c.l.b16 %v2044
        %v2248 = vunpack.c.h.b16 %v2044
        %v2249 = vunpack.c.l.b16 %v2045
        %v2250 = vunpack.c.h.b16 %v2045
        %v2251 = vunpack.c.l.b16 %v2046
        %v2252 = vunpack.c.h.b16 %v2046
        %v2253 = vunpack.c.l.b16 %v2047
        %v2254 = vunpack.c.h.b16 %v2047
        %v2255 = vunpack.c.l.b16 %v2048
        %v2256 = vunpack.c.h.b16 %v2048
        %v2257 = vunpack.c.l.b16 %v2049
        %v2258 = vunpack.c.h.b16 %v2049
        %v2259 = vunpack.c.l.b16 %v2050
        %v2260 = vunpack.c.h.b16 %v2050
        %v2261 = vunpack.c.l.b16 %v2051
        %v2262 = vunpack.c.h.b16 %v2051
        %v2263 = vunpack.c.l.b16 %v2052
        %v2264 = vunpack.c.h.b16 %v2052
        %v2265 = vunpack.c.l.b16 %v2053
        %v2266 = vunpack.c.h.b16 %v2053
        %v2267 = vunpack.c.l.b16 %v2054
        %v2268 = vunpack.c.h.b16 %v2054
        %v2269 = vunpack.c.l.b16 %v2055
        %v2270 = vunpack.c.h.b16 %v2055
        %v2271 = vunpack.c.l.b16 %v2056
        %v2272 = vunpack.c.h.b16 %v2056
        %v2273 = vunpack.c.l.b16 %v2057
        %v2274 = vunpack.c.h.b16 %v2057
        %v2275 = vunpack.c.l.b16 %v2058
        %v2276 = vunpack.c.h.b16 %v2058
        %v2277 = vunpack.c.l.b16 %v2059
        %v2278 = vunpack.c.h.b16 %v2059
        %v2279 = vunpack.c.l.b16 %v2060
        %v2280 = vunpack.c.h.b16 %v2060
        %v2281 = vunpack.c.l.b16 %v2061
        %v2282 = vunpack.c.h.b16 %v2061
        %v2283 = vunpack.c.l.b16 %v2062
        %v2284 = vunpack.c.h.b16 %v2062
        %v2285 = vunpack.c.l.b16 %v2063
        %v2286 = vunpack.c.h.b16 %v2063
        %v2287 = vunpack.c.l.b16 %v2064
        %v2288 = vunpack.c.h.b16 %v2064
        %v2289 = vunpack.c.l.b16 %v2065
        %v2290 = vunpack.c.h.b16 %v2065
        %v2291 = vunpack.c.l.b16 %v2066
        %v2292 = vunpack.c.h.b16 %v2066
        %v2293 = vunpack.c.l.b16 %v2067
        %v2294 = vunpack.c.h.b16 %v2067
        %v2295 = vunpack.c.l.b16 %v2068
        %v2296 = vunpack.c.h.b16 %v2068
        %v2297 = vunpack.c.l.b16 %v2069
        %v2298 = vunpack.c.h.b16 %v2069
        %v2299 = vunpack.c.l.b16 %v2070
        %v2300 = vunpack.c.h.b16 %v2070
        %v2301 = vunpack.c.l.b16 %v2071
        %v2302 = vunpack.c.h.b16 %v2071
        %v2303 = vunpack.c.l.b16 %v2072
        %v2304 = vunpack.c.h.b16 %v2072
        %v2305 = vunpack.c.l.b16 %v2073
        %v2306 = vunpack.c.h.b16 %v2073
        %v2307 = vunpack.c.l.b16 %v2074
        %v2308 = vunpack.c.h.b16 %v2074
        %v2309 = vunpack.c.l.b16 %v2075
        %v2310 = vunpack.c.h.b16 %v2075
        %v2311 = vunpack.c.l.b16 %v2076
        %v2312 = vunpack.c.h.b16 %v2076
        %v2313 = vunpack.c.l.b16 %v2077
        %v2314 = vunpack.c.h.b16 %v2077
        %v2315 = vunpack.c.l.b16 %v2078
        %v2316 = vunpack.c.h.b16 %v2078
        %v2317 = vunpack.c.l.b16 %v2079
        %v2318 = vunpack.c.h.b16 %v2079
        %v2319 = vunpack.c.l.b16 %v2080
        %v2320 = vunpack.c.h.b16 %v2080
        %v2321 = vunpack.c.l.b16 %v2081
        %v2322 = vunpack.c.h.b16 %v2081
        %v2323 = vunpack.c.l.b16 %v2082
        %v2324 = vunpack.c.h.b16 %v2082
        %v2325 = vunpack.c.l.b16 %v2083
        %v2326 = vunpack.c.h.b16 %v2083
        %v2327 = vunpack.c.l.b16 %v2084
        %v2328 = vunpack.c.h.b16 %v2084
        %v2329 = vunpack.c.l.b16 %v2085
        %v2330 = vunpack.c.h.b16 %v2085
        %v2331 = vunpack.c.l.b16 %v2086
        %v2332 = vunpack.c.h.b16 %v2086
        %v2333 = vunpack.c.l.b16 %v2087
        %v2334 = vunpack.c.h.b16 %v2087
        %v2335 = vunpack.c.l.b16 %v2088
        %v2336 = vunpack.c.h.b16 %v2088
        %v2337 = vunpack.c.l.b16 %v2089
        %v2338 = vunpack.c.h.b16 %v2089
        %v2339 = vunpack.c.l.b16 %v2090
        %v2340 = vunpack.c.h.b16 %v2090
        %v2341 = vunpack.c.l.b16 %v2091
        %v2342 = vunpack.c.h.b16 %v2091
        %v2343 = vunpack.c.l.b16 %v2092
        %v2344 = vunpack.c.h.b16 %v2092
        %v2345 = vunpack.c.l.b16 %v2093
        %v2346 = vunpack.c.h.b16 %v2093
        %v2347 = vunpack.c.l.b16 %v2094
        %v2348 = vunpack.c.h.b16 %v2094
        %v2349 = vunpack.c.l.b16 %v2095
        %v2350 = vunpack.c.h.b16 %v2095
        %v2351 = vunpack.c.l.b16 %v2096
        %v2352 = vunpack.c.h.b16 %v2096
        %v2353 = vunpack.c.l.b16 %v2097
        %v2354 = vunpack.c.h.b16 %v2097
        %v2355 = vunpack.c.l.b16 %v2098
        %v2356 = vunpack.c.h.b16 %v2098
        %v2357 = vunpack.c.l.b16 %v2099
        %v2358 = vunpack.c.h.b16 %v2099
        %v2359 = vunpack.c.l.b16 %v2100
        %v2360 = vunpack.c.h.b16 %v2100
        %v2361 = vunpack.c.l.b16 %v2101
        %v2362 = vunpack.c.h.b16 %v2101
        %v2363 = vunpack.c.l.b16 %v2102
        %v2364 = vunpack.c.h.b16 %v2102
        %v2365 = vunpack.c.l.b16 %v2103
        %v2366 = vunpack.c.h.b16 %v2103
        %v2367 = vunpack.c.l.b16 %v2104
        %v2368 = vunpack.c.h.b16 %v2104
        %v2369 = vunpack.c.l.b16 %v2105
        %v2370 = vunpack.c.h.b16 %v2105
        %v2371 = vunpack.c.l.b16 %v2106
        %v2372 = vunpack.c.h.b16 %v2106
        %v2373 = vunpack.c.l.b16 %v2107
        %v2374 = vunpack.c.h.b16 %v2107
        %v2375 = vunpack.c.l.b16 %v2108
        %v2376 = vunpack.c.h.b16 %v2108
        %v2377 = vunpack.c.l.b16 %v2109
        %v2378 = vunpack.c.h.b16 %v2109
        %v2379 = vunpack.c.l.b16 %v2110
        %v2380 = vunpack.c.h.b16 %v2110
        %v2381 = vunpack.c.l.b16 %v2111
        %v2382 = vunpack.c.h.b16 %v2111
        %v2383 = vunpack.c.l.b16 %v2112
        %v2384 = vunpack.c.h.b16 %v2112
        %v2385 = vunpack.c.l.b16 %v2113
        %v2386 = vunpack.c.h.b16 %v2113
        %v2387 = vunpack.c.l.b16 %v2114
        %v2388 = vunpack.c.h.b16 %v2114
        %v2389 = vunpack.c.l.b16 %v2115
        %v2390 = vunpack.c.h.b16 %v2115
        %v2391 = vunpack.c.l.b16 %v2116
        %v2392 = vunpack.c.h.b16 %v2116
        %v2393 = vunpack.c.l.b16 %v2117
        %v2394 = vunpack.c.h.b16 %v2117
        %v2395 = vunpack.c.l.b16 %v2118
        %v2396 = vunpack.c.h.b16 %v2118
        %v2397 = vunpack.c.l.b16 %v2119
        %v2398 = vunpack.c.h.b16 %v2119
        %v2399 = vunpack.c.l.b16 %v2120
        %v2400 = vunpack.c.h.b16 %v2120
        %v2401 = vunpack.c.l.b16 %v2121
        %v2402 = vunpack.c.h.b16 %v2121
        %v2403 = vunpack.c.l.b16 %v2122
        %v2404 = vunpack.c.h.b16 %v2122
        %v2405 = vunpack.c.l.b16 %v2123
        %v2406 = vunpack.c.h.b16 %v2123
        %v2407 = vunpack.c.l.b16 %v2124
        %v2408 = vunpack.c.h.b16 %v2124
        %v2409 = vunpack.c.l.b16 %v2125
        %v2410 = vunpack.c.h.b16 %v2125
        %v2411 = vunpack.c.l.b16 %v2126
        %v2412 = vunpack.c.h.b16 %v2126
        %v2413 = vunpack.c.l.b16 %v2127
        %v2414 = vunpack.c.h.b16 %v2127
        %v2415 = vunpack.c.l.b16 %v2128
        %v2416 = vunpack.c.h.b16 %v2128
        %v2417 = vpack.c.b16 %v2231, %v2225
        %v2418 = vpack.c.b16 %v2232, %v2226
        %v2419 = vpack.c.b16 %v2233, %v2227
        %v2420 = vpack.c.b16 %v2234, %v2228
        %v2421 = vpack.c.b16 %v2235, %v2229
        %v2422 = vpack.c.b16 %v2236, %v2230
        %v2423 = vpack.c.b16 %v2243, %v2237
        %v2424 = vpack.c.b16 %v2244, %v2238
        %v2425 = vpack.c.b16 %v2245, %v2239
        %v2426 = vpack.c.b16 %v2246, %v2240
        %v2427 = vpack.c.b16 %v2247, %v2241
        %v2428 = vpack.c.b16 %v2248, %v2242
        %v2429 = vpack.c.b16 %v2255, %v2249
        %v2430 = vpack.c.b16 %v2256, %v2250
        %v2431 = vpack.c.b16 %v2257, %v2251
        %v2432 = vpack.c.b16 %v2258, %v2252
        %v2433 = vpack.c.b16 %v2259, %v2253
        %v2434 = vpack.c.b16 %v2260, %v2254
        %v2435 = vpack.c.b16 %v2267, %v2261
        %v2436 = vpack.c.b16 %v2268, %v2262
        %v2437 = vpack.c.b16 %v2269, %v2263
        %v2438 = vpack.c.b16 %v2270, %v2264
        %v2439 = vpack.c.b16 %v2271, %v2265
        %v2440 = vpack.c.b16 %v2272, %v2266
        %v2441 = vpack.c.b16 %v2279, %v2273
        %v2442 = vpack.c.b16 %v2280, %v2274
        %v2443 = vpack.c.b16 %v2281, %v2275
        %v2444 = vpack.c.b16 %v2282, %v2276
        %v2445 = vpack.c.b16 %v2283, %v2277
        %v2446 = vpack.c.b16 %v2284, %v2278
        %v2447 = vpack.c.b16 %v2291, %v2285
        %v2448 = vpack.c.b16 %v2292, %v2286
        %v2449 = vpack.c.b16 %v2293, %v2287
        %v2450 = vpack.c.b16 %v2294, %v2288
        %v2451 = vpack.c.b16 %v2295, %v2289
        %v2452 = vpack.c.b16 %v2296, %v2290
        %v2453 = vpack.c.b16 %v2303, %v2297
        %v2454 = vpack.c.b16 %v2304, %v2298
        %v2455 = vpack.c.b16 %v2305, %v2299
        %v2456 = vpack.c.b16 %v2306, %v2300
        %v2457 = vpack.c.b16 %v2307, %v2301
        %v2458 = vpack.c.b16 %v2308, %v2302
        %v2459 = vpack.c.b16 %v2315, %v2309
        %v2460 = vpack.c.b16 %v2316, %v2310
        %v2461 = vpack.c.b16 %v2317, %v2311
        %v2462 = vpack.c.b16 %v2318, %v2312
        %v2463 = vpack.c.b16 %v2319, %v2313
        %v2464 = vpack.c.b16 %v2320, %v2314
        %v2465 = vpack.c.b16 %v2327, %v2321
        %v2466 = vpack.c.b16 %v2328, %v2322
        %v2467 = vpack.c.b16 %v2329, %v2323
        %v2468 = vpack.c.b16 %v2330, %v2324
        %v2469 = vpack.c.b16 %v2331, %v2325
        %v2470 = vpack.c.b16 %v2332, %v2326
        %v2471 = vpack.c.b16 %v2339, %v2333
        %v2472 = vpack.c.b16 %v2340, %v2334
        %v2473 = vpack.c.b16 %v2341, %v2335
        %v2474 = vpack.c.b16 %v2342, %v2336
        %v2475 = vpack.c.b16 %v2343, %v2337
        %v2476 = vpack.c.b16 %v2344, %v2338
        %v2477 = vpack.c.b16 %v2351, %v2345
        %v2478 = vpack.c.b16 %v2352, %v2346
        %v2479 = vpack.c.b16 %v2353, %v2347
        %v2480 = vpack.c.b16 %v2354, %v2348
        %v2481 = vpack.c.b16 %v2355, %v2349
        %v2482 = vpack.c.b16 %v2356, %v2350
        %v2483 = vpack.c.b16 %v2363, %v2357
        %v2484 = vpack.c.b16 %v2364, %v2358
        %v2485 = vpack.c.b16 %v2365, %v2359
        %v2486 = vpack.c.b16 %v2366, %v2360
        %v2487 = vpack.c.b16 %v2367, %v2361
        %v2488 = vpack.c.b16 %v2368, %v2362
        %v2489 = vpack.c.b16 %v2375, %v2369
        %v2490 = vpack.c.b16 %v2376, %v2370
        %v2491 = vpack.c.b16 %v2377, %v2371
        %v2492 = vpack.c.b16 %v2378, %v2372
        %v2493 = vpack.c.b16 %v2379, %v2373
        %v2494 = vpack.c.b16 %v2380, %v2374
        %v2495 = vpack.c.b16 %v2387, %v2381
        %v2496 = vpack.c.b16 %v2388, %v2382
        %v2497 = vpack.c.b16 %v2389, %v2383
        %v2498 = vpack.c.b16 %v2390, %v2384
        %v2499 = vpack.c.b16 %v2391, %v2385
        %v2500 = vpack.c.b16 %v2392, %v2386
        %v2501 = vpack.c.b16 %v2399, %v2393
        %v2502 = vpack.c.b16 %v2400, %v2394
        %v2503 = vpack.c.b16 %v2401, %v2395
        %v2504 = vpack.c.b16 %v2402, %v2396
        %v2505 = vpack.c.b16 %v2403, %v2397
        %v2506 = vpack.c.b16 %v2404, %v2398
        %v2507 = vpack.c.b16 %v2411, %v2405
        %v2508 = vpack.c.b16 %v2412, %v2406
        %v2509 = vpack.c.b16 %v2413, %v2407
        %v2510 = vpack.c.b16 %v2414, %v2408
        %v2511 = vpack.c.b16 %v2415, %v2409
        %v2512 = vpack.c.b16 %v2416, %v2410
        %2609 = vmatprep.subr.bf16.mxu0 %v2460
        %2610 = vmatpush1.bf16.msra.mxu0 %v2459
        %2611 = vmatprep.subr.bf16.mxu0 %v2454
        %2612 = vmatpush1.bf16.msra.mxu0 %v2453
        %2613 = vmatprep.subr.bf16.mxu0 %v2448
        %2614 = vmatpush1.bf16.msra.mxu0 %v2447
        %2615 = vmatprep.subr.bf16.mxu0 %v2442
        %2616 = vmatpush1.bf16.msra.mxu0 %v2441
        %2617 = vmatprep.subr.bf16.mxu0 %v2436
        %2618 = vmatpush1.bf16.msra.mxu0 %v2435
        %2619 = vmatprep.subr.bf16.mxu0 %v2430
        %2620 = vmatpush1.bf16.msra.mxu0 %v2429
        %2621 = vmatprep.subr.bf16.mxu0 %v2424
        %2622 = vmatpush1.bf16.msra.mxu0 %v2423
        %2623 = vmatprep.subr.bf16.mxu0 %v2418
        %2624 = vmatpush1.bf16.msra.mxu0 %v2417
        %2625 = vmatprep.subr.bf16.mxu0 %v2508
        %2626 = vmatpush2.bf16.msra.mxu0 %v2507
        %2627 = vmatprep.subr.bf16.mxu0 %v2502
        %2628 = vmatpush2.bf16.msra.mxu0 %v2501
        %2629 = vmatprep.subr.bf16.mxu0 %v2496
        %2630 = vmatpush2.bf16.msra.mxu0 %v2495
        %2631 = vmatprep.subr.bf16.mxu0 %v2490
        %2632 = vmatpush2.bf16.msra.mxu0 %v2489
        %2633 = vmatprep.subr.bf16.mxu0 %v2484
        %2634 = vmatpush2.bf16.msra.mxu0 %v2483
        %2635 = vmatprep.subr.bf16.mxu0 %v2478
        %2636 = vmatpush2.bf16.msra.mxu0 %v2477
        %2637 = vmatprep.subr.bf16.mxu0 %v2472
        %2638 = vmatpush2.bf16.msra.mxu0 %v2471
        %2639 = vmatprep.subr.bf16.mxu0 %v2466
        %2640 = vmatpush2.bf16.msra.mxu0 %v2465
        %2641 = vmatprep.mubr.bf16.mxu0 %v2032
        %2642 = vmatmul.mubr.bf16.gmra.mxu0 %v2031
        %v2643 = vpop.f32.mrf.mxu0
        %v2644 = vadd.f32 0.0, %v2643
        %v2645 = vpop.f32.mrf.mxu0
        %v2646 = vadd.f32 0.0, %v2645
        %v2647 = vpop.f32.mrf.mxu0
        %v2648 = vadd.f32 0.0, %v2647
        %v2649 = vpop.f32.mrf.mxu0
        %v2650 = vadd.f32 0.0, %v2649
        %2651 = vdwg.mxu0
        %2652 = vmatprep.subr.bf16.mxu0 %v2462
        %2653 = vmatpush1.bf16.msra.mxu0 %v2461
        %2654 = vmatprep.subr.bf16.mxu0 %v2456
        %2655 = vmatpush1.bf16.msra.mxu0 %v2455
        %2656 = vmatprep.subr.bf16.mxu0 %v2450
        %2657 = vmatpush1.bf16.msra.mxu0 %v2449
        %2658 = vmatprep.subr.bf16.mxu0 %v2444
        %2659 = vmatpush1.bf16.msra.mxu0 %v2443
        %2660 = vmatprep.subr.bf16.mxu0 %v2438
        %2661 = vmatpush1.bf16.msra.mxu0 %v2437
        %2662 = vmatprep.subr.bf16.mxu0 %v2432
        %2663 = vmatpush1.bf16.msra.mxu0 %v2431
        %2664 = vmatprep.subr.bf16.mxu0 %v2426
        %2665 = vmatpush1.bf16.msra.mxu0 %v2425
        %2666 = vmatprep.subr.bf16.mxu0 %v2420
        %2667 = vmatpush1.bf16.msra.mxu0 %v2419
        %2668 = vmatprep.subr.bf16.mxu0 %v2510
        %2669 = vmatpush2.bf16.msra.mxu0 %v2509
        %2670 = vmatprep.subr.bf16.mxu0 %v2504
        %2671 = vmatpush2.bf16.msra.mxu0 %v2503
        %2672 = vmatprep.subr.bf16.mxu0 %v2498
        %2673 = vmatpush2.bf16.msra.mxu0 %v2497
        %2674 = vmatprep.subr.bf16.mxu0 %v2492
        %2675 = vmatpush2.bf16.msra.mxu0 %v2491
        %2676 = vmatprep.subr.bf16.mxu0 %v2486
        %2677 = vmatpush2.bf16.msra.mxu0 %v2485
        %2678 = vmatprep.subr.bf16.mxu0 %v2480
        %2679 = vmatpush2.bf16.msra.mxu0 %v2479
        %2680 = vmatprep.subr.bf16.mxu0 %v2474
        %2681 = vmatpush2.bf16.msra.mxu0 %v2473
        %2682 = vmatprep.subr.bf16.mxu0 %v2468
        %2683 = vmatpush2.bf16.msra.mxu0 %v2467
        %2684 = vmatprep.mubr.bf16.mxu0 %v2032
        %2685 = vmatmul.mubr.bf16.gmra.mxu0 %v2031
        %v2686 = vpop.f32.mrf.mxu0
        %v2687 = vadd.f32 0.0, %v2686
        %v2688 = vpop.f32.mrf.mxu0
        %v2689 = vadd.f32 0.0, %v2688
        %v2690 = vpop.f32.mrf.mxu0
        %v2691 = vadd.f32 0.0, %v2690
        %v2692 = vpop.f32.mrf.mxu0
        %v2693 = vadd.f32 0.0, %v2692
        %2694 = vdwg.mxu0
        %2695 = vmatprep.subr.bf16.mxu0 %v2464
        %2696 = vmatpush1.bf16.msra.mxu0 %v2463
        %2697 = vmatprep.subr.bf16.mxu0 %v2458
        %2698 = vmatpush1.bf16.msra.mxu0 %v2457
        %2699 = vmatprep.subr.bf16.mxu0 %v2452
        %2700 = vmatpush1.bf16.msra.mxu0 %v2451
        %2701 = vmatprep.subr.bf16.mxu0 %v2446
        %2702 = vmatpush1.bf16.msra.mxu0 %v2445
        %2703 = vmatprep.subr.bf16.mxu0 %v2440
        %2704 = vmatpush1.bf16.msra.mxu0 %v2439
        %2705 = vmatprep.subr.bf16.mxu0 %v2434
        %2706 = vmatpush1.bf16.msra.mxu0 %v2433
        %2707 = vmatprep.subr.bf16.mxu0 %v2428
        %2708 = vmatpush1.bf16.msra.mxu0 %v2427
        %2709 = vmatprep.subr.bf16.mxu0 %v2422
        %2710 = vmatpush1.bf16.msra.mxu0 %v2421
        %2711 = vmatprep.subr.bf16.mxu0 %v2512
        %2712 = vmatpush2.bf16.msra.mxu0 %v2511
        %2713 = vmatprep.subr.bf16.mxu0 %v2506
        %2714 = vmatpush2.bf16.msra.mxu0 %v2505
        %2715 = vmatprep.subr.bf16.mxu0 %v2500
        %2716 = vmatpush2.bf16.msra.mxu0 %v2499
        %2717 = vmatprep.subr.bf16.mxu0 %v2494
        %2718 = vmatpush2.bf16.msra.mxu0 %v2493
        %2719 = vmatprep.subr.bf16.mxu0 %v2488
        %2720 = vmatpush2.bf16.msra.mxu0 %v2487
        %2721 = vmatprep.subr.bf16.mxu0 %v2482
        %2722 = vmatpush2.bf16.msra.mxu0 %v2481
        %2723 = vmatprep.subr.bf16.mxu0 %v2476
        %2724 = vmatpush2.bf16.msra.mxu0 %v2475
        %2725 = vmatprep.subr.bf16.mxu0 %v2470
        %2726 = vmatpush2.bf16.msra.mxu0 %v2469
        %2727 = vmatprep.mubr.bf16.mxu0 %v2032
        %2728 = vmatmul.mubr.bf16.gmra.mxu0 %v2031
        %v2729 = vpop.f32.mrf.mxu0
        %v2730 = vadd.f32 0.0, %v2729
        %v2731 = vpop.f32.mrf.mxu0
        %v2732 = vadd.f32 0.0, %v2731
        %v2733 = vpop.f32.mrf.mxu0
        %v2734 = vadd.f32 0.0, %v2733
        %v2735 = vpop.f32.mrf.mxu0
        %v2736 = vadd.f32 0.0, %v2735
        %2737 = vdwg.mxu0
        %v2738 = vld [vmem:[#allocation19] sm:$0xff]
        %v2739 = vld [vmem:[#allocation19 + $0x8] sm:$0xff]
        %v2740 = vld [vmem:[#allocation19 + $0x18] sm:$0xff]
        %v2741 = vld [vmem:[#allocation19 + $0x20] sm:$0xff]
        %v2742 = vld [vmem:[#allocation19 + $0x30] sm:$0xff]
        %v2743 = vld [vmem:[#allocation19 + $0x38] sm:$0xff]
        %v2744 = vld [vmem:[#allocation19 + $0x48] sm:$0xff]
        %v2745 = vld [vmem:[#allocation19 + $0x50] sm:$0xff]
        %v2746 = vld [vmem:[#allocation19 + $0x60] sm:$0xff]
        %v2747 = vld [vmem:[#allocation19 + $0x68] sm:$0xff]
        %v2748 = vld [vmem:[#allocation19 + $0x78] sm:$0xff]
        %v2749 = vld [vmem:[#allocation19 + $0x80] sm:$0xff]
        %v2750 = vld [vmem:[#allocation19 + $0x90] sm:$0xff]
        %v2751 = vld [vmem:[#allocation19 + $0x98] sm:$0xff]
        %v2752 = vld [vmem:[#allocation19 + $0xa8] sm:$0xff]
        %v2753 = vld [vmem:[#allocation19 + $0xb0] sm:$0xff]
        %v2754 = vld [vmem:[#allocation19 + $0xc0] sm:$0xff]
        %v2755 = vld [vmem:[#allocation19 + $0xc8] sm:$0xff]
        %v2756 = vld [vmem:[#allocation19 + $0xd8] sm:$0xff]
        %v2757 = vld [vmem:[#allocation19 + $0xe0] sm:$0xff]
        %v2758 = vld [vmem:[#allocation19 + $0xf0] sm:$0xff]
        %v2759 = vld [vmem:[#allocation19 + $0xf8] sm:$0xff]
        %v2760 = vld [vmem:[#allocation19 + $0x108] sm:$0xff]
        %v2761 = vld [vmem:[#allocation19 + $0x110] sm:$0xff]
        %v2762 = vld [vmem:[#allocation19 + $0x120] sm:$0xff]
        %v2763 = vld [vmem:[#allocation19 + $0x128] sm:$0xff]
        %v2764 = vld [vmem:[#allocation19 + $0x138] sm:$0xff]
        %v2765 = vld [vmem:[#allocation19 + $0x140] sm:$0xff]
        %v2766 = vld [vmem:[#allocation19 + $0x150] sm:$0xff]
        %v2767 = vld [vmem:[#allocation19 + $0x158] sm:$0xff]
        %v2768 = vld [vmem:[#allocation19 + $0x168] sm:$0xff]
        %v2769 = vld [vmem:[#allocation19 + $0x170] sm:$0xff]
        %v2770 = vld [vmem:[#allocation19 + $0x180] sm:$0xff]
        %v2771 = vld [vmem:[#allocation19 + $0x188] sm:$0xff]
        %v2772 = vld [vmem:[#allocation19 + $0x198] sm:$0xff]
        %v2773 = vld [vmem:[#allocation19 + $0x1a0] sm:$0xff]
        %v2774 = vld [vmem:[#allocation19 + $0x1b0] sm:$0xff]
        %v2775 = vld [vmem:[#allocation19 + $0x1b8] sm:$0xff]
        %v2776 = vld [vmem:[#allocation19 + $0x1c8] sm:$0xff]
        %v2777 = vld [vmem:[#allocation19 + $0x1d0] sm:$0xff]
        %v2778 = vld [vmem:[#allocation19 + $0x1e0] sm:$0xff]
        %v2779 = vld [vmem:[#allocation19 + $0x1e8] sm:$0xff]
        %v2780 = vld [vmem:[#allocation19 + $0x1f8] sm:$0xff]
        %v2781 = vld [vmem:[#allocation19 + $0x200] sm:$0xff]
        %v2782 = vld [vmem:[#allocation19 + $0x210] sm:$0xff]
        %v2783 = vld [vmem:[#allocation19 + $0x218] sm:$0xff]
        %v2784 = vld [vmem:[#allocation19 + $0x228] sm:$0xff]
        %v2785 = vld [vmem:[#allocation19 + $0x230] sm:$0xff]
        %v2786 = vld [vmem:[#allocation19 + $0x240] sm:$0xff]
        %v2787 = vld [vmem:[#allocation19 + $0x248] sm:$0xff]
        %v2788 = vld [vmem:[#allocation19 + $0x258] sm:$0xff]
        %v2789 = vld [vmem:[#allocation19 + $0x260] sm:$0xff]
        %v2790 = vld [vmem:[#allocation19 + $0x270] sm:$0xff]
        %v2791 = vld [vmem:[#allocation19 + $0x278] sm:$0xff]
        %v2792 = vld [vmem:[#allocation19 + $0x288] sm:$0xff]
        %v2793 = vld [vmem:[#allocation19 + $0x290] sm:$0xff]
        %v2794 = vld [vmem:[#allocation19 + $0x2a0] sm:$0xff]
        %v2795 = vld [vmem:[#allocation19 + $0x2a8] sm:$0xff]
        %v2796 = vld [vmem:[#allocation19 + $0x2b8] sm:$0xff]
        %v2797 = vld [vmem:[#allocation19 + $0x2c0] sm:$0xff]
        %v2798 = vld [vmem:[#allocation19 + $0x2d0] sm:$0xff]
        %v2799 = vld [vmem:[#allocation19 + $0x2d8] sm:$0xff]
        %v2800 = vld [vmem:[#allocation19 + $0x2e8] sm:$0xff]
        %v2801 = vld [vmem:[#allocation19 + $0x2f0] sm:$0xff]
        %v2866 = vunpack.c.l.b16 %v2738
        %v2867 = vunpack.c.h.b16 %v2738
        %v2868 = vunpack.c.l.b16 %v2739
        %v2869 = vunpack.c.h.b16 %v2739
        %v2870 = vunpack.c.l.b16 %v2740
        %v2871 = vunpack.c.h.b16 %v2740
        %v2872 = vunpack.c.l.b16 %v2741
        %v2873 = vunpack.c.h.b16 %v2741
        %v2874 = vunpack.c.l.b16 %v2742
        %v2875 = vunpack.c.h.b16 %v2742
        %v2876 = vunpack.c.l.b16 %v2743
        %v2877 = vunpack.c.h.b16 %v2743
        %v2878 = vunpack.c.l.b16 %v2744
        %v2879 = vunpack.c.h.b16 %v2744
        %v2880 = vunpack.c.l.b16 %v2745
        %v2881 = vunpack.c.h.b16 %v2745
        %v2882 = vunpack.c.l.b16 %v2746
        %v2883 = vunpack.c.h.b16 %v2746
        %v2884 = vunpack.c.l.b16 %v2747
        %v2885 = vunpack.c.h.b16 %v2747
        %v2886 = vunpack.c.l.b16 %v2748
        %v2887 = vunpack.c.h.b16 %v2748
        %v2888 = vunpack.c.l.b16 %v2749
        %v2889 = vunpack.c.h.b16 %v2749
        %v2890 = vunpack.c.l.b16 %v2750
        %v2891 = vunpack.c.h.b16 %v2750
        %v2892 = vunpack.c.l.b16 %v2751
        %v2893 = vunpack.c.h.b16 %v2751
        %v2894 = vunpack.c.l.b16 %v2752
        %v2895 = vunpack.c.h.b16 %v2752
        %v2896 = vunpack.c.l.b16 %v2753
        %v2897 = vunpack.c.h.b16 %v2753
        %v2898 = vunpack.c.l.b16 %v2754
        %v2899 = vunpack.c.h.b16 %v2754
        %v2900 = vunpack.c.l.b16 %v2755
        %v2901 = vunpack.c.h.b16 %v2755
        %v2902 = vunpack.c.l.b16 %v2756
        %v2903 = vunpack.c.h.b16 %v2756
        %v2904 = vunpack.c.l.b16 %v2757
        %v2905 = vunpack.c.h.b16 %v2757
        %v2906 = vunpack.c.l.b16 %v2758
        %v2907 = vunpack.c.h.b16 %v2758
        %v2908 = vunpack.c.l.b16 %v2759
        %v2909 = vunpack.c.h.b16 %v2759
        %v2910 = vunpack.c.l.b16 %v2760
        %v2911 = vunpack.c.h.b16 %v2760
        %v2912 = vunpack.c.l.b16 %v2761
        %v2913 = vunpack.c.h.b16 %v2761
        %v2914 = vunpack.c.l.b16 %v2762
        %v2915 = vunpack.c.h.b16 %v2762
        %v2916 = vunpack.c.l.b16 %v2763
        %v2917 = vunpack.c.h.b16 %v2763
        %v2918 = vunpack.c.l.b16 %v2764
        %v2919 = vunpack.c.h.b16 %v2764
        %v2920 = vunpack.c.l.b16 %v2765
        %v2921 = vunpack.c.h.b16 %v2765
        %v2922 = vunpack.c.l.b16 %v2766
        %v2923 = vunpack.c.h.b16 %v2766
        %v2924 = vunpack.c.l.b16 %v2767
        %v2925 = vunpack.c.h.b16 %v2767
        %v2926 = vunpack.c.l.b16 %v2768
        %v2927 = vunpack.c.h.b16 %v2768
        %v2928 = vunpack.c.l.b16 %v2769
        %v2929 = vunpack.c.h.b16 %v2769
        %v2930 = vunpack.c.l.b16 %v2770
        %v2931 = vunpack.c.h.b16 %v2770
        %v2932 = vunpack.c.l.b16 %v2771
        %v2933 = vunpack.c.h.b16 %v2771
        %v2934 = vunpack.c.l.b16 %v2772
        %v2935 = vunpack.c.h.b16 %v2772
        %v2936 = vunpack.c.l.b16 %v2773
        %v2937 = vunpack.c.h.b16 %v2773
        %v2938 = vunpack.c.l.b16 %v2774
        %v2939 = vunpack.c.h.b16 %v2774
        %v2940 = vunpack.c.l.b16 %v2775
        %v2941 = vunpack.c.h.b16 %v2775
        %v2942 = vunpack.c.l.b16 %v2776
        %v2943 = vunpack.c.h.b16 %v2776
        %v2944 = vunpack.c.l.b16 %v2777
        %v2945 = vunpack.c.h.b16 %v2777
        %v2946 = vunpack.c.l.b16 %v2778
        %v2947 = vunpack.c.h.b16 %v2778
        %v2948 = vunpack.c.l.b16 %v2779
        %v2949 = vunpack.c.h.b16 %v2779
        %v2950 = vunpack.c.l.b16 %v2780
        %v2951 = vunpack.c.h.b16 %v2780
        %v2952 = vunpack.c.l.b16 %v2781
        %v2953 = vunpack.c.h.b16 %v2781
        %v2954 = vunpack.c.l.b16 %v2782
        %v2955 = vunpack.c.h.b16 %v2782
        %v2956 = vunpack.c.l.b16 %v2783
        %v2957 = vunpack.c.h.b16 %v2783
        %v2958 = vunpack.c.l.b16 %v2784
        %v2959 = vunpack.c.h.b16 %v2784
        %v2960 = vunpack.c.l.b16 %v2785
        %v2961 = vunpack.c.h.b16 %v2785
        %v2962 = vunpack.c.l.b16 %v2786
        %v2963 = vunpack.c.h.b16 %v2786
        %v2964 = vunpack.c.l.b16 %v2787
        %v2965 = vunpack.c.h.b16 %v2787
        %v2966 = vunpack.c.l.b16 %v2788
        %v2967 = vunpack.c.h.b16 %v2788
        %v2968 = vunpack.c.l.b16 %v2789
        %v2969 = vunpack.c.h.b16 %v2789
        %v2970 = vunpack.c.l.b16 %v2790
        %v2971 = vunpack.c.h.b16 %v2790
        %v2972 = vunpack.c.l.b16 %v2791
        %v2973 = vunpack.c.h.b16 %v2791
        %v2974 = vunpack.c.l.b16 %v2792
        %v2975 = vunpack.c.h.b16 %v2792
        %v2976 = vunpack.c.l.b16 %v2793
        %v2977 = vunpack.c.h.b16 %v2793
        %v2978 = vunpack.c.l.b16 %v2794
        %v2979 = vunpack.c.h.b16 %v2794
        %v2980 = vunpack.c.l.b16 %v2795
        %v2981 = vunpack.c.h.b16 %v2795
        %v2982 = vunpack.c.l.b16 %v2796
        %v2983 = vunpack.c.h.b16 %v2796
        %v2984 = vunpack.c.l.b16 %v2797
        %v2985 = vunpack.c.h.b16 %v2797
        %v2986 = vunpack.c.l.b16 %v2798
        %v2987 = vunpack.c.h.b16 %v2798
        %v2988 = vunpack.c.l.b16 %v2799
        %v2989 = vunpack.c.h.b16 %v2799
        %v2990 = vunpack.c.l.b16 %v2800
        %v2991 = vunpack.c.h.b16 %v2800
        %v2992 = vunpack.c.l.b16 %v2801
        %v2993 = vunpack.c.h.b16 %v2801
        %v2994 = vpack.c.b16 %v2870, %v2866
        %v2995 = vpack.c.b16 %v2871, %v2867
        %v2996 = vpack.c.b16 %v2872, %v2868
        %v2997 = vpack.c.b16 %v2873, %v2869
        %v2998 = vpack.c.b16 %v2878, %v2874
        %v2999 = vpack.c.b16 %v2879, %v2875
        %v3000 = vpack.c.b16 %v2880, %v2876
        %v3001 = vpack.c.b16 %v2881, %v2877
        %v3002 = vpack.c.b16 %v2886, %v2882
        %v3003 = vpack.c.b16 %v2887, %v2883
        %v3004 = vpack.c.b16 %v2888, %v2884
        %v3005 = vpack.c.b16 %v2889, %v2885
        %v3006 = vpack.c.b16 %v2894, %v2890
        %v3007 = vpack.c.b16 %v2895, %v2891
        %v3008 = vpack.c.b16 %v2896, %v2892
        %v3009 = vpack.c.b16 %v2897, %v2893
        %v3010 = vpack.c.b16 %v2902, %v2898
        %v3011 = vpack.c.b16 %v2903, %v2899
        %v3012 = vpack.c.b16 %v2904, %v2900
        %v3013 = vpack.c.b16 %v2905, %v2901
        %v3014 = vpack.c.b16 %v2910, %v2906
        %v3015 = vpack.c.b16 %v2911, %v2907
        %v3016 = vpack.c.b16 %v2912, %v2908
        %v3017 = vpack.c.b16 %v2913, %v2909
        %v3018 = vpack.c.b16 %v2918, %v2914
        %v3019 = vpack.c.b16 %v2919, %v2915
        %v3020 = vpack.c.b16 %v2920, %v2916
        %v3021 = vpack.c.b16 %v2921, %v2917
        %v3022 = vpack.c.b16 %v2926, %v2922
        %v3023 = vpack.c.b16 %v2927, %v2923
        %v3024 = vpack.c.b16 %v2928, %v2924
        %v3025 = vpack.c.b16 %v2929, %v2925
        %v3026 = vpack.c.b16 %v2934, %v2930
        %v3027 = vpack.c.b16 %v2935, %v2931
        %v3028 = vpack.c.b16 %v2936, %v2932
        %v3029 = vpack.c.b16 %v2937, %v2933
        %v3030 = vpack.c.b16 %v2942, %v2938
        %v3031 = vpack.c.b16 %v2943, %v2939
        %v3032 = vpack.c.b16 %v2944, %v2940
        %v3033 = vpack.c.b16 %v2945, %v2941
        %v3034 = vpack.c.b16 %v2950, %v2946
        %v3035 = vpack.c.b16 %v2951, %v2947
        %v3036 = vpack.c.b16 %v2952, %v2948
        %v3037 = vpack.c.b16 %v2953, %v2949
        %v3038 = vpack.c.b16 %v2958, %v2954
        %v3039 = vpack.c.b16 %v2959, %v2955
        %v3040 = vpack.c.b16 %v2960, %v2956
        %v3041 = vpack.c.b16 %v2961, %v2957
        %v3042 = vpack.c.b16 %v2966, %v2962
        %v3043 = vpack.c.b16 %v2967, %v2963
        %v3044 = vpack.c.b16 %v2968, %v2964
        %v3045 = vpack.c.b16 %v2969, %v2965
        %v3046 = vpack.c.b16 %v2974, %v2970
        %v3047 = vpack.c.b16 %v2975, %v2971
        %v3048 = vpack.c.b16 %v2976, %v2972
        %v3049 = vpack.c.b16 %v2977, %v2973
        %v3050 = vpack.c.b16 %v2982, %v2978
        %v3051 = vpack.c.b16 %v2983, %v2979
        %v3052 = vpack.c.b16 %v2984, %v2980
        %v3053 = vpack.c.b16 %v2985, %v2981
        %v3054 = vpack.c.b16 %v2990, %v2986
        %v3055 = vpack.c.b16 %v2991, %v2987
        %v3056 = vpack.c.b16 %v2992, %v2988
        %v3057 = vpack.c.b16 %v2993, %v2989
        %3122 = vmatprep.subr.bf16.mxu0 %v3023
        %3123 = vmatpush1.bf16.msra.mxu0 %v3022
        %3124 = vmatprep.subr.bf16.mxu0 %v3019
        %3125 = vmatpush1.bf16.msra.mxu0 %v3018
        %3126 = vmatprep.subr.bf16.mxu0 %v3015
        %3127 = vmatpush1.bf16.msra.mxu0 %v3014
        %3128 = vmatprep.subr.bf16.mxu0 %v3011
        %3129 = vmatpush1.bf16.msra.mxu0 %v3010
        %3130 = vmatprep.subr.bf16.mxu0 %v3007
        %3131 = vmatpush1.bf16.msra.mxu0 %v3006
        %3132 = vmatprep.subr.bf16.mxu0 %v3003
        %3133 = vmatpush1.bf16.msra.mxu0 %v3002
        %3134 = vmatprep.subr.bf16.mxu0 %v2999
        %3135 = vmatpush1.bf16.msra.mxu0 %v2998
        %3136 = vmatprep.subr.bf16.mxu0 %v2995
        %3137 = vmatpush1.bf16.msra.mxu0 %v2994
        %3138 = vmatprep.subr.bf16.mxu0 %v3055
        %3139 = vmatpush2.bf16.msra.mxu0 %v3054
        %3140 = vmatprep.subr.bf16.mxu0 %v3051
        %3141 = vmatpush2.bf16.msra.mxu0 %v3050
        %3142 = vmatprep.subr.bf16.mxu0 %v3047
        %3143 = vmatpush2.bf16.msra.mxu0 %v3046
        %3144 = vmatprep.subr.bf16.mxu0 %v3043
        %3145 = vmatpush2.bf16.msra.mxu0 %v3042
        %3146 = vmatprep.subr.bf16.mxu0 %v3039
        %3147 = vmatpush2.bf16.msra.mxu0 %v3038
        %3148 = vmatprep.subr.bf16.mxu0 %v3035
        %3149 = vmatpush2.bf16.msra.mxu0 %v3034
        %3150 = vmatprep.subr.bf16.mxu0 %v3031
        %3151 = vmatpush2.bf16.msra.mxu0 %v3030
        %3152 = vmatprep.subr.bf16.mxu0 %v3027
        %3153 = vmatpush2.bf16.msra.mxu0 %v3026
        %3154 = vmatprep.mubr.bf16.mxu0 %v2030
        %3155 = vmatmul.mubr.bf16.gmra.mxu0 %v2029
        %v3156 = vpop.f32.mrf.mxu0
        %v3157 = vadd.f32 0.0, %v3156
        %v3158 = vpop.f32.mrf.mxu0
        %v3159 = vadd.f32 0.0, %v3158
        %v3160 = vpop.f32.mrf.mxu0
        %v3161 = vadd.f32 0.0, %v3160
        %v3162 = vpop.f32.mrf.mxu0
        %v3163 = vadd.f32 0.0, %v3162
        %3164 = vdwg.mxu0
        %3165 = vmatprep.subr.bf16.mxu0 %v3025
        %3166 = vmatpush1.bf16.msra.mxu0 %v3024
        %3167 = vmatprep.subr.bf16.mxu0 %v3021
        %3168 = vmatpush1.bf16.msra.mxu0 %v3020
        %3169 = vmatprep.subr.bf16.mxu0 %v3017
        %3170 = vmatpush1.bf16.msra.mxu0 %v3016
        %3171 = vmatprep.subr.bf16.mxu0 %v3013
        %3172 = vmatpush1.bf16.msra.mxu0 %v3012
        %3173 = vmatprep.subr.bf16.mxu0 %v3009
        %3174 = vmatpush1.bf16.msra.mxu0 %v3008
        %3175 = vmatprep.subr.bf16.mxu0 %v3005
        %3176 = vmatpush1.bf16.msra.mxu0 %v3004
        %3177 = vmatprep.subr.bf16.mxu0 %v3001
        %3178 = vmatpush1.bf16.msra.mxu0 %v3000
        %3179 = vmatprep.subr.bf16.mxu0 %v2997
        %3180 = vmatpush1.bf16.msra.mxu0 %v2996
        %3181 = vmatprep.subr.bf16.mxu0 %v3057
        %3182 = vmatpush2.bf16.msra.mxu0 %v3056
        %3183 = vmatprep.subr.bf16.mxu0 %v3053
        %3184 = vmatpush2.bf16.msra.mxu0 %v3052
        %3185 = vmatprep.subr.bf16.mxu0 %v3049
        %3186 = vmatpush2.bf16.msra.mxu0 %v3048
        %3187 = vmatprep.subr.bf16.mxu0 %v3045
        %3188 = vmatpush2.bf16.msra.mxu0 %v3044
        %3189 = vmatprep.subr.bf16.mxu0 %v3041
        %3190 = vmatpush2.bf16.msra.mxu0 %v3040
        %3191 = vmatprep.subr.bf16.mxu0 %v3037
        %3192 = vmatpush2.bf16.msra.mxu0 %v3036
        %3193 = vmatprep.subr.bf16.mxu0 %v3033
        %3194 = vmatpush2.bf16.msra.mxu0 %v3032
        %3195 = vmatprep.subr.bf16.mxu0 %v3029
        %3196 = vmatpush2.bf16.msra.mxu0 %v3028
        %3197 = vmatprep.mubr.bf16.mxu0 %v2030
        %3198 = vmatmul.mubr.bf16.gmra.mxu0 %v2029
        %v3199 = vpop.f32.mrf.mxu0
        %v3200 = vadd.f32 0.0, %v3199
        %v3201 = vpop.f32.mrf.mxu0
        %v3202 = vadd.f32 0.0, %v3201
        %v3203 = vpop.f32.mrf.mxu0
        %v3204 = vadd.f32 0.0, %v3203
        %v3205 = vpop.f32.mrf.mxu0
        %v3206 = vadd.f32 0.0, %v3205
        %3207 = vdwg.mxu0
        %v3208 = vadd.f32 %v2644, %v3157
        %v3209 = vadd.f32 %v2646, %v3159
        %v3210 = vadd.f32 %v2648, %v3161
        %v3211 = vadd.f32 %v2650, %v3163
        %v3212 = vxor.u32 %v3208, 2147483648
        %v3213 = vxor.u32 %v3209, 2147483648
        %v3214 = vxor.u32 %v3210, 2147483648
        %v3215 = vxor.u32 %v3211, 2147483648
        %v3216 = vmul.f32 %v3212, 1.442695
        %v3217 = vpow.pop %v3216
        %v3218 = vmul.f32 %v3213, 1.442695
        %v3219 = vpow.pop %v3218
        %v3220 = vmul.f32 %v3214, 1.442695
        %v3221 = vpow.pop %v3220
        %v3222 = vmul.f32 %v3215, 1.442695
        %v3223 = vpow.pop %v3222
        %v3224 = vadd.f32 %v3217, 1.0
        %v3225 = vadd.f32 %v3219, 1.0
        %v3226 = vadd.f32 %v3221, 1.0
        %v3227 = vadd.f32 %v3223, 1.0
        %v3228 = vrcp.pop %v3224
        %v3229 = vmul.f32 1.0, %v3228
        %v3230 = vrcp.pop %v3225
        %v3231 = vmul.f32 1.0, %v3230
        %v3232 = vrcp.pop %v3226
        %v3233 = vmul.f32 1.0, %v3232
        %v3234 = vrcp.pop %v3227
        %v3235 = vmul.f32 1.0, %v3234
        %v3236 = vadd.f32 %v2687, %v3200
        %v3237 = vadd.f32 %v2689, %v3202
        %v3238 = vadd.f32 %v2691, %v3204
        %v3239 = vadd.f32 %v2693, %v3206
        %v3240 = vstv %s2028
        %v3241 = vsub.f32 %v3236, %v3240
        %v3242 = vsub.f32 %v3237, %v3240
        %v3243 = vsub.f32 %v3238, %v3240
        %v3244 = vsub.f32 %v3239, %v3240
        %v3245 = vxor.u32 %v3241, 2147483648
        %v3246 = vxor.u32 %v3242, 2147483648
        %v3247 = vxor.u32 %v3243, 2147483648
        %v3248 = vxor.u32 %v3244, 2147483648
        %v3249 = vmul.f32 %v3245, 1.442695
        %v3250 = vpow.pop %v3249
        %v3251 = vmul.f32 %v3246, 1.442695
        %v3252 = vpow.pop %v3251
        %v3253 = vmul.f32 %v3247, 1.442695
        %v3254 = vpow.pop %v3253
        %v3255 = vmul.f32 %v3248, 1.442695
        %v3256 = vpow.pop %v3255
        %v3257 = vadd.f32 %v3250, 1.0
        %v3258 = vadd.f32 %v3252, 1.0
        %v3259 = vadd.f32 %v3254, 1.0
        %v3260 = vadd.f32 %v3256, 1.0
        %v3261 = vrcp.pop %v3257
        %v3262 = vmul.f32 1.0, %v3261
        %v3263 = vrcp.pop %v3258
        %v3264 = vmul.f32 1.0, %v3263
        %v3265 = vrcp.pop %v3259
        %v3266 = vmul.f32 1.0, %v3265
        %v3267 = vrcp.pop %v3260
        %v3268 = vmul.f32 1.0, %v3267
        %v3269 = vmul.f32 %v3229, %v713
        %v3270 = vmul.f32 %v3231, %v714
        %v3271 = vmul.f32 %v3233, %v715
        %v3272 = vmul.f32 %v3235, %v716
        %v3273 = vpack.c.bf16 %v3271, %v3269
        %v3274 = vpack.c.bf16 %v3272, %v3270
        %v3275 = vld [vmem:[#allocation19 + $0x10] sm:$0xff]
        %v3276 = vld [vmem:[#allocation19 + $0x28] sm:$0xff]
        %v3277 = vld [vmem:[#allocation19 + $0x40] sm:$0xff]
        %v3278 = vld [vmem:[#allocation19 + $0x58] sm:$0xff]
        %v3279 = vld [vmem:[#allocation19 + $0x70] sm:$0xff]
        %v3280 = vld [vmem:[#allocation19 + $0x88] sm:$0xff]
        %v3281 = vld [vmem:[#allocation19 + $0xa0] sm:$0xff]
        %v3282 = vld [vmem:[#allocation19 + $0xb8] sm:$0xff]
        %v3283 = vld [vmem:[#allocation19 + $0xd0] sm:$0xff]
        %v3284 = vld [vmem:[#allocation19 + $0xe8] sm:$0xff]
        %v3285 = vld [vmem:[#allocation19 + $0x100] sm:$0xff]
        %v3286 = vld [vmem:[#allocation19 + $0x118] sm:$0xff]
        %v3287 = vld [vmem:[#allocation19 + $0x130] sm:$0xff]
        %v3288 = vld [vmem:[#allocation19 + $0x148] sm:$0xff]
        %v3289 = vld [vmem:[#allocation19 + $0x160] sm:$0xff]
        %v3290 = vld [vmem:[#allocation19 + $0x178] sm:$0xff]
        %v3291 = vld [vmem:[#allocation19 + $0x190] sm:$0xff]
        %v3292 = vld [vmem:[#allocation19 + $0x1a8] sm:$0xff]
        %v3293 = vld [vmem:[#allocation19 + $0x1c0] sm:$0xff]
        %v3294 = vld [vmem:[#allocation19 + $0x1d8] sm:$0xff]
        %v3295 = vld [vmem:[#allocation19 + $0x1f0] sm:$0xff]
        %v3296 = vld [vmem:[#allocation19 + $0x208] sm:$0xff]
        %v3297 = vld [vmem:[#allocation19 + $0x220] sm:$0xff]
        %v3298 = vld [vmem:[#allocation19 + $0x238] sm:$0xff]
        %v3299 = vld [vmem:[#allocation19 + $0x250] sm:$0xff]
        %v3300 = vld [vmem:[#allocation19 + $0x268] sm:$0xff]
        %v3301 = vld [vmem:[#allocation19 + $0x280] sm:$0xff]
        %v3302 = vld [vmem:[#allocation19 + $0x298] sm:$0xff]
        %v3303 = vld [vmem:[#allocation19 + $0x2b0] sm:$0xff]
        %v3304 = vld [vmem:[#allocation19 + $0x2c8] sm:$0xff]
        %v3305 = vld [vmem:[#allocation19 + $0x2e0] sm:$0xff]
        %v3306 = vld [vmem:[#allocation19 + $0x2f8] sm:$0xff]
        %v3339 = vunpack.c.l.b16 %v3275
        %v3340 = vunpack.c.h.b16 %v3275
        %v3341 = vunpack.c.l.b16 %v3276
        %v3342 = vunpack.c.h.b16 %v3276
        %v3343 = vunpack.c.l.b16 %v3277
        %v3344 = vunpack.c.h.b16 %v3277
        %v3345 = vunpack.c.l.b16 %v3278
        %v3346 = vunpack.c.h.b16 %v3278
        %v3347 = vunpack.c.l.b16 %v3279
        %v3348 = vunpack.c.h.b16 %v3279
        %v3349 = vunpack.c.l.b16 %v3280
        %v3350 = vunpack.c.h.b16 %v3280
        %v3351 = vunpack.c.l.b16 %v3281
        %v3352 = vunpack.c.h.b16 %v3281
        %v3353 = vunpack.c.l.b16 %v3282
        %v3354 = vunpack.c.h.b16 %v3282
        %v3355 = vunpack.c.l.b16 %v3283
        %v3356 = vunpack.c.h.b16 %v3283
        %v3357 = vunpack.c.l.b16 %v3284
        %v3358 = vunpack.c.h.b16 %v3284
        %v3359 = vunpack.c.l.b16 %v3285
        %v3360 = vunpack.c.h.b16 %v3285
        %v3361 = vunpack.c.l.b16 %v3286
        %v3362 = vunpack.c.h.b16 %v3286
        %v3363 = vunpack.c.l.b16 %v3287
        %v3364 = vunpack.c.h.b16 %v3287
        %v3365 = vunpack.c.l.b16 %v3288
        %v3366 = vunpack.c.h.b16 %v3288
        %v3367 = vunpack.c.l.b16 %v3289
        %v3368 = vunpack.c.h.b16 %v3289
        %v3369 = vunpack.c.l.b16 %v3290
        %v3370 = vunpack.c.h.b16 %v3290
        %v3371 = vunpack.c.l.b16 %v3291
        %v3372 = vunpack.c.h.b16 %v3291
        %v3373 = vunpack.c.l.b16 %v3292
        %v3374 = vunpack.c.h.b16 %v3292
        %v3375 = vunpack.c.l.b16 %v3293
        %v3376 = vunpack.c.h.b16 %v3293
        %v3377 = vunpack.c.l.b16 %v3294
        %v3378 = vunpack.c.h.b16 %v3294
        %v3379 = vunpack.c.l.b16 %v3295
        %v3380 = vunpack.c.h.b16 %v3295
        %v3381 = vunpack.c.l.b16 %v3296
        %v3382 = vunpack.c.h.b16 %v3296
        %v3383 = vunpack.c.l.b16 %v3297
        %v3384 = vunpack.c.h.b16 %v3297
        %v3385 = vunpack.c.l.b16 %v3298
        %v3386 = vunpack.c.h.b16 %v3298
        %v3387 = vunpack.c.l.b16 %v3299
        %v3388 = vunpack.c.h.b16 %v3299
        %v3389 = vunpack.c.l.b16 %v3300
        %v3390 = vunpack.c.h.b16 %v3300
        %v3391 = vunpack.c.l.b16 %v3301
        %v3392 = vunpack.c.h.b16 %v3301
        %v3393 = vunpack.c.l.b16 %v3302
        %v3394 = vunpack.c.h.b16 %v3302
        %v3395 = vunpack.c.l.b16 %v3303
        %v3396 = vunpack.c.h.b16 %v3303
        %v3397 = vunpack.c.l.b16 %v3304
        %v3398 = vunpack.c.h.b16 %v3304
        %v3399 = vunpack.c.l.b16 %v3305
        %v3400 = vunpack.c.h.b16 %v3305
        %v3401 = vunpack.c.l.b16 %v3306
        %v3402 = vunpack.c.h.b16 %v3306
        %v3403 = vpack.c.b16 %v3341, %v3339
        %v3404 = vpack.c.b16 %v3342, %v3340
        %v3405 = vpack.c.b16 %v3345, %v3343
        %v3406 = vpack.c.b16 %v3346, %v3344
        %v3407 = vpack.c.b16 %v3349, %v3347
        %v3408 = vpack.c.b16 %v3350, %v3348
        %v3409 = vpack.c.b16 %v3353, %v3351
        %v3410 = vpack.c.b16 %v3354, %v3352
        %v3411 = vpack.c.b16 %v3357, %v3355
        %v3412 = vpack.c.b16 %v3358, %v3356
        %v3413 = vpack.c.b16 %v3361, %v3359
        %v3414 = vpack.c.b16 %v3362, %v3360
        %v3415 = vpack.c.b16 %v3365, %v3363
        %v3416 = vpack.c.b16 %v3366, %v3364
        %v3417 = vpack.c.b16 %v3369, %v3367
        %v3418 = vpack.c.b16 %v3370, %v3368
        %v3419 = vpack.c.b16 %v3373, %v3371
        %v3420 = vpack.c.b16 %v3374, %v3372
        %v3421 = vpack.c.b16 %v3377, %v3375
        %v3422 = vpack.c.b16 %v3378, %v3376
        %v3423 = vpack.c.b16 %v3381, %v3379
        %v3424 = vpack.c.b16 %v3382, %v3380
        %v3425 = vpack.c.b16 %v3385, %v3383
        %v3426 = vpack.c.b16 %v3386, %v3384
        %v3427 = vpack.c.b16 %v3389, %v3387
        %v3428 = vpack.c.b16 %v3390, %v3388
        %v3429 = vpack.c.b16 %v3393, %v3391
        %v3430 = vpack.c.b16 %v3394, %v3392
        %v3431 = vpack.c.b16 %v3397, %v3395
        %v3432 = vpack.c.b16 %v3398, %v3396
        %v3433 = vpack.c.b16 %v3401, %v3399
        %v3434 = vpack.c.b16 %v3402, %v3400
        %3467 = vmatprep.subr.bf16.mxu0 %v3418
        %3468 = vmatpush1.bf16.msra.mxu0 %v3417
        %3469 = vmatprep.subr.bf16.mxu0 %v3416
        %3470 = vmatpush1.bf16.msra.mxu0 %v3415
        %3471 = vmatprep.subr.bf16.mxu0 %v3414
        %3472 = vmatpush1.bf16.msra.mxu0 %v3413
        %3473 = vmatprep.subr.bf16.mxu0 %v3412
        %3474 = vmatpush1.bf16.msra.mxu0 %v3411
        %3475 = vmatprep.subr.bf16.mxu0 %v3410
        %3476 = vmatpush1.bf16.msra.mxu0 %v3409
        %3477 = vmatprep.subr.bf16.mxu0 %v3408
        %3478 = vmatpush1.bf16.msra.mxu0 %v3407
        %3479 = vmatprep.subr.bf16.mxu0 %v3406
        %3480 = vmatpush1.bf16.msra.mxu0 %v3405
        %3481 = vmatprep.subr.bf16.mxu0 %v3404
        %3482 = vmatpush1.bf16.msra.mxu0 %v3403
        %3483 = vmatprep.subr.bf16.mxu0 %v3434
        %3484 = vmatpush2.bf16.msra.mxu0 %v3433
        %3485 = vmatprep.subr.bf16.mxu0 %v3432
        %3486 = vmatpush2.bf16.msra.mxu0 %v3431
        %3487 = vmatprep.subr.bf16.mxu0 %v3430
        %3488 = vmatpush2.bf16.msra.mxu0 %v3429
        %3489 = vmatprep.subr.bf16.mxu0 %v3428
        %3490 = vmatpush2.bf16.msra.mxu0 %v3427
        %3491 = vmatprep.subr.bf16.mxu0 %v3426
        %3492 = vmatpush2.bf16.msra.mxu0 %v3425
        %3493 = vmatprep.subr.bf16.mxu0 %v3424
        %3494 = vmatpush2.bf16.msra.mxu0 %v3423
        %3495 = vmatprep.subr.bf16.mxu0 %v3422
        %3496 = vmatpush2.bf16.msra.mxu0 %v3421
        %3497 = vmatprep.subr.bf16.mxu0 %v3420
        %3498 = vmatpush2.bf16.msra.mxu0 %v3419
        %3499 = vmatprep.mubr.bf16.mxu0 %v3274
        %3500 = vmatmul.mubr.bf16.gmra.mxu0 %v3273
        %v3501 = vpop.f32.mrf.mxu0
        %v3502 = vadd.f32 0.0, %v3501
        %v3503 = vpop.f32.mrf.mxu0
        %v3504 = vadd.f32 0.0, %v3503
        %v3505 = vpop.f32.mrf.mxu0
        %v3506 = vadd.f32 0.0, %v3505
        %v3507 = vpop.f32.mrf.mxu0
        %v3508 = vadd.f32 0.0, %v3507
        %3509 = vdwg.mxu0
        %v3510 = vadd.f32 %v2730, %v3502
        %v3511 = vadd.f32 %v2732, %v3504
        %v3512 = vadd.f32 %v2734, %v3506
        %v3513 = vadd.f32 %v2736, %v3508
        %v3514 = vtanh.pop %v3510
        %v3515 = vtanh.pop %v3511
        %v3516 = vtanh.pop %v3512
        %v3517 = vtanh.pop %v3513
        %v3518 = vsub.f32 1.0, %v3262
        %v3519 = vsub.f32 1.0, %v3264
        %v3520 = vsub.f32 1.0, %v3266
        %v3521 = vsub.f32 1.0, %v3268
        %v3522 = vmul.f32 %v3518, %v713
        %v3523 = vmul.f32 %v3519, %v714
        %v3524 = vmul.f32 %v3520, %v715
        %v3525 = vmul.f32 %v3521, %v716
        %v3526 = vmul.f32 %v3262, %v3514
        %v3527 = vmul.f32 %v3264, %v3515
        %v3528 = vmul.f32 %v3266, %v3516
        %v3529 = vmul.f32 %v3268, %v3517
        %v3530 = vadd.f32 %v3522, %v3526
        %v3531 = vadd.f32 %v3523, %v3527
        %v3532 = vadd.f32 %v3524, %v3528
        %v3533 = vadd.f32 %v3525, %v3529
        %v3534 = vadd.f32 %v3530, %v3531
        %3535 = vadd.xlane.f32.xlu0 %v3534
        %v3536 = vpop.xlane.xlu0 %3535
        %v3537 = vadd.f32 %v3532, %v3533
        %3538 = vadd.xlane.f32.xlu0 %v3537
        %v3539 = vpop.xlane.xlu0 %3538
        %v3540 = vmul.f32 %v3536, %v725
        %v3541 = vmul.f32 %v3539, %v725
        %v3542 = vsub.f32 %v3530, %v3540
        %v3543 = vsub.f32 %v3531, %v3540
        %v3544 = vsub.f32 %v3532, %v3541
        %v3545 = vsub.f32 %v3533, %v3541
        %v3546 = vmul.f32 %v3542, %v3542
        %v3547 = vmul.f32 %v3543, %v3543
        %v3548 = vmul.f32 %v3544, %v3544
        %v3549 = vmul.f32 %v3545, %v3545
        %v3550 = vadd.f32 %v3546, %v3547
        %3551 = vadd.xlane.f32.xlu0 %v3550
        %v3552 = vpop.xlane.xlu0 %3551
        %v3553 = vadd.f32 %v3548, %v3549
        %3554 = vadd.xlane.f32.xlu0 %v3553
        %v3555 = vpop.xlane.xlu0 %3554
        %v3556 = vmul.f32 %v3552, %v725
        %v3557 = vmul.f32 %v3555, %v725
        %v3558 = vadd.f32 %v3556, 1e-05
        %v3559 = vadd.f32 %v3557, 1e-05
        %v3560 = vrsqrt.pop %v3558
        %v3561 = vrsqrt.pop %v3559
        %v3562 = vmul.f32 %v3542, %v3560
        %v3563 = vmul.f32 %v3543, %v3560
        %v3564 = vmul.f32 %v3544, %v3561
        %v3565 = vmul.f32 %v3545, %v3561
        %v3566 = vmul.f32 %v3562, %v756
        %v3567 = vmul.f32 %v3563, %v760
        %v3568 = vmul.f32 %v3564, %v756
        %v3569 = vmul.f32 %v3565, %v760
        %v3570 = vadd.f32 %v3566, %v771
        %v3571 = vadd.f32 %v3567, %v775
        %v3572 = vadd.f32 %v3568, %v771
        %v3573 = vadd.f32 %v3569, %v775
        %v3574 = vpack.c.bf16 %v3572, %v3570
        %v3575 = vpack.c.bf16 %v3573, %v3571
        %v3576 = vld [vmem:[#allocation14] sm:$0xff]
        %v3577 = vld [vmem:[#allocation14 + $0x8] sm:$0xff]
        %v3578 = vld [vmem:[#allocation14 + $0x10] sm:$0xff]
        %v3579 = vld [vmem:[#allocation14 + $0x18] sm:$0xff]
        %v3580 = vld [vmem:[#allocation14 + $0x20] sm:$0xff]
        %v3581 = vld [vmem:[#allocation14 + $0x28] sm:$0xff]
        %v3582 = vld [vmem:[#allocation14 + $0x30] sm:$0xff]
        %v3583 = vld [vmem:[#allocation14 + $0x38] sm:$0xff]
        %v3584 = vld [vmem:[#allocation14 + $0x40] sm:$0xff]
        %v3585 = vld [vmem:[#allocation14 + $0x48] sm:$0xff]
        %v3586 = vld [vmem:[#allocation14 + $0x50] sm:$0xff]
        %v3587 = vld [vmem:[#allocation14 + $0x58] sm:$0xff]
        %v3588 = vld [vmem:[#allocation14 + $0x60] sm:$0xff]
        %v3589 = vld [vmem:[#allocation14 + $0x68] sm:$0xff]
        %v3590 = vld [vmem:[#allocation14 + $0x70] sm:$0xff]
        %v3591 = vld [vmem:[#allocation14 + $0x78] sm:$0xff]
        %v3592 = vld [vmem:[#allocation14 + $0x80] sm:$0xff]
        %v3593 = vld [vmem:[#allocation14 + $0x88] sm:$0xff]
        %v3594 = vld [vmem:[#allocation14 + $0x90] sm:$0xff]
        %v3595 = vld [vmem:[#allocation14 + $0x98] sm:$0xff]
        %v3596 = vld [vmem:[#allocation14 + $0xa0] sm:$0xff]
        %v3597 = vld [vmem:[#allocation14 + $0xa8] sm:$0xff]
        %v3598 = vld [vmem:[#allocation14 + $0xb0] sm:$0xff]
        %v3599 = vld [vmem:[#allocation14 + $0xb8] sm:$0xff]
        %v3600 = vld [vmem:[#allocation14 + $0xc0] sm:$0xff]
        %v3601 = vld [vmem:[#allocation14 + $0xc8] sm:$0xff]
        %v3602 = vld [vmem:[#allocation14 + $0xd0] sm:$0xff]
        %v3603 = vld [vmem:[#allocation14 + $0xd8] sm:$0xff]
        %v3604 = vld [vmem:[#allocation14 + $0xe0] sm:$0xff]
        %v3605 = vld [vmem:[#allocation14 + $0xe8] sm:$0xff]
        %v3606 = vld [vmem:[#allocation14 + $0xf0] sm:$0xff]
        %v3607 = vld [vmem:[#allocation14 + $0xf8] sm:$0xff]
        %v3608 = vld [vmem:[#allocation14 + $0x100] sm:$0xff]
        %v3609 = vld [vmem:[#allocation14 + $0x108] sm:$0xff]
        %v3610 = vld [vmem:[#allocation14 + $0x110] sm:$0xff]
        %v3611 = vld [vmem:[#allocation14 + $0x118] sm:$0xff]
        %v3612 = vld [vmem:[#allocation14 + $0x120] sm:$0xff]
        %v3613 = vld [vmem:[#allocation14 + $0x128] sm:$0xff]
        %v3614 = vld [vmem:[#allocation14 + $0x130] sm:$0xff]
        %v3615 = vld [vmem:[#allocation14 + $0x138] sm:$0xff]
        %v3616 = vld [vmem:[#allocation14 + $0x140] sm:$0xff]
        %v3617 = vld [vmem:[#allocation14 + $0x148] sm:$0xff]
        %v3618 = vld [vmem:[#allocation14 + $0x150] sm:$0xff]
        %v3619 = vld [vmem:[#allocation14 + $0x158] sm:$0xff]
        %v3620 = vld [vmem:[#allocation14 + $0x160] sm:$0xff]
        %v3621 = vld [vmem:[#allocation14 + $0x168] sm:$0xff]
        %v3622 = vld [vmem:[#allocation14 + $0x170] sm:$0xff]
        %v3623 = vld [vmem:[#allocation14 + $0x178] sm:$0xff]
        %v3624 = vld [vmem:[#allocation14 + $0x180] sm:$0xff]
        %v3625 = vld [vmem:[#allocation14 + $0x188] sm:$0xff]
        %v3626 = vld [vmem:[#allocation14 + $0x190] sm:$0xff]
        %v3627 = vld [vmem:[#allocation14 + $0x198] sm:$0xff]
        %v3628 = vld [vmem:[#allocation14 + $0x1a0] sm:$0xff]
        %v3629 = vld [vmem:[#allocation14 + $0x1a8] sm:$0xff]
        %v3630 = vld [vmem:[#allocation14 + $0x1b0] sm:$0xff]
        %v3631 = vld [vmem:[#allocation14 + $0x1b8] sm:$0xff]
        %v3632 = vld [vmem:[#allocation14 + $0x1c0] sm:$0xff]
        %v3633 = vld [vmem:[#allocation14 + $0x1c8] sm:$0xff]
        %v3634 = vld [vmem:[#allocation14 + $0x1d0] sm:$0xff]
        %v3635 = vld [vmem:[#allocation14 + $0x1d8] sm:$0xff]
        %v3636 = vld [vmem:[#allocation14 + $0x1e0] sm:$0xff]
        %v3637 = vld [vmem:[#allocation14 + $0x1e8] sm:$0xff]
        %v3638 = vld [vmem:[#allocation14 + $0x1f0] sm:$0xff]
        %v3639 = vld [vmem:[#allocation14 + $0x1f8] sm:$0xff]
        %v3640 = vld [vmem:[%s8] sm:$0xf]
        %v3642 = vlaneseq
        %v3643 = vshrl.u32 %v3642, 7
        %v3644 = vsub.s32 0, %v3643
        %v3645 = vrot.slane %v3640, %v3644
        %v3646 = vlaneseq
        %v3647 = vshrl.u32 %v3646, 7
        %v3648 = vsub.s32 1, %v3647
        %v3649 = vrot.slane %v3640, %v3648
        %v3650 = vlaneseq
        %v3651 = vshrl.u32 %v3650, 7
        %v3652 = vsub.s32 2, %v3651
        %v3653 = vrot.slane %v3640, %v3652
        %v3654 = vlaneseq
        %v3655 = vshrl.u32 %v3654, 7
        %v3656 = vsub.s32 3, %v3655
        %v3657 = vrot.slane %v3640, %v3656
        %v3726 = vunpack.c.l.b16 %v3576
        %v3727 = vunpack.c.h.b16 %v3576
        %v3728 = vunpack.c.l.b16 %v3577
        %v3729 = vunpack.c.h.b16 %v3577
        %v3730 = vunpack.c.l.b16 %v3578
        %v3731 = vunpack.c.h.b16 %v3578
        %v3732 = vunpack.c.l.b16 %v3579
        %v3733 = vunpack.c.h.b16 %v3579
        %v3734 = vunpack.c.l.b16 %v3580
        %v3735 = vunpack.c.h.b16 %v3580
        %v3736 = vunpack.c.l.b16 %v3581
        %v3737 = vunpack.c.h.b16 %v3581
        %v3738 = vunpack.c.l.b16 %v3582
        %v3739 = vunpack.c.h.b16 %v3582
        %v3740 = vunpack.c.l.b16 %v3583
        %v3741 = vunpack.c.h.b16 %v3583
        %v3742 = vunpack.c.l.b16 %v3584
        %v3743 = vunpack.c.h.b16 %v3584
        %v3744 = vunpack.c.l.b16 %v3585
        %v3745 = vunpack.c.h.b16 %v3585
        %v3746 = vunpack.c.l.b16 %v3586
        %v3747 = vunpack.c.h.b16 %v3586
        %v3748 = vunpack.c.l.b16 %v3587
        %v3749 = vunpack.c.h.b16 %v3587
        %v3750 = vunpack.c.l.b16 %v3588
        %v3751 = vunpack.c.h.b16 %v3588
        %v3752 = vunpack.c.l.b16 %v3589
        %v3753 = vunpack.c.h.b16 %v3589
        %v3754 = vunpack.c.l.b16 %v3590
        %v3755 = vunpack.c.h.b16 %v3590
        %v3756 = vunpack.c.l.b16 %v3591
        %v3757 = vunpack.c.h.b16 %v3591
        %v3758 = vunpack.c.l.b16 %v3592
        %v3759 = vunpack.c.h.b16 %v3592
        %v3760 = vunpack.c.l.b16 %v3593
        %v3761 = vunpack.c.h.b16 %v3593
        %v3762 = vunpack.c.l.b16 %v3594
        %v3763 = vunpack.c.h.b16 %v3594
        %v3764 = vunpack.c.l.b16 %v3595
        %v3765 = vunpack.c.h.b16 %v3595
        %v3766 = vunpack.c.l.b16 %v3596
        %v3767 = vunpack.c.h.b16 %v3596
        %v3768 = vunpack.c.l.b16 %v3597
        %v3769 = vunpack.c.h.b16 %v3597
        %v3770 = vunpack.c.l.b16 %v3598
        %v3771 = vunpack.c.h.b16 %v3598
        %v3772 = vunpack.c.l.b16 %v3599
        %v3773 = vunpack.c.h.b16 %v3599
        %v3774 = vunpack.c.l.b16 %v3600
        %v3775 = vunpack.c.h.b16 %v3600
        %v3776 = vunpack.c.l.b16 %v3601
        %v3777 = vunpack.c.h.b16 %v3601
        %v3778 = vunpack.c.l.b16 %v3602
        %v3779 = vunpack.c.h.b16 %v3602
        %v3780 = vunpack.c.l.b16 %v3603
        %v3781 = vunpack.c.h.b16 %v3603
        %v3782 = vunpack.c.l.b16 %v3604
        %v3783 = vunpack.c.h.b16 %v3604
        %v3784 = vunpack.c.l.b16 %v3605
        %v3785 = vunpack.c.h.b16 %v3605
        %v3786 = vunpack.c.l.b16 %v3606
        %v3787 = vunpack.c.h.b16 %v3606
        %v3788 = vunpack.c.l.b16 %v3607
        %v3789 = vunpack.c.h.b16 %v3607
        %v3790 = vunpack.c.l.b16 %v3608
        %v3791 = vunpack.c.h.b16 %v3608
        %v3792 = vunpack.c.l.b16 %v3609
        %v3793 = vunpack.c.h.b16 %v3609
        %v3794 = vunpack.c.l.b16 %v3610
        %v3795 = vunpack.c.h.b16 %v3610
        %v3796 = vunpack.c.l.b16 %v3611
        %v3797 = vunpack.c.h.b16 %v3611
        %v3798 = vunpack.c.l.b16 %v3612
        %v3799 = vunpack.c.h.b16 %v3612
        %v3800 = vunpack.c.l.b16 %v3613
        %v3801 = vunpack.c.h.b16 %v3613
        %v3802 = vunpack.c.l.b16 %v3614
        %v3803 = vunpack.c.h.b16 %v3614
        %v3804 = vunpack.c.l.b16 %v3615
        %v3805 = vunpack.c.h.b16 %v3615
        %v3806 = vunpack.c.l.b16 %v3616
        %v3807 = vunpack.c.h.b16 %v3616
        %v3808 = vunpack.c.l.b16 %v3617
        %v3809 = vunpack.c.h.b16 %v3617
        %v3810 = vunpack.c.l.b16 %v3618
        %v3811 = vunpack.c.h.b16 %v3618
        %v3812 = vunpack.c.l.b16 %v3619
        %v3813 = vunpack.c.h.b16 %v3619
        %v3814 = vunpack.c.l.b16 %v3620
        %v3815 = vunpack.c.h.b16 %v3620
        %v3816 = vunpack.c.l.b16 %v3621
        %v3817 = vunpack.c.h.b16 %v3621
        %v3818 = vunpack.c.l.b16 %v3622
        %v3819 = vunpack.c.h.b16 %v3622
        %v3820 = vunpack.c.l.b16 %v3623
        %v3821 = vunpack.c.h.b16 %v3623
        %v3822 = vunpack.c.l.b16 %v3624
        %v3823 = vunpack.c.h.b16 %v3624
        %v3824 = vunpack.c.l.b16 %v3625
        %v3825 = vunpack.c.h.b16 %v3625
        %v3826 = vunpack.c.l.b16 %v3626
        %v3827 = vunpack.c.h.b16 %v3626
        %v3828 = vunpack.c.l.b16 %v3627
        %v3829 = vunpack.c.h.b16 %v3627
        %v3830 = vunpack.c.l.b16 %v3628
        %v3831 = vunpack.c.h.b16 %v3628
        %v3832 = vunpack.c.l.b16 %v3629
        %v3833 = vunpack.c.h.b16 %v3629
        %v3834 = vunpack.c.l.b16 %v3630
        %v3835 = vunpack.c.h.b16 %v3630
        %v3836 = vunpack.c.l.b16 %v3631
        %v3837 = vunpack.c.h.b16 %v3631
        %v3838 = vunpack.c.l.b16 %v3632
        %v3839 = vunpack.c.h.b16 %v3632
        %v3840 = vunpack.c.l.b16 %v3633
        %v3841 = vunpack.c.h.b16 %v3633
        %v3842 = vunpack.c.l.b16 %v3634
        %v3843 = vunpack.c.h.b16 %v3634
        %v3844 = vunpack.c.l.b16 %v3635
        %v3845 = vunpack.c.h.b16 %v3635
        %v3846 = vunpack.c.l.b16 %v3636
        %v3847 = vunpack.c.h.b16 %v3636
        %v3848 = vunpack.c.l.b16 %v3637
        %v3849 = vunpack.c.h.b16 %v3637
        %v3850 = vunpack.c.l.b16 %v3638
        %v3851 = vunpack.c.h.b16 %v3638
        %v3852 = vunpack.c.l.b16 %v3639
        %v3853 = vunpack.c.h.b16 %v3639
        %v3854 = vpack.c.b16 %v3730, %v3726
        %v3855 = vpack.c.b16 %v3731, %v3727
        %v3856 = vpack.c.b16 %v3732, %v3728
        %v3857 = vpack.c.b16 %v3733, %v3729
        %v3858 = vpack.c.b16 %v3738, %v3734
        %v3859 = vpack.c.b16 %v3739, %v3735
        %v3860 = vpack.c.b16 %v3740, %v3736
        %v3861 = vpack.c.b16 %v3741, %v3737
        %v3862 = vpack.c.b16 %v3746, %v3742
        %v3863 = vpack.c.b16 %v3747, %v3743
        %v3864 = vpack.c.b16 %v3748, %v3744
        %v3865 = vpack.c.b16 %v3749, %v3745
        %v3866 = vpack.c.b16 %v3754, %v3750
        %v3867 = vpack.c.b16 %v3755, %v3751
        %v3868 = vpack.c.b16 %v3756, %v3752
        %v3869 = vpack.c.b16 %v3757, %v3753
        %v3870 = vpack.c.b16 %v3762, %v3758
        %v3871 = vpack.c.b16 %v3763, %v3759
        %v3872 = vpack.c.b16 %v3764, %v3760
        %v3873 = vpack.c.b16 %v3765, %v3761
        %v3874 = vpack.c.b16 %v3770, %v3766
        %v3875 = vpack.c.b16 %v3771, %v3767
        %v3876 = vpack.c.b16 %v3772, %v3768
        %v3877 = vpack.c.b16 %v3773, %v3769
        %v3878 = vpack.c.b16 %v3778, %v3774
        %v3879 = vpack.c.b16 %v3779, %v3775
        %v3880 = vpack.c.b16 %v3780, %v3776
        %v3881 = vpack.c.b16 %v3781, %v3777
        %v3882 = vpack.c.b16 %v3786, %v3782
        %v3883 = vpack.c.b16 %v3787, %v3783
        %v3884 = vpack.c.b16 %v3788, %v3784
        %v3885 = vpack.c.b16 %v3789, %v3785
        %v3886 = vpack.c.b16 %v3794, %v3790
        %v3887 = vpack.c.b16 %v3795, %v3791
        %v3888 = vpack.c.b16 %v3796, %v3792
        %v3889 = vpack.c.b16 %v3797, %v3793
        %v3890 = vpack.c.b16 %v3802, %v3798
        %v3891 = vpack.c.b16 %v3803, %v3799
        %v3892 = vpack.c.b16 %v3804, %v3800
        %v3893 = vpack.c.b16 %v3805, %v3801
        %v3894 = vpack.c.b16 %v3810, %v3806
        %v3895 = vpack.c.b16 %v3811, %v3807
        %v3896 = vpack.c.b16 %v3812, %v3808
        %v3897 = vpack.c.b16 %v3813, %v3809
        %v3898 = vpack.c.b16 %v3818, %v3814
        %v3899 = vpack.c.b16 %v3819, %v3815
        %v3900 = vpack.c.b16 %v3820, %v3816
        %v3901 = vpack.c.b16 %v3821, %v3817
        %v3902 = vpack.c.b16 %v3826, %v3822
        %v3903 = vpack.c.b16 %v3827, %v3823
        %v3904 = vpack.c.b16 %v3828, %v3824
        %v3905 = vpack.c.b16 %v3829, %v3825
        %v3906 = vpack.c.b16 %v3834, %v3830
        %v3907 = vpack.c.b16 %v3835, %v3831
        %v3908 = vpack.c.b16 %v3836, %v3832
        %v3909 = vpack.c.b16 %v3837, %v3833
        %v3910 = vpack.c.b16 %v3842, %v3838
        %v3911 = vpack.c.b16 %v3843, %v3839
        %v3912 = vpack.c.b16 %v3844, %v3840
        %v3913 = vpack.c.b16 %v3845, %v3841
        %v3914 = vpack.c.b16 %v3850, %v3846
        %v3915 = vpack.c.b16 %v3851, %v3847
        %v3916 = vpack.c.b16 %v3852, %v3848
        %v3917 = vpack.c.b16 %v3853, %v3849
        %3982 = vmatprep.subr.bf16.mxu0 %v3883
        %3983 = vmatpush1.bf16.msra.mxu0 %v3882
        %3984 = vmatprep.subr.bf16.mxu0 %v3879
        %3985 = vmatpush1.bf16.msra.mxu0 %v3878
        %3986 = vmatprep.subr.bf16.mxu0 %v3875
        %3987 = vmatpush1.bf16.msra.mxu0 %v3874
        %3988 = vmatprep.subr.bf16.mxu0 %v3871
        %3989 = vmatpush1.bf16.msra.mxu0 %v3870
        %3990 = vmatprep.subr.bf16.mxu0 %v3867
        %3991 = vmatpush1.bf16.msra.mxu0 %v3866
        %3992 = vmatprep.subr.bf16.mxu0 %v3863
        %3993 = vmatpush1.bf16.msra.mxu0 %v3862
        %3994 = vmatprep.subr.bf16.mxu0 %v3859
        %3995 = vmatpush1.bf16.msra.mxu0 %v3858
        %3996 = vmatprep.subr.bf16.mxu0 %v3855
        %3997 = vmatpush1.bf16.msra.mxu0 %v3854
        %3998 = vmatprep.subr.bf16.mxu0 %v3915
        %3999 = vmatpush2.bf16.msra.mxu0 %v3914
        %4000 = vmatprep.subr.bf16.mxu0 %v3911
        %4001 = vmatpush2.bf16.msra.mxu0 %v3910
        %4002 = vmatprep.subr.bf16.mxu0 %v3907
        %4003 = vmatpush2.bf16.msra.mxu0 %v3906
        %4004 = vmatprep.subr.bf16.mxu0 %v3903
        %4005 = vmatpush2.bf16.msra.mxu0 %v3902
        %4006 = vmatprep.subr.bf16.mxu0 %v3899
        %4007 = vmatpush2.bf16.msra.mxu0 %v3898
        %4008 = vmatprep.subr.bf16.mxu0 %v3895
        %4009 = vmatpush2.bf16.msra.mxu0 %v3894
        %4010 = vmatprep.subr.bf16.mxu0 %v3891
        %4011 = vmatpush2.bf16.msra.mxu0 %v3890
        %4012 = vmatprep.subr.bf16.mxu0 %v3887
        %4013 = vmatpush2.bf16.msra.mxu0 %v3886
        %4014 = vmatprep.mubr.bf16.mxu0 %v3575
        %4015 = vmatmul.mubr.bf16.gmra.mxu0 %v3574
        %v4016 = vpop.f32.mrf.mxu0
        %v4017 = vadd.f32 %v3645, %v4016
        %v4018 = vpop.f32.mrf.mxu0
        %v4019 = vadd.f32 %v3649, %v4018
        %v4020 = vpop.f32.mrf.mxu0
        %v4021 = vadd.f32 %v3645, %v4020
        %v4022 = vpop.f32.mrf.mxu0
        %v4023 = vadd.f32 %v3649, %v4022
        %4024 = vdwg.mxu0
        %4025 = vmatprep.subr.bf16.mxu0 %v3885
        %4026 = vmatpush1.bf16.msra.mxu0 %v3884
        %4027 = vmatprep.subr.bf16.mxu0 %v3881
        %4028 = vmatpush1.bf16.msra.mxu0 %v3880
        %4029 = vmatprep.subr.bf16.mxu0 %v3877
        %4030 = vmatpush1.bf16.msra.mxu0 %v3876
        %4031 = vmatprep.subr.bf16.mxu0 %v3873
        %4032 = vmatpush1.bf16.msra.mxu0 %v3872
        %4033 = vmatprep.subr.bf16.mxu0 %v3869
        %4034 = vmatpush1.bf16.msra.mxu0 %v3868
        %4035 = vmatprep.subr.bf16.mxu0 %v3865
        %4036 = vmatpush1.bf16.msra.mxu0 %v3864
        %4037 = vmatprep.subr.bf16.mxu0 %v3861
        %4038 = vmatpush1.bf16.msra.mxu0 %v3860
        %4039 = vmatprep.subr.bf16.mxu0 %v3857
        %4040 = vmatpush1.bf16.msra.mxu0 %v3856
        %4041 = vmatprep.subr.bf16.mxu0 %v3917
        %4042 = vmatpush2.bf16.msra.mxu0 %v3916
        %4043 = vmatprep.subr.bf16.mxu0 %v3913
        %4044 = vmatpush2.bf16.msra.mxu0 %v3912
        %4045 = vmatprep.subr.bf16.mxu0 %v3909
        %4046 = vmatpush2.bf16.msra.mxu0 %v3908
        %4047 = vmatprep.subr.bf16.mxu0 %v3905
        %4048 = vmatpush2.bf16.msra.mxu0 %v3904
        %4049 = vmatprep.subr.bf16.mxu0 %v3901
        %4050 = vmatpush2.bf16.msra.mxu0 %v3900
        %4051 = vmatprep.subr.bf16.mxu0 %v3897
        %4052 = vmatpush2.bf16.msra.mxu0 %v3896
        %4053 = vmatprep.subr.bf16.mxu0 %v3893
        %4054 = vmatpush2.bf16.msra.mxu0 %v3892
        %4055 = vmatprep.subr.bf16.mxu0 %v3889
        %4056 = vmatpush2.bf16.msra.mxu0 %v3888
        %4057 = vmatprep.mubr.bf16.mxu0 %v3575
        %4058 = vmatmul.mubr.bf16.gmra.mxu0 %v3574
        %v4059 = vpop.f32.mrf.mxu0
        %v4060 = vadd.f32 %v3653, %v4059
        %v4061 = vpop.f32.mrf.mxu0
        %v4062 = vadd.f32 %v3657, %v4061
        %v4063 = vpop.f32.mrf.mxu0
        %v4064 = vadd.f32 %v3653, %v4063
        %v4065 = vpop.f32.mrf.mxu0
        %v4066 = vadd.f32 %v3657, %v4065
        %4067 = vdwg.mxu0
        %v4068 = vmul.f32 %v4017, %v4017
        %v4069 = vmul.f32 %v4019, %v4019
        %v4070 = vmul.f32 %v4060, %v4060
        %v4071 = vmul.f32 %v4062, %v4062
        %v4072 = vmul.f32 %v4021, %v4021
        %v4073 = vmul.f32 %v4023, %v4023
        %v4074 = vmul.f32 %v4064, %v4064
        %v4075 = vmul.f32 %v4066, %v4066
        %v4076 = vmul.f32 %v4017, %v4068
        %v4077 = vmul.f32 %v4019, %v4069
        %v4078 = vmul.f32 %v4060, %v4070
        %v4079 = vmul.f32 %v4062, %v4071
        %v4080 = vmul.f32 %v4021, %v4072
        %v4081 = vmul.f32 %v4023, %v4073
        %v4082 = vmul.f32 %v4064, %v4074
        %v4083 = vmul.f32 %v4066, %v4075
        %v4084 = vmul.f32 %v4076, 0.044715
        %v4085 = vmul.f32 %v4077, 0.044715
        %v4086 = vmul.f32 %v4078, 0.044715
        %v4087 = vmul.f32 %v4079, 0.044715
        %v4088 = vmul.f32 %v4080, 0.044715
        %v4089 = vmul.f32 %v4081, 0.044715
        %v4090 = vmul.f32 %v4082, 0.044715
        %v4091 = vmul.f32 %v4083, 0.044715
        %v4092 = vadd.f32 %v4017, %v4084
        %v4093 = vadd.f32 %v4019, %v4085
        %v4094 = vadd.f32 %v4060, %v4086
        %v4095 = vadd.f32 %v4062, %v4087
        %v4096 = vadd.f32 %v4021, %v4088
        %v4097 = vadd.f32 %v4023, %v4089
        %v4098 = vadd.f32 %v4064, %v4090
        %v4099 = vadd.f32 %v4066, %v4091
        %v4100 = vmul.f32 %v4092, 0.7978846
        %v4101 = vmul.f32 %v4093, 0.7978846
        %v4102 = vmul.f32 %v4094, 0.7978846
        %v4103 = vmul.f32 %v4095, 0.7978846
        %v4104 = vmul.f32 %v4096, 0.7978846
        %v4105 = vmul.f32 %v4097, 0.7978846
        %v4106 = vmul.f32 %v4098, 0.7978846
        %v4107 = vmul.f32 %v4099, 0.7978846
        %v4108 = vtanh.pop %v4100
        %v4109 = vtanh.pop %v4101
        %v4110 = vtanh.pop %v4102
        %v4111 = vtanh.pop %v4103
        %v4112 = vtanh.pop %v4104
        %v4113 = vtanh.pop %v4105
        %v4114 = vtanh.pop %v4106
        %v4115 = vtanh.pop %v4107
        %v4116 = vadd.f32 %v4108, 1.0
        %v4117 = vadd.f32 %v4109, 1.0
        %v4118 = vadd.f32 %v4110, 1.0
        %v4119 = vadd.f32 %v4111, 1.0
        %v4120 = vadd.f32 %v4112, 1.0
        %v4121 = vadd.f32 %v4113, 1.0
        %v4122 = vadd.f32 %v4114, 1.0
        %v4123 = vadd.f32 %v4115, 1.0
        %v4124 = vmul.f32 %v4116, 0.5
        %v4125 = vmul.f32 %v4117, 0.5
        %v4126 = vmul.f32 %v4118, 0.5
        %v4127 = vmul.f32 %v4119, 0.5
        %v4128 = vmul.f32 %v4120, 0.5
        %v4129 = vmul.f32 %v4121, 0.5
        %v4130 = vmul.f32 %v4122, 0.5
        %v4131 = vmul.f32 %v4123, 0.5
        %v4132 = vmul.f32 %v4017, %v4124
        %v4133 = vmul.f32 %v4019, %v4125
        %v4134 = vmul.f32 %v4060, %v4126
        %v4135 = vmul.f32 %v4062, %v4127
        %v4136 = vmul.f32 %v4021, %v4128
        %v4137 = vmul.f32 %v4023, %v4129
        %v4138 = vmul.f32 %v4064, %v4130
        %v4139 = vmul.f32 %v4066, %v4131
        %v4140 = vpack.c.bf16 %v4136, %v4132
        %v4141 = vpack.c.bf16 %v4137, %v4133
        %v4142 = vpack.c.bf16 %v4138, %v4134
        %v4143 = vpack.c.bf16 %v4139, %v4135
        %v4144 = vld [vmem:[#allocation16] sm:$0xff]
        %v4145 = vld [vmem:[#allocation16 + $0x8] sm:$0xff]
        %v4146 = vld [vmem:[#allocation16 + $0x10] sm:$0xff]
        %v4147 = vld [vmem:[#allocation16 + $0x18] sm:$0xff]
        %v4148 = vld [vmem:[#allocation16 + $0x20] sm:$0xff]
        %v4149 = vld [vmem:[#allocation16 + $0x28] sm:$0xff]
        %v4150 = vld [vmem:[#allocation16 + $0x30] sm:$0xff]
        %v4151 = vld [vmem:[#allocation16 + $0x38] sm:$0xff]
        %v4152 = vld [vmem:[#allocation16 + $0x40] sm:$0xff]
        %v4153 = vld [vmem:[#allocation16 + $0x48] sm:$0xff]
        %v4154 = vld [vmem:[#allocation16 + $0x50] sm:$0xff]
        %v4155 = vld [vmem:[#allocation16 + $0x58] sm:$0xff]
        %v4156 = vld [vmem:[#allocation16 + $0x60] sm:$0xff]
        %v4157 = vld [vmem:[#allocation16 + $0x68] sm:$0xff]
        %v4158 = vld [vmem:[#allocation16 + $0x70] sm:$0xff]
        %v4159 = vld [vmem:[#allocation16 + $0x78] sm:$0xff]
        %v4160 = vld [vmem:[#allocation16 + $0x80] sm:$0xff]
        %v4161 = vld [vmem:[#allocation16 + $0x88] sm:$0xff]
        %v4162 = vld [vmem:[#allocation16 + $0x90] sm:$0xff]
        %v4163 = vld [vmem:[#allocation16 + $0x98] sm:$0xff]
        %v4164 = vld [vmem:[#allocation16 + $0xa0] sm:$0xff]
        %v4165 = vld [vmem:[#allocation16 + $0xa8] sm:$0xff]
        %v4166 = vld [vmem:[#allocation16 + $0xb0] sm:$0xff]
        %v4167 = vld [vmem:[#allocation16 + $0xb8] sm:$0xff]
        %v4168 = vld [vmem:[#allocation16 + $0xc0] sm:$0xff]
        %v4169 = vld [vmem:[#allocation16 + $0xc8] sm:$0xff]
        %v4170 = vld [vmem:[#allocation16 + $0xd0] sm:$0xff]
        %v4171 = vld [vmem:[#allocation16 + $0xd8] sm:$0xff]
        %v4172 = vld [vmem:[#allocation16 + $0xe0] sm:$0xff]
        %v4173 = vld [vmem:[#allocation16 + $0xe8] sm:$0xff]
        %v4174 = vld [vmem:[#allocation16 + $0xf0] sm:$0xff]
        %v4175 = vld [vmem:[#allocation16 + $0xf8] sm:$0xff]
        %v4176 = vld [vmem:[#allocation16 + $0x100] sm:$0xff]
        %v4177 = vld [vmem:[#allocation16 + $0x108] sm:$0xff]
        %v4178 = vld [vmem:[#allocation16 + $0x110] sm:$0xff]
        %v4179 = vld [vmem:[#allocation16 + $0x118] sm:$0xff]
        %v4180 = vld [vmem:[#allocation16 + $0x120] sm:$0xff]
        %v4181 = vld [vmem:[#allocation16 + $0x128] sm:$0xff]
        %v4182 = vld [vmem:[#allocation16 + $0x130] sm:$0xff]
        %v4183 = vld [vmem:[#allocation16 + $0x138] sm:$0xff]
        %v4184 = vld [vmem:[#allocation16 + $0x140] sm:$0xff]
        %v4185 = vld [vmem:[#allocation16 + $0x148] sm:$0xff]
        %v4186 = vld [vmem:[#allocation16 + $0x150] sm:$0xff]
        %v4187 = vld [vmem:[#allocation16 + $0x158] sm:$0xff]
        %v4188 = vld [vmem:[#allocation16 + $0x160] sm:$0xff]
        %v4189 = vld [vmem:[#allocation16 + $0x168] sm:$0xff]
        %v4190 = vld [vmem:[#allocation16 + $0x170] sm:$0xff]
        %v4191 = vld [vmem:[#allocation16 + $0x178] sm:$0xff]
        %v4192 = vld [vmem:[#allocation16 + $0x180] sm:$0xff]
        %v4193 = vld [vmem:[#allocation16 + $0x188] sm:$0xff]
        %v4194 = vld [vmem:[#allocation16 + $0x190] sm:$0xff]
        %v4195 = vld [vmem:[#allocation16 + $0x198] sm:$0xff]
        %v4196 = vld [vmem:[#allocation16 + $0x1a0] sm:$0xff]
        %v4197 = vld [vmem:[#allocation16 + $0x1a8] sm:$0xff]
        %v4198 = vld [vmem:[#allocation16 + $0x1b0] sm:$0xff]
        %v4199 = vld [vmem:[#allocation16 + $0x1b8] sm:$0xff]
        %v4200 = vld [vmem:[#allocation16 + $0x1c0] sm:$0xff]
        %v4201 = vld [vmem:[#allocation16 + $0x1c8] sm:$0xff]
        %v4202 = vld [vmem:[#allocation16 + $0x1d0] sm:$0xff]
        %v4203 = vld [vmem:[#allocation16 + $0x1d8] sm:$0xff]
        %v4204 = vld [vmem:[#allocation16 + $0x1e0] sm:$0xff]
        %v4205 = vld [vmem:[#allocation16 + $0x1e8] sm:$0xff]
        %v4206 = vld [vmem:[#allocation16 + $0x1f0] sm:$0xff]
        %v4207 = vld [vmem:[#allocation16 + $0x1f8] sm:$0xff]
        %v4208 = vld [vmem:[%s10] sm:$0x3]
        %v4210 = vlaneseq
        %v4211 = vshrl.u32 %v4210, 7
        %v4212 = vsub.s32 0, %v4211
        %v4213 = vrot.slane %v4208, %v4212
        %v4214 = vlaneseq
        %v4215 = vshrl.u32 %v4214, 7
        %v4216 = vsub.s32 1, %v4215
        %v4217 = vrot.slane %v4208, %v4216
        %v4284 = vunpack.c.l.b16 %v4144
        %v4285 = vunpack.c.h.b16 %v4144
        %v4286 = vunpack.c.l.b16 %v4145
        %v4287 = vunpack.c.h.b16 %v4145
        %v4288 = vunpack.c.l.b16 %v4146
        %v4289 = vunpack.c.h.b16 %v4146
        %v4290 = vunpack.c.l.b16 %v4147
        %v4291 = vunpack.c.h.b16 %v4147
        %v4292 = vunpack.c.l.b16 %v4148
        %v4293 = vunpack.c.h.b16 %v4148
        %v4294 = vunpack.c.l.b16 %v4149
        %v4295 = vunpack.c.h.b16 %v4149
        %v4296 = vunpack.c.l.b16 %v4150
        %v4297 = vunpack.c.h.b16 %v4150
        %v4298 = vunpack.c.l.b16 %v4151
        %v4299 = vunpack.c.h.b16 %v4151
        %v4300 = vunpack.c.l.b16 %v4152
        %v4301 = vunpack.c.h.b16 %v4152
        %v4302 = vunpack.c.l.b16 %v4153
        %v4303 = vunpack.c.h.b16 %v4153
        %v4304 = vunpack.c.l.b16 %v4154
        %v4305 = vunpack.c.h.b16 %v4154
        %v4306 = vunpack.c.l.b16 %v4155
        %v4307 = vunpack.c.h.b16 %v4155
        %v4308 = vunpack.c.l.b16 %v4156
        %v4309 = vunpack.c.h.b16 %v4156
        %v4310 = vunpack.c.l.b16 %v4157
        %v4311 = vunpack.c.h.b16 %v4157
        %v4312 = vunpack.c.l.b16 %v4158
        %v4313 = vunpack.c.h.b16 %v4158
        %v4314 = vunpack.c.l.b16 %v4159
        %v4315 = vunpack.c.h.b16 %v4159
        %v4316 = vunpack.c.l.b16 %v4160
        %v4317 = vunpack.c.h.b16 %v4160
        %v4318 = vunpack.c.l.b16 %v4161
        %v4319 = vunpack.c.h.b16 %v4161
        %v4320 = vunpack.c.l.b16 %v4162
        %v4321 = vunpack.c.h.b16 %v4162
        %v4322 = vunpack.c.l.b16 %v4163
        %v4323 = vunpack.c.h.b16 %v4163
        %v4324 = vunpack.c.l.b16 %v4164
        %v4325 = vunpack.c.h.b16 %v4164
        %v4326 = vunpack.c.l.b16 %v4165
        %v4327 = vunpack.c.h.b16 %v4165
        %v4328 = vunpack.c.l.b16 %v4166
        %v4329 = vunpack.c.h.b16 %v4166
        %v4330 = vunpack.c.l.b16 %v4167
        %v4331 = vunpack.c.h.b16 %v4167
        %v4332 = vunpack.c.l.b16 %v4168
        %v4333 = vunpack.c.h.b16 %v4168
        %v4334 = vunpack.c.l.b16 %v4169
        %v4335 = vunpack.c.h.b16 %v4169
        %v4336 = vunpack.c.l.b16 %v4170
        %v4337 = vunpack.c.h.b16 %v4170
        %v4338 = vunpack.c.l.b16 %v4171
        %v4339 = vunpack.c.h.b16 %v4171
        %v4340 = vunpack.c.l.b16 %v4172
        %v4341 = vunpack.c.h.b16 %v4172
        %v4342 = vunpack.c.l.b16 %v4173
        %v4343 = vunpack.c.h.b16 %v4173
        %v4344 = vunpack.c.l.b16 %v4174
        %v4345 = vunpack.c.h.b16 %v4174
        %v4346 = vunpack.c.l.b16 %v4175
        %v4347 = vunpack.c.h.b16 %v4175
        %v4348 = vunpack.c.l.b16 %v4176
        %v4349 = vunpack.c.h.b16 %v4176
        %v4350 = vunpack.c.l.b16 %v4177
        %v4351 = vunpack.c.h.b16 %v4177
        %v4352 = vunpack.c.l.b16 %v4178
        %v4353 = vunpack.c.h.b16 %v4178
        %v4354 = vunpack.c.l.b16 %v4179
        %v4355 = vunpack.c.h.b16 %v4179
        %v4356 = vunpack.c.l.b16 %v4180
        %v4357 = vunpack.c.h.b16 %v4180
        %v4358 = vunpack.c.l.b16 %v4181
        %v4359 = vunpack.c.h.b16 %v4181
        %v4360 = vunpack.c.l.b16 %v4182
        %v4361 = vunpack.c.h.b16 %v4182
        %v4362 = vunpack.c.l.b16 %v4183
        %v4363 = vunpack.c.h.b16 %v4183
        %v4364 = vunpack.c.l.b16 %v4184
        %v4365 = vunpack.c.h.b16 %v4184
        %v4366 = vunpack.c.l.b16 %v4185
        %v4367 = vunpack.c.h.b16 %v4185
        %v4368 = vunpack.c.l.b16 %v4186
        %v4369 = vunpack.c.h.b16 %v4186
        %v4370 = vunpack.c.l.b16 %v4187
        %v4371 = vunpack.c.h.b16 %v4187
        %v4372 = vunpack.c.l.b16 %v4188
        %v4373 = vunpack.c.h.b16 %v4188
        %v4374 = vunpack.c.l.b16 %v4189
        %v4375 = vunpack.c.h.b16 %v4189
        %v4376 = vunpack.c.l.b16 %v4190
        %v4377 = vunpack.c.h.b16 %v4190
        %v4378 = vunpack.c.l.b16 %v4191
        %v4379 = vunpack.c.h.b16 %v4191
        %v4380 = vunpack.c.l.b16 %v4192
        %v4381 = vunpack.c.h.b16 %v4192
        %v4382 = vunpack.c.l.b16 %v4193
        %v4383 = vunpack.c.h.b16 %v4193
        %v4384 = vunpack.c.l.b16 %v4194
        %v4385 = vunpack.c.h.b16 %v4194
        %v4386 = vunpack.c.l.b16 %v4195
        %v4387 = vunpack.c.h.b16 %v4195
        %v4388 = vunpack.c.l.b16 %v4196
        %v4389 = vunpack.c.h.b16 %v4196
        %v4390 = vunpack.c.l.b16 %v4197
        %v4391 = vunpack.c.h.b16 %v4197
        %v4392 = vunpack.c.l.b16 %v4198
        %v4393 = vunpack.c.h.b16 %v4198
        %v4394 = vunpack.c.l.b16 %v4199
        %v4395 = vunpack.c.h.b16 %v4199
        %v4396 = vunpack.c.l.b16 %v4200
        %v4397 = vunpack.c.h.b16 %v4200
        %v4398 = vunpack.c.l.b16 %v4201
        %v4399 = vunpack.c.h.b16 %v4201
        %v4400 = vunpack.c.l.b16 %v4202
        %v4401 = vunpack.c.h.b16 %v4202
        %v4402 = vunpack.c.l.b16 %v4203
        %v4403 = vunpack.c.h.b16 %v4203
        %v4404 = vunpack.c.l.b16 %v4204
        %v4405 = vunpack.c.h.b16 %v4204
        %v4406 = vunpack.c.l.b16 %v4205
        %v4407 = vunpack.c.h.b16 %v4205
        %v4408 = vunpack.c.l.b16 %v4206
        %v4409 = vunpack.c.h.b16 %v4206
        %v4410 = vunpack.c.l.b16 %v4207
        %v4411 = vunpack.c.h.b16 %v4207
        %v4412 = vpack.c.b16 %v4286, %v4284
        %v4413 = vpack.c.b16 %v4287, %v4285
        %v4414 = vpack.c.b16 %v4290, %v4288
        %v4415 = vpack.c.b16 %v4291, %v4289
        %v4416 = vpack.c.b16 %v4294, %v4292
        %v4417 = vpack.c.b16 %v4295, %v4293
        %v4418 = vpack.c.b16 %v4298, %v4296
        %v4419 = vpack.c.b16 %v4299, %v4297
        %v4420 = vpack.c.b16 %v4302, %v4300
        %v4421 = vpack.c.b16 %v4303, %v4301
        %v4422 = vpack.c.b16 %v4306, %v4304
        %v4423 = vpack.c.b16 %v4307, %v4305
        %v4424 = vpack.c.b16 %v4310, %v4308
        %v4425 = vpack.c.b16 %v4311, %v4309
        %v4426 = vpack.c.b16 %v4314, %v4312
        %v4427 = vpack.c.b16 %v4315, %v4313
        %v4428 = vpack.c.b16 %v4318, %v4316
        %v4429 = vpack.c.b16 %v4319, %v4317
        %v4430 = vpack.c.b16 %v4322, %v4320
        %v4431 = vpack.c.b16 %v4323, %v4321
        %v4432 = vpack.c.b16 %v4326, %v4324
        %v4433 = vpack.c.b16 %v4327, %v4325
        %v4434 = vpack.c.b16 %v4330, %v4328
        %v4435 = vpack.c.b16 %v4331, %v4329
        %v4436 = vpack.c.b16 %v4334, %v4332
        %v4437 = vpack.c.b16 %v4335, %v4333
        %v4438 = vpack.c.b16 %v4338, %v4336
        %v4439 = vpack.c.b16 %v4339, %v4337
        %v4440 = vpack.c.b16 %v4342, %v4340
        %v4441 = vpack.c.b16 %v4343, %v4341
        %v4442 = vpack.c.b16 %v4346, %v4344
        %v4443 = vpack.c.b16 %v4347, %v4345
        %v4444 = vpack.c.b16 %v4350, %v4348
        %v4445 = vpack.c.b16 %v4351, %v4349
        %v4446 = vpack.c.b16 %v4354, %v4352
        %v4447 = vpack.c.b16 %v4355, %v4353
        %v4448 = vpack.c.b16 %v4358, %v4356
        %v4449 = vpack.c.b16 %v4359, %v4357
        %v4450 = vpack.c.b16 %v4362, %v4360
        %v4451 = vpack.c.b16 %v4363, %v4361
        %v4452 = vpack.c.b16 %v4366, %v4364
        %v4453 = vpack.c.b16 %v4367, %v4365
        %v4454 = vpack.c.b16 %v4370, %v4368
        %v4455 = vpack.c.b16 %v4371, %v4369
        %v4456 = vpack.c.b16 %v4374, %v4372
        %v4457 = vpack.c.b16 %v4375, %v4373
        %v4458 = vpack.c.b16 %v4378, %v4376
        %v4459 = vpack.c.b16 %v4379, %v4377
        %v4460 = vpack.c.b16 %v4382, %v4380
        %v4461 = vpack.c.b16 %v4383, %v4381
        %v4462 = vpack.c.b16 %v4386, %v4384
        %v4463 = vpack.c.b16 %v4387, %v4385
        %v4464 = vpack.c.b16 %v4390, %v4388
        %v4465 = vpack.c.b16 %v4391, %v4389
        %v4466 = vpack.c.b16 %v4394, %v4392
        %v4467 = vpack.c.b16 %v4395, %v4393
        %v4468 = vpack.c.b16 %v4398, %v4396
        %v4469 = vpack.c.b16 %v4399, %v4397
        %v4470 = vpack.c.b16 %v4402, %v4400
        %v4471 = vpack.c.b16 %v4403, %v4401
        %v4472 = vpack.c.b16 %v4406, %v4404
        %v4473 = vpack.c.b16 %v4407, %v4405
        %v4474 = vpack.c.b16 %v4410, %v4408
        %v4475 = vpack.c.b16 %v4411, %v4409
        %4540 = vmatprep.subr.bf16.mxu0 %v4427
        %4541 = vmatpush1.bf16.msra.mxu0 %v4426
        %4542 = vmatprep.subr.bf16.mxu0 %v4425
        %4543 = vmatpush1.bf16.msra.mxu0 %v4424
        %4544 = vmatprep.subr.bf16.mxu0 %v4423
        %4545 = vmatpush1.bf16.msra.mxu0 %v4422
        %4546 = vmatprep.subr.bf16.mxu0 %v4421
        %4547 = vmatpush1.bf16.msra.mxu0 %v4420
        %4548 = vmatprep.subr.bf16.mxu0 %v4419
        %4549 = vmatpush1.bf16.msra.mxu0 %v4418
        %4550 = vmatprep.subr.bf16.mxu0 %v4417
        %4551 = vmatpush1.bf16.msra.mxu0 %v4416
        %4552 = vmatprep.subr.bf16.mxu0 %v4415
        %4553 = vmatpush1.bf16.msra.mxu0 %v4414
        %4554 = vmatprep.subr.bf16.mxu0 %v4413
        %4555 = vmatpush1.bf16.msra.mxu0 %v4412
        %4556 = vmatprep.subr.bf16.mxu0 %v4443
        %4557 = vmatpush2.bf16.msra.mxu0 %v4442
        %4558 = vmatprep.subr.bf16.mxu0 %v4441
        %4559 = vmatpush2.bf16.msra.mxu0 %v4440
        %4560 = vmatprep.subr.bf16.mxu0 %v4439
        %4561 = vmatpush2.bf16.msra.mxu0 %v4438
        %4562 = vmatprep.subr.bf16.mxu0 %v4437
        %4563 = vmatpush2.bf16.msra.mxu0 %v4436
        %4564 = vmatprep.subr.bf16.mxu0 %v4435
        %4565 = vmatpush2.bf16.msra.mxu0 %v4434
        %4566 = vmatprep.subr.bf16.mxu0 %v4433
        %4567 = vmatpush2.bf16.msra.mxu0 %v4432
        %4568 = vmatprep.subr.bf16.mxu0 %v4431
        %4569 = vmatpush2.bf16.msra.mxu0 %v4430
        %4570 = vmatprep.subr.bf16.mxu0 %v4429
        %4571 = vmatpush2.bf16.msra.mxu0 %v4428
        %4572 = vmatprep.mubr.bf16.mxu0 %v4141
        %4573 = vmatmul.mubr.bf16.gmra.mxu0 %v4140
        %v4574 = vpop.f32.mrf.mxu0
        %v4575 = vadd.f32 %v4213, %v4574
        %v4576 = vpop.f32.mrf.mxu0
        %v4577 = vadd.f32 %v4217, %v4576
        %v4578 = vpop.f32.mrf.mxu0
        %v4579 = vadd.f32 %v4213, %v4578
        %v4580 = vpop.f32.mrf.mxu0
        %v4581 = vadd.f32 %v4217, %v4580
        %4582 = vdwg.mxu0
        %4583 = vmatprep.subr.bf16.mxu0 %v4459
        %4584 = vmatpush1.bf16.msra.mxu0 %v4458
        %4585 = vmatprep.subr.bf16.mxu0 %v4457
        %4586 = vmatpush1.bf16.msra.mxu0 %v4456
        %4587 = vmatprep.subr.bf16.mxu0 %v4455
        %4588 = vmatpush1.bf16.msra.mxu0 %v4454
        %4589 = vmatprep.subr.bf16.mxu0 %v4453
        %4590 = vmatpush1.bf16.msra.mxu0 %v4452
        %4591 = vmatprep.subr.bf16.mxu0 %v4451
        %4592 = vmatpush1.bf16.msra.mxu0 %v4450
        %4593 = vmatprep.subr.bf16.mxu0 %v4449
        %4594 = vmatpush1.bf16.msra.mxu0 %v4448
        %4595 = vmatprep.subr.bf16.mxu0 %v4447
        %4596 = vmatpush1.bf16.msra.mxu0 %v4446
        %4597 = vmatprep.subr.bf16.mxu0 %v4445
        %4598 = vmatpush1.bf16.msra.mxu0 %v4444
        %4599 = vmatprep.subr.bf16.mxu0 %v4475
        %4600 = vmatpush2.bf16.msra.mxu0 %v4474
        %4601 = vmatprep.subr.bf16.mxu0 %v4473
        %4602 = vmatpush2.bf16.msra.mxu0 %v4472
        %4603 = vmatprep.subr.bf16.mxu0 %v4471
        %4604 = vmatpush2.bf16.msra.mxu0 %v4470
        %4605 = vmatprep.subr.bf16.mxu0 %v4469
        %4606 = vmatpush2.bf16.msra.mxu0 %v4468
        %4607 = vmatprep.subr.bf16.mxu0 %v4467
        %4608 = vmatpush2.bf16.msra.mxu0 %v4466
        %4609 = vmatprep.subr.bf16.mxu0 %v4465
        %4610 = vmatpush2.bf16.msra.mxu0 %v4464
        %4611 = vmatprep.subr.bf16.mxu0 %v4463
        %4612 = vmatpush2.bf16.msra.mxu0 %v4462
        %4613 = vmatprep.subr.bf16.mxu0 %v4461
        %4614 = vmatpush2.bf16.msra.mxu0 %v4460
        %4615 = vmatprep.mubr.bf16.mxu0 %v4143
        %4616 = vmatmul.mubr.bf16.gmra.mxu0 %v4142
        %v4617 = vpop.f32.mrf.mxu0
        %v4618 = vadd.f32 %v4575, %v4617
        %v4619 = vpop.f32.mrf.mxu0
        %v4620 = vadd.f32 %v4577, %v4619
        %v4621 = vpop.f32.mrf.mxu0
        %v4622 = vadd.f32 %v4579, %v4621
        %v4623 = vpop.f32.mrf.mxu0
        %v4624 = vadd.f32 %v4581, %v4623
        %4625 = vdwg.mxu0
        %v4626 = vmax.f32 %v4618, 0.0
        %v4627 = vmax.f32 %v4620, 0.0
        %v4628 = vmax.f32 %v4622, 0.0
        %v4629 = vmax.f32 %v4624, 0.0
        %v4630 = vld [vmem:[#allocation4] sm:$0x1]
        %s4631 = vtos %v4630
        %v4632 = vpack.c.bf16 %v3532, %v3530
        %v4633 = vpack.c.bf16 %v3533, %v3531
        %v4634 = vpack.c.bf16 %v4628, %v4626
        %v4635 = vpack.c.bf16 %v4629, %v4627
        %v4636 = vld [vmem:[#allocation20] sm:$0xff]
        %v4637 = vld [vmem:[#allocation20 + $0x8] sm:$0xff]
        %v4638 = vld [vmem:[#allocation20 + $0x10] sm:$0xff]
        %v4639 = vld [vmem:[#allocation20 + $0x18] sm:$0xff]
        %v4640 = vld [vmem:[#allocation20 + $0x20] sm:$0xff]
        %v4641 = vld [vmem:[#allocation20 + $0x28] sm:$0xff]
        %v4642 = vld [vmem:[#allocation20 + $0x30] sm:$0xff]
        %v4643 = vld [vmem:[#allocation20 + $0x38] sm:$0xff]
        %v4644 = vld [vmem:[#allocation20 + $0x40] sm:$0xff]
        %v4645 = vld [vmem:[#allocation20 + $0x48] sm:$0xff]
        %v4646 = vld [vmem:[#allocation20 + $0x50] sm:$0xff]
        %v4647 = vld [vmem:[#allocation20 + $0x58] sm:$0xff]
        %v4648 = vld [vmem:[#allocation20 + $0x60] sm:$0xff]
        %v4649 = vld [vmem:[#allocation20 + $0x68] sm:$0xff]
        %v4650 = vld [vmem:[#allocation20 + $0x70] sm:$0xff]
        %v4651 = vld [vmem:[#allocation20 + $0x78] sm:$0xff]
        %v4652 = vld [vmem:[#allocation20 + $0x80] sm:$0xff]
        %v4653 = vld [vmem:[#allocation20 + $0x88] sm:$0xff]
        %v4654 = vld [vmem:[#allocation20 + $0x90] sm:$0xff]
        %v4655 = vld [vmem:[#allocation20 + $0x98] sm:$0xff]
        %v4656 = vld [vmem:[#allocation20 + $0xa0] sm:$0xff]
        %v4657 = vld [vmem:[#allocation20 + $0xa8] sm:$0xff]
        %v4658 = vld [vmem:[#allocation20 + $0xb0] sm:$0xff]
        %v4659 = vld [vmem:[#allocation20 + $0xb8] sm:$0xff]
        %v4660 = vld [vmem:[#allocation20 + $0xc0] sm:$0xff]
        %v4661 = vld [vmem:[#allocation20 + $0xc8] sm:$0xff]
        %v4662 = vld [vmem:[#allocation20 + $0xd0] sm:$0xff]
        %v4663 = vld [vmem:[#allocation20 + $0xd8] sm:$0xff]
        %v4664 = vld [vmem:[#allocation20 + $0xe0] sm:$0xff]
        %v4665 = vld [vmem:[#allocation20 + $0xe8] sm:$0xff]
        %v4666 = vld [vmem:[#allocation20 + $0xf0] sm:$0xff]
        %v4667 = vld [vmem:[#allocation20 + $0xf8] sm:$0xff]
        %v4668 = vld [vmem:[#allocation20 + $0x100] sm:$0xff]
        %v4669 = vld [vmem:[#allocation20 + $0x108] sm:$0xff]
        %v4670 = vld [vmem:[#allocation20 + $0x110] sm:$0xff]
        %v4671 = vld [vmem:[#allocation20 + $0x118] sm:$0xff]
        %v4672 = vld [vmem:[#allocation20 + $0x120] sm:$0xff]
        %v4673 = vld [vmem:[#allocation20 + $0x128] sm:$0xff]
        %v4674 = vld [vmem:[#allocation20 + $0x130] sm:$0xff]
        %v4675 = vld [vmem:[#allocation20 + $0x138] sm:$0xff]
        %v4676 = vld [vmem:[#allocation20 + $0x140] sm:$0xff]
        %v4677 = vld [vmem:[#allocation20 + $0x148] sm:$0xff]
        %v4678 = vld [vmem:[#allocation20 + $0x150] sm:$0xff]
        %v4679 = vld [vmem:[#allocation20 + $0x158] sm:$0xff]
        %v4680 = vld [vmem:[#allocation20 + $0x160] sm:$0xff]
        %v4681 = vld [vmem:[#allocation20 + $0x168] sm:$0xff]
        %v4682 = vld [vmem:[#allocation20 + $0x170] sm:$0xff]
        %v4683 = vld [vmem:[#allocation20 + $0x178] sm:$0xff]
        %v4684 = vld [vmem:[#allocation20 + $0x180] sm:$0xff]
        %v4685 = vld [vmem:[#allocation20 + $0x188] sm:$0xff]
        %v4686 = vld [vmem:[#allocation20 + $0x190] sm:$0xff]
        %v4687 = vld [vmem:[#allocation20 + $0x198] sm:$0xff]
        %v4688 = vld [vmem:[#allocation20 + $0x1a0] sm:$0xff]
        %v4689 = vld [vmem:[#allocation20 + $0x1a8] sm:$0xff]
        %v4690 = vld [vmem:[#allocation20 + $0x1b0] sm:$0xff]
        %v4691 = vld [vmem:[#allocation20 + $0x1b8] sm:$0xff]
        %v4692 = vld [vmem:[#allocation20 + $0x1c0] sm:$0xff]
        %v4693 = vld [vmem:[#allocation20 + $0x1c8] sm:$0xff]
        %v4694 = vld [vmem:[#allocation20 + $0x1d0] sm:$0xff]
        %v4695 = vld [vmem:[#allocation20 + $0x1d8] sm:$0xff]
        %v4696 = vld [vmem:[#allocation20 + $0x1e0] sm:$0xff]
        %v4697 = vld [vmem:[#allocation20 + $0x1e8] sm:$0xff]
        %v4698 = vld [vmem:[#allocation20 + $0x1f0] sm:$0xff]
        %v4699 = vld [vmem:[#allocation20 + $0x1f8] sm:$0xff]
        %v4700 = vld [vmem:[#allocation20 + $0x200] sm:$0xff]
        %v4701 = vld [vmem:[#allocation20 + $0x208] sm:$0xff]
        %v4702 = vld [vmem:[#allocation20 + $0x210] sm:$0xff]
        %v4703 = vld [vmem:[#allocation20 + $0x218] sm:$0xff]
        %v4704 = vld [vmem:[#allocation20 + $0x220] sm:$0xff]
        %v4705 = vld [vmem:[#allocation20 + $0x228] sm:$0xff]
        %v4706 = vld [vmem:[#allocation20 + $0x230] sm:$0xff]
        %v4707 = vld [vmem:[#allocation20 + $0x238] sm:$0xff]
        %v4708 = vld [vmem:[#allocation20 + $0x240] sm:$0xff]
        %v4709 = vld [vmem:[#allocation20 + $0x248] sm:$0xff]
        %v4710 = vld [vmem:[#allocation20 + $0x250] sm:$0xff]
        %v4711 = vld [vmem:[#allocation20 + $0x258] sm:$0xff]
        %v4712 = vld [vmem:[#allocation20 + $0x260] sm:$0xff]
        %v4713 = vld [vmem:[#allocation20 + $0x268] sm:$0xff]
        %v4714 = vld [vmem:[#allocation20 + $0x270] sm:$0xff]
        %v4715 = vld [vmem:[#allocation20 + $0x278] sm:$0xff]
        %v4716 = vld [vmem:[#allocation20 + $0x280] sm:$0xff]
        %v4717 = vld [vmem:[#allocation20 + $0x288] sm:$0xff]
        %v4718 = vld [vmem:[#allocation20 + $0x290] sm:$0xff]
        %v4719 = vld [vmem:[#allocation20 + $0x298] sm:$0xff]
        %v4720 = vld [vmem:[#allocation20 + $0x2a0] sm:$0xff]
        %v4721 = vld [vmem:[#allocation20 + $0x2a8] sm:$0xff]
        %v4722 = vld [vmem:[#allocation20 + $0x2b0] sm:$0xff]
        %v4723 = vld [vmem:[#allocation20 + $0x2b8] sm:$0xff]
        %v4724 = vld [vmem:[#allocation20 + $0x2c0] sm:$0xff]
        %v4725 = vld [vmem:[#allocation20 + $0x2c8] sm:$0xff]
        %v4726 = vld [vmem:[#allocation20 + $0x2d0] sm:$0xff]
        %v4727 = vld [vmem:[#allocation20 + $0x2d8] sm:$0xff]
        %v4728 = vld [vmem:[#allocation20 + $0x2e0] sm:$0xff]
        %v4729 = vld [vmem:[#allocation20 + $0x2e8] sm:$0xff]
        %v4730 = vld [vmem:[#allocation20 + $0x2f0] sm:$0xff]
        %v4731 = vld [vmem:[#allocation20 + $0x2f8] sm:$0xff]
        %v4828 = vunpack.c.l.b16 %v4636
        %v4829 = vunpack.c.h.b16 %v4636
        %v4830 = vunpack.c.l.b16 %v4637
        %v4831 = vunpack.c.h.b16 %v4637
        %v4832 = vunpack.c.l.b16 %v4638
        %v4833 = vunpack.c.h.b16 %v4638
        %v4834 = vunpack.c.l.b16 %v4639
        %v4835 = vunpack.c.h.b16 %v4639
        %v4836 = vunpack.c.l.b16 %v4640
        %v4837 = vunpack.c.h.b16 %v4640
        %v4838 = vunpack.c.l.b16 %v4641
        %v4839 = vunpack.c.h.b16 %v4641
        %v4840 = vunpack.c.l.b16 %v4642
        %v4841 = vunpack.c.h.b16 %v4642
        %v4842 = vunpack.c.l.b16 %v4643
        %v4843 = vunpack.c.h.b16 %v4643
        %v4844 = vunpack.c.l.b16 %v4644
        %v4845 = vunpack.c.h.b16 %v4644
        %v4846 = vunpack.c.l.b16 %v4645
        %v4847 = vunpack.c.h.b16 %v4645
        %v4848 = vunpack.c.l.b16 %v4646
        %v4849 = vunpack.c.h.b16 %v4646
        %v4850 = vunpack.c.l.b16 %v4647
        %v4851 = vunpack.c.h.b16 %v4647
        %v4852 = vunpack.c.l.b16 %v4648
        %v4853 = vunpack.c.h.b16 %v4648
        %v4854 = vunpack.c.l.b16 %v4649
        %v4855 = vunpack.c.h.b16 %v4649
        %v4856 = vunpack.c.l.b16 %v4650
        %v4857 = vunpack.c.h.b16 %v4650
        %v4858 = vunpack.c.l.b16 %v4651
        %v4859 = vunpack.c.h.b16 %v4651
        %v4860 = vunpack.c.l.b16 %v4652
        %v4861 = vunpack.c.h.b16 %v4652
        %v4862 = vunpack.c.l.b16 %v4653
        %v4863 = vunpack.c.h.b16 %v4653
        %v4864 = vunpack.c.l.b16 %v4654
        %v4865 = vunpack.c.h.b16 %v4654
        %v4866 = vunpack.c.l.b16 %v4655
        %v4867 = vunpack.c.h.b16 %v4655
        %v4868 = vunpack.c.l.b16 %v4656
        %v4869 = vunpack.c.h.b16 %v4656
        %v4870 = vunpack.c.l.b16 %v4657
        %v4871 = vunpack.c.h.b16 %v4657
        %v4872 = vunpack.c.l.b16 %v4658
        %v4873 = vunpack.c.h.b16 %v4658
        %v4874 = vunpack.c.l.b16 %v4659
        %v4875 = vunpack.c.h.b16 %v4659
        %v4876 = vunpack.c.l.b16 %v4660
        %v4877 = vunpack.c.h.b16 %v4660
        %v4878 = vunpack.c.l.b16 %v4661
        %v4879 = vunpack.c.h.b16 %v4661
        %v4880 = vunpack.c.l.b16 %v4662
        %v4881 = vunpack.c.h.b16 %v4662
        %v4882 = vunpack.c.l.b16 %v4663
        %v4883 = vunpack.c.h.b16 %v4663
        %v4884 = vunpack.c.l.b16 %v4664
        %v4885 = vunpack.c.h.b16 %v4664
        %v4886 = vunpack.c.l.b16 %v4665
        %v4887 = vunpack.c.h.b16 %v4665
        %v4888 = vunpack.c.l.b16 %v4666
        %v4889 = vunpack.c.h.b16 %v4666
        %v4890 = vunpack.c.l.b16 %v4667
        %v4891 = vunpack.c.h.b16 %v4667
        %v4892 = vunpack.c.l.b16 %v4668
        %v4893 = vunpack.c.h.b16 %v4668
        %v4894 = vunpack.c.l.b16 %v4669
        %v4895 = vunpack.c.h.b16 %v4669
        %v4896 = vunpack.c.l.b16 %v4670
        %v4897 = vunpack.c.h.b16 %v4670
        %v4898 = vunpack.c.l.b16 %v4671
        %v4899 = vunpack.c.h.b16 %v4671
        %v4900 = vunpack.c.l.b16 %v4672
        %v4901 = vunpack.c.h.b16 %v4672
        %v4902 = vunpack.c.l.b16 %v4673
        %v4903 = vunpack.c.h.b16 %v4673
        %v4904 = vunpack.c.l.b16 %v4674
        %v4905 = vunpack.c.h.b16 %v4674
        %v4906 = vunpack.c.l.b16 %v4675
        %v4907 = vunpack.c.h.b16 %v4675
        %v4908 = vunpack.c.l.b16 %v4676
        %v4909 = vunpack.c.h.b16 %v4676
        %v4910 = vunpack.c.l.b16 %v4677
        %v4911 = vunpack.c.h.b16 %v4677
        %v4912 = vunpack.c.l.b16 %v4678
        %v4913 = vunpack.c.h.b16 %v4678
        %v4914 = vunpack.c.l.b16 %v4679
        %v4915 = vunpack.c.h.b16 %v4679
        %v4916 = vunpack.c.l.b16 %v4680
        %v4917 = vunpack.c.h.b16 %v4680
        %v4918 = vunpack.c.l.b16 %v4681
        %v4919 = vunpack.c.h.b16 %v4681
        %v4920 = vunpack.c.l.b16 %v4682
        %v4921 = vunpack.c.h.b16 %v4682
        %v4922 = vunpack.c.l.b16 %v4683
        %v4923 = vunpack.c.h.b16 %v4683
        %v4924 = vunpack.c.l.b16 %v4684
        %v4925 = vunpack.c.h.b16 %v4684
        %v4926 = vunpack.c.l.b16 %v4685
        %v4927 = vunpack.c.h.b16 %v4685
        %v4928 = vunpack.c.l.b16 %v4686
        %v4929 = vunpack.c.h.b16 %v4686
        %v4930 = vunpack.c.l.b16 %v4687
        %v4931 = vunpack.c.h.b16 %v4687
        %v4932 = vunpack.c.l.b16 %v4688
        %v4933 = vunpack.c.h.b16 %v4688
        %v4934 = vunpack.c.l.b16 %v4689
        %v4935 = vunpack.c.h.b16 %v4689
        %v4936 = vunpack.c.l.b16 %v4690
        %v4937 = vunpack.c.h.b16 %v4690
        %v4938 = vunpack.c.l.b16 %v4691
        %v4939 = vunpack.c.h.b16 %v4691
        %v4940 = vunpack.c.l.b16 %v4692
        %v4941 = vunpack.c.h.b16 %v4692
        %v4942 = vunpack.c.l.b16 %v4693
        %v4943 = vunpack.c.h.b16 %v4693
        %v4944 = vunpack.c.l.b16 %v4694
        %v4945 = vunpack.c.h.b16 %v4694
        %v4946 = vunpack.c.l.b16 %v4695
        %v4947 = vunpack.c.h.b16 %v4695
        %v4948 = vunpack.c.l.b16 %v4696
        %v4949 = vunpack.c.h.b16 %v4696
        %v4950 = vunpack.c.l.b16 %v4697
        %v4951 = vunpack.c.h.b16 %v4697
        %v4952 = vunpack.c.l.b16 %v4698
        %v4953 = vunpack.c.h.b16 %v4698
        %v4954 = vunpack.c.l.b16 %v4699
        %v4955 = vunpack.c.h.b16 %v4699
        %v4956 = vunpack.c.l.b16 %v4700
        %v4957 = vunpack.c.h.b16 %v4700
        %v4958 = vunpack.c.l.b16 %v4701
        %v4959 = vunpack.c.h.b16 %v4701
        %v4960 = vunpack.c.l.b16 %v4702
        %v4961 = vunpack.c.h.b16 %v4702
        %v4962 = vunpack.c.l.b16 %v4703
        %v4963 = vunpack.c.h.b16 %v4703
        %v4964 = vunpack.c.l.b16 %v4704
        %v4965 = vunpack.c.h.b16 %v4704
        %v4966 = vunpack.c.l.b16 %v4705
        %v4967 = vunpack.c.h.b16 %v4705
        %v4968 = vunpack.c.l.b16 %v4706
        %v4969 = vunpack.c.h.b16 %v4706
        %v4970 = vunpack.c.l.b16 %v4707
        %v4971 = vunpack.c.h.b16 %v4707
        %v4972 = vunpack.c.l.b16 %v4708
        %v4973 = vunpack.c.h.b16 %v4708
        %v4974 = vunpack.c.l.b16 %v4709
        %v4975 = vunpack.c.h.b16 %v4709
        %v4976 = vunpack.c.l.b16 %v4710
        %v4977 = vunpack.c.h.b16 %v4710
        %v4978 = vunpack.c.l.b16 %v4711
        %v4979 = vunpack.c.h.b16 %v4711
        %v4980 = vunpack.c.l.b16 %v4712
        %v4981 = vunpack.c.h.b16 %v4712
        %v4982 = vunpack.c.l.b16 %v4713
        %v4983 = vunpack.c.h.b16 %v4713
        %v4984 = vunpack.c.l.b16 %v4714
        %v4985 = vunpack.c.h.b16 %v4714
        %v4986 = vunpack.c.l.b16 %v4715
        %v4987 = vunpack.c.h.b16 %v4715
        %v4988 = vunpack.c.l.b16 %v4716
        %v4989 = vunpack.c.h.b16 %v4716
        %v4990 = vunpack.c.l.b16 %v4717
        %v4991 = vunpack.c.h.b16 %v4717
        %v4992 = vunpack.c.l.b16 %v4718
        %v4993 = vunpack.c.h.b16 %v4718
        %v4994 = vunpack.c.l.b16 %v4719
        %v4995 = vunpack.c.h.b16 %v4719
        %v4996 = vunpack.c.l.b16 %v4720
        %v4997 = vunpack.c.h.b16 %v4720
        %v4998 = vunpack.c.l.b16 %v4721
        %v4999 = vunpack.c.h.b16 %v4721
        %v5000 = vunpack.c.l.b16 %v4722
        %v5001 = vunpack.c.h.b16 %v4722
        %v5002 = vunpack.c.l.b16 %v4723
        %v5003 = vunpack.c.h.b16 %v4723
        %v5004 = vunpack.c.l.b16 %v4724
        %v5005 = vunpack.c.h.b16 %v4724
        %v5006 = vunpack.c.l.b16 %v4725
        %v5007 = vunpack.c.h.b16 %v4725
        %v5008 = vunpack.c.l.b16 %v4726
        %v5009 = vunpack.c.h.b16 %v4726
        %v5010 = vunpack.c.l.b16 %v4727
        %v5011 = vunpack.c.h.b16 %v4727
        %v5012 = vunpack.c.l.b16 %v4728
        %v5013 = vunpack.c.h.b16 %v4728
        %v5014 = vunpack.c.l.b16 %v4729
        %v5015 = vunpack.c.h.b16 %v4729
        %v5016 = vunpack.c.l.b16 %v4730
        %v5017 = vunpack.c.h.b16 %v4730
        %v5018 = vunpack.c.l.b16 %v4731
        %v5019 = vunpack.c.h.b16 %v4731
        %v5020 = vpack.c.b16 %v4834, %v4828
        %v5021 = vpack.c.b16 %v4835, %v4829
        %v5022 = vpack.c.b16 %v4836, %v4830
        %v5023 = vpack.c.b16 %v4837, %v4831
        %v5024 = vpack.c.b16 %v4838, %v4832
        %v5025 = vpack.c.b16 %v4839, %v4833
        %v5026 = vpack.c.b16 %v4846, %v4840
        %v5027 = vpack.c.b16 %v4847, %v4841
        %v5028 = vpack.c.b16 %v4848, %v4842
        %v5029 = vpack.c.b16 %v4849, %v4843
        %v5030 = vpack.c.b16 %v4850, %v4844
        %v5031 = vpack.c.b16 %v4851, %v4845
        %v5032 = vpack.c.b16 %v4858, %v4852
        %v5033 = vpack.c.b16 %v4859, %v4853
        %v5034 = vpack.c.b16 %v4860, %v4854
        %v5035 = vpack.c.b16 %v4861, %v4855
        %v5036 = vpack.c.b16 %v4862, %v4856
        %v5037 = vpack.c.b16 %v4863, %v4857
        %v5038 = vpack.c.b16 %v4870, %v4864
        %v5039 = vpack.c.b16 %v4871, %v4865
        %v5040 = vpack.c.b16 %v4872, %v4866
        %v5041 = vpack.c.b16 %v4873, %v4867
        %v5042 = vpack.c.b16 %v4874, %v4868
        %v5043 = vpack.c.b16 %v4875, %v4869
        %v5044 = vpack.c.b16 %v4882, %v4876
        %v5045 = vpack.c.b16 %v4883, %v4877
        %v5046 = vpack.c.b16 %v4884, %v4878
        %v5047 = vpack.c.b16 %v4885, %v4879
        %v5048 = vpack.c.b16 %v4886, %v4880
        %v5049 = vpack.c.b16 %v4887, %v4881
        %v5050 = vpack.c.b16 %v4894, %v4888
        %v5051 = vpack.c.b16 %v4895, %v4889
        %v5052 = vpack.c.b16 %v4896, %v4890
        %v5053 = vpack.c.b16 %v4897, %v4891
        %v5054 = vpack.c.b16 %v4898, %v4892
        %v5055 = vpack.c.b16 %v4899, %v4893
        %v5056 = vpack.c.b16 %v4906, %v4900
        %v5057 = vpack.c.b16 %v4907, %v4901
        %v5058 = vpack.c.b16 %v4908, %v4902
        %v5059 = vpack.c.b16 %v4909, %v4903
        %v5060 = vpack.c.b16 %v4910, %v4904
        %v5061 = vpack.c.b16 %v4911, %v4905
        %v5062 = vpack.c.b16 %v4918, %v4912
        %v5063 = vpack.c.b16 %v4919, %v4913
        %v5064 = vpack.c.b16 %v4920, %v4914
        %v5065 = vpack.c.b16 %v4921, %v4915
        %v5066 = vpack.c.b16 %v4922, %v4916
        %v5067 = vpack.c.b16 %v4923, %v4917
        %v5068 = vpack.c.b16 %v4930, %v4924
        %v5069 = vpack.c.b16 %v4931, %v4925
        %v5070 = vpack.c.b16 %v4932, %v4926
        %v5071 = vpack.c.b16 %v4933, %v4927
        %v5072 = vpack.c.b16 %v4934, %v4928
        %v5073 = vpack.c.b16 %v4935, %v4929
        %v5074 = vpack.c.b16 %v4942, %v4936
        %v5075 = vpack.c.b16 %v4943, %v4937
        %v5076 = vpack.c.b16 %v4944, %v4938
        %v5077 = vpack.c.b16 %v4945, %v4939
        %v5078 = vpack.c.b16 %v4946, %v4940
        %v5079 = vpack.c.b16 %v4947, %v4941
        %v5080 = vpack.c.b16 %v4954, %v4948
        %v5081 = vpack.c.b16 %v4955, %v4949
        %v5082 = vpack.c.b16 %v4956, %v4950
        %v5083 = vpack.c.b16 %v4957, %v4951
        %v5084 = vpack.c.b16 %v4958, %v4952
        %v5085 = vpack.c.b16 %v4959, %v4953
        %v5086 = vpack.c.b16 %v4966, %v4960
        %v5087 = vpack.c.b16 %v4967, %v4961
        %v5088 = vpack.c.b16 %v4968, %v4962
        %v5089 = vpack.c.b16 %v4969, %v4963
        %v5090 = vpack.c.b16 %v4970, %v4964
        %v5091 = vpack.c.b16 %v4971, %v4965
        %v5092 = vpack.c.b16 %v4978, %v4972
        %v5093 = vpack.c.b16 %v4979, %v4973
        %v5094 = vpack.c.b16 %v4980, %v4974
        %v5095 = vpack.c.b16 %v4981, %v4975
        %v5096 = vpack.c.b16 %v4982, %v4976
        %v5097 = vpack.c.b16 %v4983, %v4977
        %v5098 = vpack.c.b16 %v4990, %v4984
        %v5099 = vpack.c.b16 %v4991, %v4985
        %v5100 = vpack.c.b16 %v4992, %v4986
        %v5101 = vpack.c.b16 %v4993, %v4987
        %v5102 = vpack.c.b16 %v4994, %v4988
        %v5103 = vpack.c.b16 %v4995, %v4989
        %v5104 = vpack.c.b16 %v5002, %v4996
        %v5105 = vpack.c.b16 %v5003, %v4997
        %v5106 = vpack.c.b16 %v5004, %v4998
        %v5107 = vpack.c.b16 %v5005, %v4999
        %v5108 = vpack.c.b16 %v5006, %v5000
        %v5109 = vpack.c.b16 %v5007, %v5001
        %v5110 = vpack.c.b16 %v5014, %v5008
        %v5111 = vpack.c.b16 %v5015, %v5009
        %v5112 = vpack.c.b16 %v5016, %v5010
        %v5113 = vpack.c.b16 %v5017, %v5011
        %v5114 = vpack.c.b16 %v5018, %v5012
        %v5115 = vpack.c.b16 %v5019, %v5013
        %5212 = vmatprep.subr.bf16.mxu0 %v5063
        %5213 = vmatpush1.bf16.msra.mxu0 %v5062
        %5214 = vmatprep.subr.bf16.mxu0 %v5057
        %5215 = vmatpush1.bf16.msra.mxu0 %v5056
        %5216 = vmatprep.subr.bf16.mxu0 %v5051
        %5217 = vmatpush1.bf16.msra.mxu0 %v5050
        %5218 = vmatprep.subr.bf16.mxu0 %v5045
        %5219 = vmatpush1.bf16.msra.mxu0 %v5044
        %5220 = vmatprep.subr.bf16.mxu0 %v5039
        %5221 = vmatpush1.bf16.msra.mxu0 %v5038
        %5222 = vmatprep.subr.bf16.mxu0 %v5033
        %5223 = vmatpush1.bf16.msra.mxu0 %v5032
        %5224 = vmatprep.subr.bf16.mxu0 %v5027
        %5225 = vmatpush1.bf16.msra.mxu0 %v5026
        %5226 = vmatprep.subr.bf16.mxu0 %v5021
        %5227 = vmatpush1.bf16.msra.mxu0 %v5020
        %5228 = vmatprep.subr.bf16.mxu0 %v5111
        %5229 = vmatpush2.bf16.msra.mxu0 %v5110
        %5230 = vmatprep.subr.bf16.mxu0 %v5105
        %5231 = vmatpush2.bf16.msra.mxu0 %v5104
        %5232 = vmatprep.subr.bf16.mxu0 %v5099
        %5233 = vmatpush2.bf16.msra.mxu0 %v5098
        %5234 = vmatprep.subr.bf16.mxu0 %v5093
        %5235 = vmatpush2.bf16.msra.mxu0 %v5092
        %5236 = vmatprep.subr.bf16.mxu0 %v5087
        %5237 = vmatpush2.bf16.msra.mxu0 %v5086
        %5238 = vmatprep.subr.bf16.mxu0 %v5081
        %5239 = vmatpush2.bf16.msra.mxu0 %v5080
        %5240 = vmatprep.subr.bf16.mxu0 %v5075
        %5241 = vmatpush2.bf16.msra.mxu0 %v5074
        %5242 = vmatprep.subr.bf16.mxu0 %v5069
        %5243 = vmatpush2.bf16.msra.mxu0 %v5068
        %5244 = vmatprep.mubr.bf16.mxu0 %v4635
        %5245 = vmatmul.mubr.bf16.gmra.mxu0 %v4634
        %v5246 = vpop.f32.mrf.mxu0
        %v5247 = vadd.f32 0.0, %v5246
        %v5248 = vpop.f32.mrf.mxu0
        %v5249 = vadd.f32 0.0, %v5248
        %v5250 = vpop.f32.mrf.mxu0
        %v5251 = vadd.f32 0.0, %v5250
        %v5252 = vpop.f32.mrf.mxu0
        %v5253 = vadd.f32 0.0, %v5252
        %5254 = vdwg.mxu0
        %5255 = vmatprep.subr.bf16.mxu0 %v5065
        %5256 = vmatpush1.bf16.msra.mxu0 %v5064
        %5257 = vmatprep.subr.bf16.mxu0 %v5059
        %5258 = vmatpush1.bf16.msra.mxu0 %v5058
        %5259 = vmatprep.subr.bf16.mxu0 %v5053
        %5260 = vmatpush1.bf16.msra.mxu0 %v5052
        %5261 = vmatprep.subr.bf16.mxu0 %v5047
        %5262 = vmatpush1.bf16.msra.mxu0 %v5046
        %5263 = vmatprep.subr.bf16.mxu0 %v5041
        %5264 = vmatpush1.bf16.msra.mxu0 %v5040
        %5265 = vmatprep.subr.bf16.mxu0 %v5035
        %5266 = vmatpush1.bf16.msra.mxu0 %v5034
        %5267 = vmatprep.subr.bf16.mxu0 %v5029
        %5268 = vmatpush1.bf16.msra.mxu0 %v5028
        %5269 = vmatprep.subr.bf16.mxu0 %v5023
        %5270 = vmatpush1.bf16.msra.mxu0 %v5022
        %5271 = vmatprep.subr.bf16.mxu0 %v5113
        %5272 = vmatpush2.bf16.msra.mxu0 %v5112
        %5273 = vmatprep.subr.bf16.mxu0 %v5107
        %5274 = vmatpush2.bf16.msra.mxu0 %v5106
        %5275 = vmatprep.subr.bf16.mxu0 %v5101
        %5276 = vmatpush2.bf16.msra.mxu0 %v5100
        %5277 = vmatprep.subr.bf16.mxu0 %v5095
        %5278 = vmatpush2.bf16.msra.mxu0 %v5094
        %5279 = vmatprep.subr.bf16.mxu0 %v5089
        %5280 = vmatpush2.bf16.msra.mxu0 %v5088
        %5281 = vmatprep.subr.bf16.mxu0 %v5083
        %5282 = vmatpush2.bf16.msra.mxu0 %v5082
        %5283 = vmatprep.subr.bf16.mxu0 %v5077
        %5284 = vmatpush2.bf16.msra.mxu0 %v5076
        %5285 = vmatprep.subr.bf16.mxu0 %v5071
        %5286 = vmatpush2.bf16.msra.mxu0 %v5070
        %5287 = vmatprep.mubr.bf16.mxu0 %v4635
        %5288 = vmatmul.mubr.bf16.gmra.mxu0 %v4634
        %v5289 = vpop.f32.mrf.mxu0
        %v5290 = vadd.f32 0.0, %v5289
        %v5291 = vpop.f32.mrf.mxu0
        %v5292 = vadd.f32 0.0, %v5291
        %v5293 = vpop.f32.mrf.mxu0
        %v5294 = vadd.f32 0.0, %v5293
        %v5295 = vpop.f32.mrf.mxu0
        %v5296 = vadd.f32 0.0, %v5295
        %5297 = vdwg.mxu0
        %5298 = vmatprep.subr.bf16.mxu0 %v5067
        %5299 = vmatpush1.bf16.msra.mxu0 %v5066
        %5300 = vmatprep.subr.bf16.mxu0 %v5061
        %5301 = vmatpush1.bf16.msra.mxu0 %v5060
        %5302 = vmatprep.subr.bf16.mxu0 %v5055
        %5303 = vmatpush1.bf16.msra.mxu0 %v5054
        %5304 = vmatprep.subr.bf16.mxu0 %v5049
        %5305 = vmatpush1.bf16.msra.mxu0 %v5048
        %5306 = vmatprep.subr.bf16.mxu0 %v5043
        %5307 = vmatpush1.bf16.msra.mxu0 %v5042
        %5308 = vmatprep.subr.bf16.mxu0 %v5037
        %5309 = vmatpush1.bf16.msra.mxu0 %v5036
        %5310 = vmatprep.subr.bf16.mxu0 %v5031
        %5311 = vmatpush1.bf16.msra.mxu0 %v5030
        %5312 = vmatprep.subr.bf16.mxu0 %v5025
        %5313 = vmatpush1.bf16.msra.mxu0 %v5024
        %5314 = vmatprep.subr.bf16.mxu0 %v5115
        %5315 = vmatpush2.bf16.msra.mxu0 %v5114
        %5316 = vmatprep.subr.bf16.mxu0 %v5109
        %5317 = vmatpush2.bf16.msra.mxu0 %v5108
        %5318 = vmatprep.subr.bf16.mxu0 %v5103
        %5319 = vmatpush2.bf16.msra.mxu0 %v5102
        %5320 = vmatprep.subr.bf16.mxu0 %v5097
        %5321 = vmatpush2.bf16.msra.mxu0 %v5096
        %5322 = vmatprep.subr.bf16.mxu0 %v5091
        %5323 = vmatpush2.bf16.msra.mxu0 %v5090
        %5324 = vmatprep.subr.bf16.mxu0 %v5085
        %5325 = vmatpush2.bf16.msra.mxu0 %v5084
        %5326 = vmatprep.subr.bf16.mxu0 %v5079
        %5327 = vmatpush2.bf16.msra.mxu0 %v5078
        %5328 = vmatprep.subr.bf16.mxu0 %v5073
        %5329 = vmatpush2.bf16.msra.mxu0 %v5072
        %5330 = vmatprep.mubr.bf16.mxu0 %v4635
        %5331 = vmatmul.mubr.bf16.gmra.mxu0 %v4634
        %v5332 = vpop.f32.mrf.mxu0
        %v5333 = vadd.f32 0.0, %v5332
        %v5334 = vpop.f32.mrf.mxu0
        %v5335 = vadd.f32 0.0, %v5334
        %v5336 = vpop.f32.mrf.mxu0
        %v5337 = vadd.f32 0.0, %v5336
        %v5338 = vpop.f32.mrf.mxu0
        %v5339 = vadd.f32 0.0, %v5338
        %5340 = vdwg.mxu0
        %v5341 = vld [vmem:[#allocation22] sm:$0xff]
        %v5342 = vld [vmem:[#allocation22 + $0x8] sm:$0xff]
        %v5343 = vld [vmem:[#allocation22 + $0x18] sm:$0xff]
        %v5344 = vld [vmem:[#allocation22 + $0x20] sm:$0xff]
        %v5345 = vld [vmem:[#allocation22 + $0x30] sm:$0xff]
        %v5346 = vld [vmem:[#allocation22 + $0x38] sm:$0xff]
        %v5347 = vld [vmem:[#allocation22 + $0x48] sm:$0xff]
        %v5348 = vld [vmem:[#allocation22 + $0x50] sm:$0xff]
        %v5349 = vld [vmem:[#allocation22 + $0x60] sm:$0xff]
        %v5350 = vld [vmem:[#allocation22 + $0x68] sm:$0xff]
        %v5351 = vld [vmem:[#allocation22 + $0x78] sm:$0xff]
        %v5352 = vld [vmem:[#allocation22 + $0x80] sm:$0xff]
        %v5353 = vld [vmem:[#allocation22 + $0x90] sm:$0xff]
        %v5354 = vld [vmem:[#allocation22 + $0x98] sm:$0xff]
        %v5355 = vld [vmem:[#allocation22 + $0xa8] sm:$0xff]
        %v5356 = vld [vmem:[#allocation22 + $0xb0] sm:$0xff]
        %v5357 = vld [vmem:[#allocation22 + $0xc0] sm:$0xff]
        %v5358 = vld [vmem:[#allocation22 + $0xc8] sm:$0xff]
        %v5359 = vld [vmem:[#allocation22 + $0xd8] sm:$0xff]
        %v5360 = vld [vmem:[#allocation22 + $0xe0] sm:$0xff]
        %v5361 = vld [vmem:[#allocation22 + $0xf0] sm:$0xff]
        %v5362 = vld [vmem:[#allocation22 + $0xf8] sm:$0xff]
        %v5363 = vld [vmem:[#allocation22 + $0x108] sm:$0xff]
        %v5364 = vld [vmem:[#allocation22 + $0x110] sm:$0xff]
        %v5365 = vld [vmem:[#allocation22 + $0x120] sm:$0xff]
        %v5366 = vld [vmem:[#allocation22 + $0x128] sm:$0xff]
        %v5367 = vld [vmem:[#allocation22 + $0x138] sm:$0xff]
        %v5368 = vld [vmem:[#allocation22 + $0x140] sm:$0xff]
        %v5369 = vld [vmem:[#allocation22 + $0x150] sm:$0xff]
        %v5370 = vld [vmem:[#allocation22 + $0x158] sm:$0xff]
        %v5371 = vld [vmem:[#allocation22 + $0x168] sm:$0xff]
        %v5372 = vld [vmem:[#allocation22 + $0x170] sm:$0xff]
        %v5373 = vld [vmem:[#allocation22 + $0x180] sm:$0xff]
        %v5374 = vld [vmem:[#allocation22 + $0x188] sm:$0xff]
        %v5375 = vld [vmem:[#allocation22 + $0x198] sm:$0xff]
        %v5376 = vld [vmem:[#allocation22 + $0x1a0] sm:$0xff]
        %v5377 = vld [vmem:[#allocation22 + $0x1b0] sm:$0xff]
        %v5378 = vld [vmem:[#allocation22 + $0x1b8] sm:$0xff]
        %v5379 = vld [vmem:[#allocation22 + $0x1c8] sm:$0xff]
        %v5380 = vld [vmem:[#allocation22 + $0x1d0] sm:$0xff]
        %v5381 = vld [vmem:[#allocation22 + $0x1e0] sm:$0xff]
        %v5382 = vld [vmem:[#allocation22 + $0x1e8] sm:$0xff]
        %v5383 = vld [vmem:[#allocation22 + $0x1f8] sm:$0xff]
        %v5384 = vld [vmem:[#allocation22 + $0x200] sm:$0xff]
        %v5385 = vld [vmem:[#allocation22 + $0x210] sm:$0xff]
        %v5386 = vld [vmem:[#allocation22 + $0x218] sm:$0xff]
        %v5387 = vld [vmem:[#allocation22 + $0x228] sm:$0xff]
        %v5388 = vld [vmem:[#allocation22 + $0x230] sm:$0xff]
        %v5389 = vld [vmem:[#allocation22 + $0x240] sm:$0xff]
        %v5390 = vld [vmem:[#allocation22 + $0x248] sm:$0xff]
        %v5391 = vld [vmem:[#allocation22 + $0x258] sm:$0xff]
        %v5392 = vld [vmem:[#allocation22 + $0x260] sm:$0xff]
        %v5393 = vld [vmem:[#allocation22 + $0x270] sm:$0xff]
        %v5394 = vld [vmem:[#allocation22 + $0x278] sm:$0xff]
        %v5395 = vld [vmem:[#allocation22 + $0x288] sm:$0xff]
        %v5396 = vld [vmem:[#allocation22 + $0x290] sm:$0xff]
        %v5397 = vld [vmem:[#allocation22 + $0x2a0] sm:$0xff]
        %v5398 = vld [vmem:[#allocation22 + $0x2a8] sm:$0xff]
        %v5399 = vld [vmem:[#allocation22 + $0x2b8] sm:$0xff]
        %v5400 = vld [vmem:[#allocation22 + $0x2c0] sm:$0xff]
        %v5401 = vld [vmem:[#allocation22 + $0x2d0] sm:$0xff]
        %v5402 = vld [vmem:[#allocation22 + $0x2d8] sm:$0xff]
        %v5403 = vld [vmem:[#allocation22 + $0x2e8] sm:$0xff]
        %v5404 = vld [vmem:[#allocation22 + $0x2f0] sm:$0xff]
        %v5469 = vunpack.c.l.b16 %v5341
        %v5470 = vunpack.c.h.b16 %v5341
        %v5471 = vunpack.c.l.b16 %v5342
        %v5472 = vunpack.c.h.b16 %v5342
        %v5473 = vunpack.c.l.b16 %v5343
        %v5474 = vunpack.c.h.b16 %v5343
        %v5475 = vunpack.c.l.b16 %v5344
        %v5476 = vunpack.c.h.b16 %v5344
        %v5477 = vunpack.c.l.b16 %v5345
        %v5478 = vunpack.c.h.b16 %v5345
        %v5479 = vunpack.c.l.b16 %v5346
        %v5480 = vunpack.c.h.b16 %v5346
        %v5481 = vunpack.c.l.b16 %v5347
        %v5482 = vunpack.c.h.b16 %v5347
        %v5483 = vunpack.c.l.b16 %v5348
        %v5484 = vunpack.c.h.b16 %v5348
        %v5485 = vunpack.c.l.b16 %v5349
        %v5486 = vunpack.c.h.b16 %v5349
        %v5487 = vunpack.c.l.b16 %v5350
        %v5488 = vunpack.c.h.b16 %v5350
        %v5489 = vunpack.c.l.b16 %v5351
        %v5490 = vunpack.c.h.b16 %v5351
        %v5491 = vunpack.c.l.b16 %v5352
        %v5492 = vunpack.c.h.b16 %v5352
        %v5493 = vunpack.c.l.b16 %v5353
        %v5494 = vunpack.c.h.b16 %v5353
        %v5495 = vunpack.c.l.b16 %v5354
        %v5496 = vunpack.c.h.b16 %v5354
        %v5497 = vunpack.c.l.b16 %v5355
        %v5498 = vunpack.c.h.b16 %v5355
        %v5499 = vunpack.c.l.b16 %v5356
        %v5500 = vunpack.c.h.b16 %v5356
        %v5501 = vunpack.c.l.b16 %v5357
        %v5502 = vunpack.c.h.b16 %v5357
        %v5503 = vunpack.c.l.b16 %v5358
        %v5504 = vunpack.c.h.b16 %v5358
        %v5505 = vunpack.c.l.b16 %v5359
        %v5506 = vunpack.c.h.b16 %v5359
        %v5507 = vunpack.c.l.b16 %v5360
        %v5508 = vunpack.c.h.b16 %v5360
        %v5509 = vunpack.c.l.b16 %v5361
        %v5510 = vunpack.c.h.b16 %v5361
        %v5511 = vunpack.c.l.b16 %v5362
        %v5512 = vunpack.c.h.b16 %v5362
        %v5513 = vunpack.c.l.b16 %v5363
        %v5514 = vunpack.c.h.b16 %v5363
        %v5515 = vunpack.c.l.b16 %v5364
        %v5516 = vunpack.c.h.b16 %v5364
        %v5517 = vunpack.c.l.b16 %v5365
        %v5518 = vunpack.c.h.b16 %v5365
        %v5519 = vunpack.c.l.b16 %v5366
        %v5520 = vunpack.c.h.b16 %v5366
        %v5521 = vunpack.c.l.b16 %v5367
        %v5522 = vunpack.c.h.b16 %v5367
        %v5523 = vunpack.c.l.b16 %v5368
        %v5524 = vunpack.c.h.b16 %v5368
        %v5525 = vunpack.c.l.b16 %v5369
        %v5526 = vunpack.c.h.b16 %v5369
        %v5527 = vunpack.c.l.b16 %v5370
        %v5528 = vunpack.c.h.b16 %v5370
        %v5529 = vunpack.c.l.b16 %v5371
        %v5530 = vunpack.c.h.b16 %v5371
        %v5531 = vunpack.c.l.b16 %v5372
        %v5532 = vunpack.c.h.b16 %v5372
        %v5533 = vunpack.c.l.b16 %v5373
        %v5534 = vunpack.c.h.b16 %v5373
        %v5535 = vunpack.c.l.b16 %v5374
        %v5536 = vunpack.c.h.b16 %v5374
        %v5537 = vunpack.c.l.b16 %v5375
        %v5538 = vunpack.c.h.b16 %v5375
        %v5539 = vunpack.c.l.b16 %v5376
        %v5540 = vunpack.c.h.b16 %v5376
        %v5541 = vunpack.c.l.b16 %v5377
        %v5542 = vunpack.c.h.b16 %v5377
        %v5543 = vunpack.c.l.b16 %v5378
        %v5544 = vunpack.c.h.b16 %v5378
        %v5545 = vunpack.c.l.b16 %v5379
        %v5546 = vunpack.c.h.b16 %v5379
        %v5547 = vunpack.c.l.b16 %v5380
        %v5548 = vunpack.c.h.b16 %v5380
        %v5549 = vunpack.c.l.b16 %v5381
        %v5550 = vunpack.c.h.b16 %v5381
        %v5551 = vunpack.c.l.b16 %v5382
        %v5552 = vunpack.c.h.b16 %v5382
        %v5553 = vunpack.c.l.b16 %v5383
        %v5554 = vunpack.c.h.b16 %v5383
        %v5555 = vunpack.c.l.b16 %v5384
        %v5556 = vunpack.c.h.b16 %v5384
        %v5557 = vunpack.c.l.b16 %v5385
        %v5558 = vunpack.c.h.b16 %v5385
        %v5559 = vunpack.c.l.b16 %v5386
        %v5560 = vunpack.c.h.b16 %v5386
        %v5561 = vunpack.c.l.b16 %v5387
        %v5562 = vunpack.c.h.b16 %v5387
        %v5563 = vunpack.c.l.b16 %v5388
        %v5564 = vunpack.c.h.b16 %v5388
        %v5565 = vunpack.c.l.b16 %v5389
        %v5566 = vunpack.c.h.b16 %v5389
        %v5567 = vunpack.c.l.b16 %v5390
        %v5568 = vunpack.c.h.b16 %v5390
        %v5569 = vunpack.c.l.b16 %v5391
        %v5570 = vunpack.c.h.b16 %v5391
        %v5571 = vunpack.c.l.b16 %v5392
        %v5572 = vunpack.c.h.b16 %v5392
        %v5573 = vunpack.c.l.b16 %v5393
        %v5574 = vunpack.c.h.b16 %v5393
        %v5575 = vunpack.c.l.b16 %v5394
        %v5576 = vunpack.c.h.b16 %v5394
        %v5577 = vunpack.c.l.b16 %v5395
        %v5578 = vunpack.c.h.b16 %v5395
        %v5579 = vunpack.c.l.b16 %v5396
        %v5580 = vunpack.c.h.b16 %v5396
        %v5581 = vunpack.c.l.b16 %v5397
        %v5582 = vunpack.c.h.b16 %v5397
        %v5583 = vunpack.c.l.b16 %v5398
        %v5584 = vunpack.c.h.b16 %v5398
        %v5585 = vunpack.c.l.b16 %v5399
        %v5586 = vunpack.c.h.b16 %v5399
        %v5587 = vunpack.c.l.b16 %v5400
        %v5588 = vunpack.c.h.b16 %v5400
        %v5589 = vunpack.c.l.b16 %v5401
        %v5590 = vunpack.c.h.b16 %v5401
        %v5591 = vunpack.c.l.b16 %v5402
        %v5592 = vunpack.c.h.b16 %v5402
        %v5593 = vunpack.c.l.b16 %v5403
        %v5594 = vunpack.c.h.b16 %v5403
        %v5595 = vunpack.c.l.b16 %v5404
        %v5596 = vunpack.c.h.b16 %v5404
        %v5597 = vpack.c.b16 %v5473, %v5469
        %v5598 = vpack.c.b16 %v5474, %v5470
        %v5599 = vpack.c.b16 %v5475, %v5471
        %v5600 = vpack.c.b16 %v5476, %v5472
        %v5601 = vpack.c.b16 %v5481, %v5477
        %v5602 = vpack.c.b16 %v5482, %v5478
        %v5603 = vpack.c.b16 %v5483, %v5479
        %v5604 = vpack.c.b16 %v5484, %v5480
        %v5605 = vpack.c.b16 %v5489, %v5485
        %v5606 = vpack.c.b16 %v5490, %v5486
        %v5607 = vpack.c.b16 %v5491, %v5487
        %v5608 = vpack.c.b16 %v5492, %v5488
        %v5609 = vpack.c.b16 %v5497, %v5493
        %v5610 = vpack.c.b16 %v5498, %v5494
        %v5611 = vpack.c.b16 %v5499, %v5495
        %v5612 = vpack.c.b16 %v5500, %v5496
        %v5613 = vpack.c.b16 %v5505, %v5501
        %v5614 = vpack.c.b16 %v5506, %v5502
        %v5615 = vpack.c.b16 %v5507, %v5503
        %v5616 = vpack.c.b16 %v5508, %v5504
        %v5617 = vpack.c.b16 %v5513, %v5509
        %v5618 = vpack.c.b16 %v5514, %v5510
        %v5619 = vpack.c.b16 %v5515, %v5511
        %v5620 = vpack.c.b16 %v5516, %v5512
        %v5621 = vpack.c.b16 %v5521, %v5517
        %v5622 = vpack.c.b16 %v5522, %v5518
        %v5623 = vpack.c.b16 %v5523, %v5519
        %v5624 = vpack.c.b16 %v5524, %v5520
        %v5625 = vpack.c.b16 %v5529, %v5525
        %v5626 = vpack.c.b16 %v5530, %v5526
        %v5627 = vpack.c.b16 %v5531, %v5527
        %v5628 = vpack.c.b16 %v5532, %v5528
        %v5629 = vpack.c.b16 %v5537, %v5533
        %v5630 = vpack.c.b16 %v5538, %v5534
        %v5631 = vpack.c.b16 %v5539, %v5535
        %v5632 = vpack.c.b16 %v5540, %v5536
        %v5633 = vpack.c.b16 %v5545, %v5541
        %v5634 = vpack.c.b16 %v5546, %v5542
        %v5635 = vpack.c.b16 %v5547, %v5543
        %v5636 = vpack.c.b16 %v5548, %v5544
        %v5637 = vpack.c.b16 %v5553, %v5549
        %v5638 = vpack.c.b16 %v5554, %v5550
        %v5639 = vpack.c.b16 %v5555, %v5551
        %v5640 = vpack.c.b16 %v5556, %v5552
        %v5641 = vpack.c.b16 %v5561, %v5557
        %v5642 = vpack.c.b16 %v5562, %v5558
        %v5643 = vpack.c.b16 %v5563, %v5559
        %v5644 = vpack.c.b16 %v5564, %v5560
        %v5645 = vpack.c.b16 %v5569, %v5565
        %v5646 = vpack.c.b16 %v5570, %v5566
        %v5647 = vpack.c.b16 %v5571, %v5567
        %v5648 = vpack.c.b16 %v5572, %v5568
        %v5649 = vpack.c.b16 %v5577, %v5573
        %v5650 = vpack.c.b16 %v5578, %v5574
        %v5651 = vpack.c.b16 %v5579, %v5575
        %v5652 = vpack.c.b16 %v5580, %v5576
        %v5653 = vpack.c.b16 %v5585, %v5581
        %v5654 = vpack.c.b16 %v5586, %v5582
        %v5655 = vpack.c.b16 %v5587, %v5583
        %v5656 = vpack.c.b16 %v5588, %v5584
        %v5657 = vpack.c.b16 %v5593, %v5589
        %v5658 = vpack.c.b16 %v5594, %v5590
        %v5659 = vpack.c.b16 %v5595, %v5591
        %v5660 = vpack.c.b16 %v5596, %v5592
        %5725 = vmatprep.subr.bf16.mxu0 %v5626
        %5726 = vmatpush1.bf16.msra.mxu0 %v5625
        %5727 = vmatprep.subr.bf16.mxu0 %v5622
        %5728 = vmatpush1.bf16.msra.mxu0 %v5621
        %5729 = vmatprep.subr.bf16.mxu0 %v5618
        %5730 = vmatpush1.bf16.msra.mxu0 %v5617
        %5731 = vmatprep.subr.bf16.mxu0 %v5614
        %5732 = vmatpush1.bf16.msra.mxu0 %v5613
        %5733 = vmatprep.subr.bf16.mxu0 %v5610
        %5734 = vmatpush1.bf16.msra.mxu0 %v5609
        %5735 = vmatprep.subr.bf16.mxu0 %v5606
        %5736 = vmatpush1.bf16.msra.mxu0 %v5605
        %5737 = vmatprep.subr.bf16.mxu0 %v5602
        %5738 = vmatpush1.bf16.msra.mxu0 %v5601
        %5739 = vmatprep.subr.bf16.mxu0 %v5598
        %5740 = vmatpush1.bf16.msra.mxu0 %v5597
        %5741 = vmatprep.subr.bf16.mxu0 %v5658
        %5742 = vmatpush2.bf16.msra.mxu0 %v5657
        %5743 = vmatprep.subr.bf16.mxu0 %v5654
        %5744 = vmatpush2.bf16.msra.mxu0 %v5653
        %5745 = vmatprep.subr.bf16.mxu0 %v5650
        %5746 = vmatpush2.bf16.msra.mxu0 %v5649
        %5747 = vmatprep.subr.bf16.mxu0 %v5646
        %5748 = vmatpush2.bf16.msra.mxu0 %v5645
        %5749 = vmatprep.subr.bf16.mxu0 %v5642
        %5750 = vmatpush2.bf16.msra.mxu0 %v5641
        %5751 = vmatprep.subr.bf16.mxu0 %v5638
        %5752 = vmatpush2.bf16.msra.mxu0 %v5637
        %5753 = vmatprep.subr.bf16.mxu0 %v5634
        %5754 = vmatpush2.bf16.msra.mxu0 %v5633
        %5755 = vmatprep.subr.bf16.mxu0 %v5630
        %5756 = vmatpush2.bf16.msra.mxu0 %v5629
        %5757 = vmatprep.mubr.bf16.mxu0 %v4633
        %5758 = vmatmul.mubr.bf16.gmra.mxu0 %v4632
        %v5759 = vpop.f32.mrf.mxu0
        %v5760 = vadd.f32 0.0, %v5759
        %v5761 = vpop.f32.mrf.mxu0
        %v5762 = vadd.f32 0.0, %v5761
        %v5763 = vpop.f32.mrf.mxu0
        %v5764 = vadd.f32 0.0, %v5763
        %v5765 = vpop.f32.mrf.mxu0
        %v5766 = vadd.f32 0.0, %v5765
        %5767 = vdwg.mxu0
        %5768 = vmatprep.subr.bf16.mxu0 %v5628
        %5769 = vmatpush1.bf16.msra.mxu0 %v5627
        %5770 = vmatprep.subr.bf16.mxu0 %v5624
        %5771 = vmatpush1.bf16.msra.mxu0 %v5623
        %5772 = vmatprep.subr.bf16.mxu0 %v5620
        %5773 = vmatpush1.bf16.msra.mxu0 %v5619
        %5774 = vmatprep.subr.bf16.mxu0 %v5616
        %5775 = vmatpush1.bf16.msra.mxu0 %v5615
        %5776 = vmatprep.subr.bf16.mxu0 %v5612
        %5777 = vmatpush1.bf16.msra.mxu0 %v5611
        %5778 = vmatprep.subr.bf16.mxu0 %v5608
        %5779 = vmatpush1.bf16.msra.mxu0 %v5607
        %5780 = vmatprep.subr.bf16.mxu0 %v5604
        %5781 = vmatpush1.bf16.msra.mxu0 %v5603
        %5782 = vmatprep.subr.bf16.mxu0 %v5600
        %5783 = vmatpush1.bf16.msra.mxu0 %v5599
        %5784 = vmatprep.subr.bf16.mxu0 %v5660
        %5785 = vmatpush2.bf16.msra.mxu0 %v5659
        %5786 = vmatprep.subr.bf16.mxu0 %v5656
        %5787 = vmatpush2.bf16.msra.mxu0 %v5655
        %5788 = vmatprep.subr.bf16.mxu0 %v5652
        %5789 = vmatpush2.bf16.msra.mxu0 %v5651
        %5790 = vmatprep.subr.bf16.mxu0 %v5648
        %5791 = vmatpush2.bf16.msra.mxu0 %v5647
        %5792 = vmatprep.subr.bf16.mxu0 %v5644
        %5793 = vmatpush2.bf16.msra.mxu0 %v5643
        %5794 = vmatprep.subr.bf16.mxu0 %v5640
        %5795 = vmatpush2.bf16.msra.mxu0 %v5639
        %5796 = vmatprep.subr.bf16.mxu0 %v5636
        %5797 = vmatpush2.bf16.msra.mxu0 %v5635
        %5798 = vmatprep.subr.bf16.mxu0 %v5632
        %5799 = vmatpush2.bf16.msra.mxu0 %v5631
        %5800 = vmatprep.mubr.bf16.mxu0 %v4633
        %5801 = vmatmul.mubr.bf16.gmra.mxu0 %v4632
        %v5802 = vpop.f32.mrf.mxu0
        %v5803 = vadd.f32 0.0, %v5802
        %v5804 = vpop.f32.mrf.mxu0
        %v5805 = vadd.f32 0.0, %v5804
        %v5806 = vpop.f32.mrf.mxu0
        %v5807 = vadd.f32 0.0, %v5806
        %v5808 = vpop.f32.mrf.mxu0
        %v5809 = vadd.f32 0.0, %v5808
        %5810 = vdwg.mxu0
        %v5811 = vadd.f32 %v5247, %v5760
        %v5812 = vadd.f32 %v5249, %v5762
        %v5813 = vadd.f32 %v5251, %v5764
        %v5814 = vadd.f32 %v5253, %v5766
        %v5815 = vxor.u32 %v5811, 2147483648
        %v5816 = vxor.u32 %v5812, 2147483648
        %v5817 = vxor.u32 %v5813, 2147483648
        %v5818 = vxor.u32 %v5814, 2147483648
        %v5819 = vmul.f32 %v5815, 1.442695
        %v5820 = vpow.pop %v5819
        %v5821 = vmul.f32 %v5816, 1.442695
        %v5822 = vpow.pop %v5821
        %v5823 = vmul.f32 %v5817, 1.442695
        %v5824 = vpow.pop %v5823
        %v5825 = vmul.f32 %v5818, 1.442695
        %v5826 = vpow.pop %v5825
        %v5827 = vadd.f32 %v5820, 1.0
        %v5828 = vadd.f32 %v5822, 1.0
        %v5829 = vadd.f32 %v5824, 1.0
        %v5830 = vadd.f32 %v5826, 1.0
        %v5831 = vrcp.pop %v5827
        %v5832 = vmul.f32 1.0, %v5831
        %v5833 = vrcp.pop %v5828
        %v5834 = vmul.f32 1.0, %v5833
        %v5835 = vrcp.pop %v5829
        %v5836 = vmul.f32 1.0, %v5835
        %v5837 = vrcp.pop %v5830
        %v5838 = vmul.f32 1.0, %v5837
        %v5839 = vadd.f32 %v5290, %v5803
        %v5840 = vadd.f32 %v5292, %v5805
        %v5841 = vadd.f32 %v5294, %v5807
        %v5842 = vadd.f32 %v5296, %v5809
        %v5843 = vstv %s4631
        %v5844 = vsub.f32 %v5839, %v5843
        %v5845 = vsub.f32 %v5840, %v5843
        %v5846 = vsub.f32 %v5841, %v5843
        %v5847 = vsub.f32 %v5842, %v5843
        %v5848 = vxor.u32 %v5844, 2147483648
        %v5849 = vxor.u32 %v5845, 2147483648
        %v5850 = vxor.u32 %v5846, 2147483648
        %v5851 = vxor.u32 %v5847, 2147483648
        %v5852 = vmul.f32 %v5848, 1.442695
        %v5853 = vpow.pop %v5852
        %v5854 = vmul.f32 %v5849, 1.442695
        %v5855 = vpow.pop %v5854
        %v5856 = vmul.f32 %v5850, 1.442695
        %v5857 = vpow.pop %v5856
        %v5858 = vmul.f32 %v5851, 1.442695
        %v5859 = vpow.pop %v5858
        %v5860 = vadd.f32 %v5853, 1.0
        %v5861 = vadd.f32 %v5855, 1.0
        %v5862 = vadd.f32 %v5857, 1.0
        %v5863 = vadd.f32 %v5859, 1.0
        %v5864 = vrcp.pop %v5860
        %v5865 = vmul.f32 1.0, %v5864
        %v5866 = vrcp.pop %v5861
        %v5867 = vmul.f32 1.0, %v5866
        %v5868 = vrcp.pop %v5862
        %v5869 = vmul.f32 1.0, %v5868
        %v5870 = vrcp.pop %v5863
        %v5871 = vmul.f32 1.0, %v5870
        %v5872 = vmul.f32 %v5832, %v3530
        %v5873 = vmul.f32 %v5834, %v3531
        %v5874 = vmul.f32 %v5836, %v3532
        %v5875 = vmul.f32 %v5838, %v3533
        %v5876 = vpack.c.bf16 %v5874, %v5872
        %v5877 = vpack.c.bf16 %v5875, %v5873
        %v5878 = vld [vmem:[#allocation22 + $0x10] sm:$0xff]
        %v5879 = vld [vmem:[#allocation22 + $0x28] sm:$0xff]
        %v5880 = vld [vmem:[#allocation22 + $0x40] sm:$0xff]
        %v5881 = vld [vmem:[#allocation22 + $0x58] sm:$0xff]
        %v5882 = vld [vmem:[#allocation22 + $0x70] sm:$0xff]
        %v5883 = vld [vmem:[#allocation22 + $0x88] sm:$0xff]
        %v5884 = vld [vmem:[#allocation22 + $0xa0] sm:$0xff]
        %v5885 = vld [vmem:[#allocation22 + $0xb8] sm:$0xff]
        %v5886 = vld [vmem:[#allocation22 + $0xd0] sm:$0xff]
        %v5887 = vld [vmem:[#allocation22 + $0xe8] sm:$0xff]
        %v5888 = vld [vmem:[#allocation22 + $0x100] sm:$0xff]
        %v5889 = vld [vmem:[#allocation22 + $0x118] sm:$0xff]
        %v5890 = vld [vmem:[#allocation22 + $0x130] sm:$0xff]
        %v5891 = vld [vmem:[#allocation22 + $0x148] sm:$0xff]
        %v5892 = vld [vmem:[#allocation22 + $0x160] sm:$0xff]
        %v5893 = vld [vmem:[#allocation22 + $0x178] sm:$0xff]
        %v5894 = vld [vmem:[#allocation22 + $0x190] sm:$0xff]
        %v5895 = vld [vmem:[#allocation22 + $0x1a8] sm:$0xff]
        %v5896 = vld [vmem:[#allocation22 + $0x1c0] sm:$0xff]
        %v5897 = vld [vmem:[#allocation22 + $0x1d8] sm:$0xff]
        %v5898 = vld [vmem:[#allocation22 + $0x1f0] sm:$0xff]
        %v5899 = vld [vmem:[#allocation22 + $0x208] sm:$0xff]
        %v5900 = vld [vmem:[#allocation22 + $0x220] sm:$0xff]
        %v5901 = vld [vmem:[#allocation22 + $0x238] sm:$0xff]
        %v5902 = vld [vmem:[#allocation22 + $0x250] sm:$0xff]
        %v5903 = vld [vmem:[#allocation22 + $0x268] sm:$0xff]
        %v5904 = vld [vmem:[#allocation22 + $0x280] sm:$0xff]
        %v5905 = vld [vmem:[#allocation22 + $0x298] sm:$0xff]
        %v5906 = vld [vmem:[#allocation22 + $0x2b0] sm:$0xff]
        %v5907 = vld [vmem:[#allocation22 + $0x2c8] sm:$0xff]
        %v5908 = vld [vmem:[#allocation22 + $0x2e0] sm:$0xff]
        %v5909 = vld [vmem:[#allocation22 + $0x2f8] sm:$0xff]
        %v5942 = vunpack.c.l.b16 %v5878
        %v5943 = vunpack.c.h.b16 %v5878
        %v5944 = vunpack.c.l.b16 %v5879
        %v5945 = vunpack.c.h.b16 %v5879
        %v5946 = vunpack.c.l.b16 %v5880
        %v5947 = vunpack.c.h.b16 %v5880
        %v5948 = vunpack.c.l.b16 %v5881
        %v5949 = vunpack.c.h.b16 %v5881
        %v5950 = vunpack.c.l.b16 %v5882
        %v5951 = vunpack.c.h.b16 %v5882
        %v5952 = vunpack.c.l.b16 %v5883
        %v5953 = vunpack.c.h.b16 %v5883
        %v5954 = vunpack.c.l.b16 %v5884
        %v5955 = vunpack.c.h.b16 %v5884
        %v5956 = vunpack.c.l.b16 %v5885
        %v5957 = vunpack.c.h.b16 %v5885
        %v5958 = vunpack.c.l.b16 %v5886
        %v5959 = vunpack.c.h.b16 %v5886
        %v5960 = vunpack.c.l.b16 %v5887
        %v5961 = vunpack.c.h.b16 %v5887
        %v5962 = vunpack.c.l.b16 %v5888
        %v5963 = vunpack.c.h.b16 %v5888
        %v5964 = vunpack.c.l.b16 %v5889
        %v5965 = vunpack.c.h.b16 %v5889
        %v5966 = vunpack.c.l.b16 %v5890
        %v5967 = vunpack.c.h.b16 %v5890
        %v5968 = vunpack.c.l.b16 %v5891
        %v5969 = vunpack.c.h.b16 %v5891
        %v5970 = vunpack.c.l.b16 %v5892
        %v5971 = vunpack.c.h.b16 %v5892
        %v5972 = vunpack.c.l.b16 %v5893
        %v5973 = vunpack.c.h.b16 %v5893
        %v5974 = vunpack.c.l.b16 %v5894
        %v5975 = vunpack.c.h.b16 %v5894
        %v5976 = vunpack.c.l.b16 %v5895
        %v5977 = vunpack.c.h.b16 %v5895
        %v5978 = vunpack.c.l.b16 %v5896
        %v5979 = vunpack.c.h.b16 %v5896
        %v5980 = vunpack.c.l.b16 %v5897
        %v5981 = vunpack.c.h.b16 %v5897
        %v5982 = vunpack.c.l.b16 %v5898
        %v5983 = vunpack.c.h.b16 %v5898
        %v5984 = vunpack.c.l.b16 %v5899
        %v5985 = vunpack.c.h.b16 %v5899
        %v5986 = vunpack.c.l.b16 %v5900
        %v5987 = vunpack.c.h.b16 %v5900
        %v5988 = vunpack.c.l.b16 %v5901
        %v5989 = vunpack.c.h.b16 %v5901
        %v5990 = vunpack.c.l.b16 %v5902
        %v5991 = vunpack.c.h.b16 %v5902
        %v5992 = vunpack.c.l.b16 %v5903
        %v5993 = vunpack.c.h.b16 %v5903
        %v5994 = vunpack.c.l.b16 %v5904
        %v5995 = vunpack.c.h.b16 %v5904
        %v5996 = vunpack.c.l.b16 %v5905
        %v5997 = vunpack.c.h.b16 %v5905
        %v5998 = vunpack.c.l.b16 %v5906
        %v5999 = vunpack.c.h.b16 %v5906
        %v6000 = vunpack.c.l.b16 %v5907
        %v6001 = vunpack.c.h.b16 %v5907
        %v6002 = vunpack.c.l.b16 %v5908
        %v6003 = vunpack.c.h.b16 %v5908
        %v6004 = vunpack.c.l.b16 %v5909
        %v6005 = vunpack.c.h.b16 %v5909
        %v6006 = vpack.c.b16 %v5944, %v5942
        %v6007 = vpack.c.b16 %v5945, %v5943
        %v6008 = vpack.c.b16 %v5948, %v5946
        %v6009 = vpack.c.b16 %v5949, %v5947
        %v6010 = vpack.c.b16 %v5952, %v5950
        %v6011 = vpack.c.b16 %v5953, %v5951
        %v6012 = vpack.c.b16 %v5956, %v5954
        %v6013 = vpack.c.b16 %v5957, %v5955
        %v6014 = vpack.c.b16 %v5960, %v5958
        %v6015 = vpack.c.b16 %v5961, %v5959
        %v6016 = vpack.c.b16 %v5964, %v5962
        %v6017 = vpack.c.b16 %v5965, %v5963
        %v6018 = vpack.c.b16 %v5968, %v5966
        %v6019 = vpack.c.b16 %v5969, %v5967
        %v6020 = vpack.c.b16 %v5972, %v5970
        %v6021 = vpack.c.b16 %v5973, %v5971
        %v6022 = vpack.c.b16 %v5976, %v5974
        %v6023 = vpack.c.b16 %v5977, %v5975
        %v6024 = vpack.c.b16 %v5980, %v5978
        %v6025 = vpack.c.b16 %v5981, %v5979
        %v6026 = vpack.c.b16 %v5984, %v5982
        %v6027 = vpack.c.b16 %v5985, %v5983
        %v6028 = vpack.c.b16 %v5988, %v5986
        %v6029 = vpack.c.b16 %v5989, %v5987
        %v6030 = vpack.c.b16 %v5992, %v5990
        %v6031 = vpack.c.b16 %v5993, %v5991
        %v6032 = vpack.c.b16 %v5996, %v5994
        %v6033 = vpack.c.b16 %v5997, %v5995
        %v6034 = vpack.c.b16 %v6000, %v5998
        %v6035 = vpack.c.b16 %v6001, %v5999
        %v6036 = vpack.c.b16 %v6004, %v6002
        %v6037 = vpack.c.b16 %v6005, %v6003
        %6070 = vmatprep.subr.bf16.mxu0 %v6021
        %6071 = vmatpush1.bf16.msra.mxu0 %v6020
        %6072 = vmatprep.subr.bf16.mxu0 %v6019
        %6073 = vmatpush1.bf16.msra.mxu0 %v6018
        %6074 = vmatprep.subr.bf16.mxu0 %v6017
        %6075 = vmatpush1.bf16.msra.mxu0 %v6016
        %6076 = vmatprep.subr.bf16.mxu0 %v6015
        %6077 = vmatpush1.bf16.msra.mxu0 %v6014
        %6078 = vmatprep.subr.bf16.mxu0 %v6013
        %6079 = vmatpush1.bf16.msra.mxu0 %v6012
        %6080 = vmatprep.subr.bf16.mxu0 %v6011
        %6081 = vmatpush1.bf16.msra.mxu0 %v6010
        %6082 = vmatprep.subr.bf16.mxu0 %v6009
        %6083 = vmatpush1.bf16.msra.mxu0 %v6008
        %6084 = vmatprep.subr.bf16.mxu0 %v6007
        %6085 = vmatpush1.bf16.msra.mxu0 %v6006
        %6086 = vmatprep.subr.bf16.mxu0 %v6037
        %6087 = vmatpush2.bf16.msra.mxu0 %v6036
        %6088 = vmatprep.subr.bf16.mxu0 %v6035
        %6089 = vmatpush2.bf16.msra.mxu0 %v6034
        %6090 = vmatprep.subr.bf16.mxu0 %v6033
        %6091 = vmatpush2.bf16.msra.mxu0 %v6032
        %6092 = vmatprep.subr.bf16.mxu0 %v6031
        %6093 = vmatpush2.bf16.msra.mxu0 %v6030
        %6094 = vmatprep.subr.bf16.mxu0 %v6029
        %6095 = vmatpush2.bf16.msra.mxu0 %v6028
        %6096 = vmatprep.subr.bf16.mxu0 %v6027
        %6097 = vmatpush2.bf16.msra.mxu0 %v6026
        %6098 = vmatprep.subr.bf16.mxu0 %v6025
        %6099 = vmatpush2.bf16.msra.mxu0 %v6024
        %6100 = vmatprep.subr.bf16.mxu0 %v6023
        %6101 = vmatpush2.bf16.msra.mxu0 %v6022
        %6102 = vmatprep.mubr.bf16.mxu0 %v5877
        %6103 = vmatmul.mubr.bf16.gmra.mxu0 %v5876
        %v6104 = vpop.f32.mrf.mxu0
        %v6105 = vadd.f32 0.0, %v6104
        %v6106 = vpop.f32.mrf.mxu0
        %v6107 = vadd.f32 0.0, %v6106
        %v6108 = vpop.f32.mrf.mxu0
        %v6109 = vadd.f32 0.0, %v6108
        %v6110 = vpop.f32.mrf.mxu0
        %v6111 = vadd.f32 0.0, %v6110
        %6112 = vdwg.mxu0
        %v6113 = vadd.f32 %v5333, %v6105
        %v6114 = vadd.f32 %v5335, %v6107
        %v6115 = vadd.f32 %v5337, %v6109
        %v6116 = vadd.f32 %v5339, %v6111
        %v6117 = vtanh.pop %v6113
        %v6118 = vtanh.pop %v6114
        %v6119 = vtanh.pop %v6115
        %v6120 = vtanh.pop %v6116
        %v6121 = vsub.f32 1.0, %v5865
        %v6122 = vsub.f32 1.0, %v5867
        %v6123 = vsub.f32 1.0, %v5869
        %v6124 = vsub.f32 1.0, %v5871
        %v6125 = vmul.f32 %v6121, %v3530
        %v6126 = vmul.f32 %v6122, %v3531
        %v6127 = vmul.f32 %v6123, %v3532
        %v6128 = vmul.f32 %v6124, %v3533
        %v6129 = vmul.f32 %v5865, %v6117
        %v6130 = vmul.f32 %v5867, %v6118
        %v6131 = vmul.f32 %v5869, %v6119
        %v6132 = vmul.f32 %v5871, %v6120
        %v6133 = vadd.f32 %v6125, %v6129
        %v6134 = vadd.f32 %v6126, %v6130
        %v6135 = vadd.f32 %v6127, %v6131
        %v6136 = vadd.f32 %v6128, %v6132
        %6137 = vst [vmem:[%s711] sm:$0xff] %v6133
        %6138 = vst [vmem:[%s711 + $0x8] sm:$0xff] %v6134
        %6139 = vst [vmem:[%s711 + $0x10] sm:$0xff] %v6135
        %6140 = vst [vmem:[%s711 + $0x18] sm:$0xff] %v6136
        %s6141 = sand.u32 %s413, 1
        %s6142 = scalar_lea.sflag [#allocation7], %s6141
        %s6143 = sand.u32 %s413, 1
        %s6144 = smul.addr %s6143, 32
        %s6145 = scalar_lea.vmem [#allocation23], %s6144
        // Predicated region
        $region133: #{tpu_custom_call.1} parent=87 // pred_check
          %p6146 = pneg %p423
        $region134: #{tpu_custom_call.1} parent=87 // pred_check_branch
          %6148 = sbr.rel (%p6146) target = $region136
        $region135: #{tpu_custom_call.1} parent=87 // pred_region
          %s6150 = ssub.s32 512, 512
          %6151 = vsyncadd %s6142, %s6150
          %s6152 = smul.addr %s43, 4
          %s6153 = smul.addr %s6152, 128
          %s6154 = scalar_lea.hbm %s17, %s6153
          %s6155 = sshll.u32 %s6145, 4
          %s6156 = int_to_ptr.vmem [resolvable:$true] %s6155
          %6161 = dma.vmem_to_hbm [thread:$0]  %s6156, 512, %s6154, %s6142, 256, 256, 16
        $region136: #{tpu_custom_call.1} parent=87 // pred_fallthru
          _
      $region88: #{tpu_custom_call.1} parent=5 // pred_fallthru
        _
      %p6162 = scmp.le.s32.totalorder 2, %s38
      // Predicated region
      $region137: #{tpu_custom_call.1} parent=5 // pred_check
        %p6163 = pneg %p6162
      $region138: #{tpu_custom_call.1} parent=5 // pred_check_branch
        %6165 = sbr.rel (%p6163) target = $region140
      $region139: #{tpu_custom_call.1} parent=5 // pred_region
        %s6166 = ssub.s32 %s38, 2
        // Predicated region
        $region141: #{tpu_custom_call.1} parent=139 // pred_check
          %p6167 = pneg %p429
        $region142: #{tpu_custom_call.1} parent=139 // pred_check_branch
          %6169 = sbr.rel (%p6167) target = $region144
        $region143: #{tpu_custom_call.1} parent=139 // pred_region
          %s6170 = sand.u32 %s414, 1
          %s6171 = scalar_lea.sflag [#allocation7], %s6170
          %s6172 = sand.u32 %s414, 1
          %s6173 = smul.addr %s6172, 32
          %s6174 = scalar_lea.vmem [#allocation23], %s6173
          %6175 = dma.done %s6171, 512
        $region144: #{tpu_custom_call.1} parent=139 // pred_fallthru
          _
      $region140: #{tpu_custom_call.1} parent=5 // pred_fallthru
        _
    $region6: #{tpu_custom_call.1} parent=1 // loop_footer
      %s42 = sadd.s32 1, %s38
    $region7: #{tpu_custom_call.1} parent=1 // loop_footer_branch
      %37 = sbr.rel target = $region3
    $region8: #{tpu_custom_call.1} parent=1 // loop_exit
      _
    %6176 = vsyncpa [#allocation6], 1
    %s6177 = scalar_lea.sflag [#allocation6], 1
    %6178 = vsyncpa %s6177, 1
    %6179 = vsyncpa [#allocation9], 1
    %6180 = vsyncpa [#allocation12], 1
    %6181 = vsyncpa [#allocation15], 1
    %6182 = vsyncpa [#allocation18], 1
    %6183 = vsyncpa [#allocation21], 1
    %6184 = vsyncpa [#allocation7], 1
    %s6185 = scalar_lea.sflag [#allocation7], 1
    %6186 = vsyncpa %s6185, 1

</llo_original>
